<compile_context>
chip_gen: v7x
topology: tpu7x:2x2x1
jax: 0.10.0
libtpu: 0.0.40
codegen_flags: <defaults>
</compile_context>

<pallas_src>
import jax
import jax.numpy as jnp
from jax.experimental import pallas as pl
from jax.experimental.pallas import tpu as pltpu

K_IN = 28 * 28          # 784
N_OUT_PAD = 128         # final layer padded from 1 -> 128 lanes


def _leaky_relu(x, slope=0.2):
    # max(x, slope*x) == where(x>0, x, slope*x) for slope in (0,1), one fewer VALU op.
    return jnp.maximum(x, slope * x)


def discriminator_kernel(x_ref,
                         w1_ref, b1_ref,
                         w2_ref, b2_ref,
                         w3_ref, b3_ref,
                         w4_ref, b4_ref,
                         o_ref):
    # x_ref: (TB, 784) f32 | w*: bf16 | b*: f32 | o_ref: (TB, 128) f32
    xb = x_ref[...].astype(jnp.bfloat16)          # f32->bf16 hides under fc1 matmul
    h = jnp.dot(xb, w1_ref[...], preferred_element_type=jnp.float32)
    h = _leaky_relu(h + b1_ref[...])

    h = jnp.dot(h.astype(jnp.bfloat16), w2_ref[...],
                preferred_element_type=jnp.float32)
    h = _leaky_relu(h + b2_ref[...])

    h = jnp.dot(h.astype(jnp.bfloat16), w3_ref[...],
                preferred_element_type=jnp.float32)
    h = _leaky_relu(h + b3_ref[...])

    h = jnp.dot(h.astype(jnp.bfloat16), w4_ref[...],
                preferred_element_type=jnp.float32) + b4_ref[...]

    # sigmoid = 1 / (1 + exp(-h)); exp and approx reciprocal both run on the EUP.
    o_ref[...] = pl.reciprocal(1.0 + jnp.exp(-h), approx=True)


def _pick_batch_tiling(B, tb_max=1024, min_tb=256):
    """Return (tile_rows, padded_batch, num_tiles).

    Near-even 8-row-aligned tiles: minimal dead-row padding, per-step overhead
    amortized, and >=2 grid steps for large batches (v7x has 2 TensorCores).
    """
    b8 = max(8, ((B + 7) // 8) * 8)               # sublane-aligned batch
    n = -(-b8 // tb_max)                          # tiles needed at tb_max
    if n == 1 and b8 >= 2 * min_tb:
        n = 2                                     # keep both v7x TCs busy
    tb = ((-(-b8 // n) + 7) // 8) * 8             # ceil(b8/n), rounded up to 8
    return tb, n * tb, n


def discriminator_forward(x, params, *, tb_max=1024):
    """x: (B, 1, 28, 28) or anything flattening to (B, 784); returns (B, 1) f32."""
    x2d = x.reshape(-1, K_IN).astype(jnp.float32)
    B = x2d.shape[0]
    (w1, b1), (w2, b2), (w3, b3), (w4, b4) = params

    # ---- wrapper-side layout plumbing (weights/biases only; x stays untouched) ----
    w1b = w1.astype(jnp.bfloat16)
    w2b = w2.astype(jnp.bfloat16)
    w3b = w3.astype(jnp.bfloat16)
    w4p = jnp.pad(w4, ((0, 0), (0, N_OUT_PAD - 1))).astype(jnp.bfloat16)  # zero cols
    b1f = b1.astype(jnp.float32)
    b2f = b2.astype(jnp.float32)
    b3f = b3.astype(jnp.float32)
    b4p = jnp.pad(b4, ((0, 0), (0, N_OUT_PAD - 1))).astype(jnp.float32)

    # ---- adaptive batch tiling ----
    tb, b_pad, n_tiles = _pick_batch_tiling(B, tb_max)
    if b_pad != B:
        x2d = jnp.pad(x2d, ((0, b_pad - B), (0, 0)))

    # Constant-index blocks stay VMEM-resident; single-buffer them (no pipelining
    # needed since the block never changes).
    def resident(shape):
        return pl.BlockSpec(shape, lambda i: (0, 0), pipeline_mode=pl.Buffered(1))

    out = pl.pallas_call(
        discriminator_kernel,
        out_shape=jax.ShapeDtypeStruct((b_pad, N_OUT_PAD), jnp.float32),
        grid=(n_tiles,),
        in_specs=[
            pl.BlockSpec((tb, K_IN), lambda i: (i, 0)),   # batch tile (pipelined)
            resident(w1b.shape), resident(b1f.shape),     # weights stay in VMEM
            resident(w2b.shape), resident(b2f.shape),
            resident(w3b.shape), resident(b3f.shape),
            resident(w4p.shape), resident(b4p.shape),
        ],
        out_specs=pl.BlockSpec((tb, N_OUT_PAD), lambda i: (i, 0)),
        compiler_params=pltpu.CompilerParams(
            dimension_semantics=("parallel",),
            vmem_limit_bytes=48 << 20,
        ),
    )(x2d, w1b, b1f, w2b, b2f, w3b, b3f, w4p, b4p)

    return out[:B, :1]


def init_params(key):
    """Deterministic synthetic params; layer l: W (in, out), b (1, out) — f32."""
    dims = [(K_IN, 1024), (1024, 512), (512, 256), (256, 1)]
    params = []
    for din, dout in dims:
        kw, kb, key = jax.random.split(key, 3)
        scale = 1.0 / jnp.sqrt(jnp.float32(din))      # ~ PyTorch Linear init range
        w = jax.random.uniform(kw, (din, dout), jnp.float32, -scale, scale)
        b = jax.random.uniform(kb, (1, dout), jnp.float32, -scale, scale)
        params.append((w, b))
    return params


def reference_forward(x, params):
    """Plain-JAX reference with matching bf16 MXU feeds / f32 accumulation."""
    h = x.reshape(-1, K_IN).astype(jnp.float32)
    (w1, b1), (w2, b2), (w3, b3), (w4, b4) = params

    def lin(h, w, b):
        return jnp.dot(h.astype(jnp.bfloat16), w.astype(jnp.bfloat16),
                       preferred_element_type=jnp.float32) + b

    h = _leaky_relu(lin(h, w1, b1))
    h = _leaky_relu(lin(h, w2, b2))
    h = _leaky_relu(lin(h, w3, b3))
    return jax.nn.sigmoid(lin(h, w4, b4))


if __name__ == "__main__":
    key = jax.random.PRNGKey(0)
    kx, kp = jax.random.split(key)

    # Small batch, MNIST-like NCHW input as the PyTorch module expects.
    x = jax.random.normal(kx, (2, 1, 28, 28), jnp.float32)
    params = init_params(kp)

    fwd = jax.jit(discriminator_forward)
    out = jax.block_until_ready(fwd(x, params))

    ref = reference_forward(x, params)
    assert out.shape == (2, 1), out.shape
    # bf16 MXU feeds + approximate EUP reciprocal => compare to matched reference
    # with a modest tolerance (sigmoid outputs live in (0, 1)).
    assert jnp.allclose(out, ref, atol=2e-3, rtol=2e-3), (out, ref)

    print("KERNEL_OK")
</pallas_src>

<mosaic_0001>
module attributes {stable_mosaic.version = 11 : i64} {
  func.func @discriminator_kernel(%arg0: i32, %arg1: memref<8x784xf32, #tpu.memory_space<vmem>>, %arg2: memref<784x1024xbf16, #tpu.memory_space<vmem>>, %arg3: memref<1x1024xf32, #tpu.memory_space<vmem>>, %arg4: memref<1024x512xbf16, #tpu.memory_space<vmem>>, %arg5: memref<1x512xf32, #tpu.memory_space<vmem>>, %arg6: memref<512x256xbf16, #tpu.memory_space<vmem>>, %arg7: memref<1x256xf32, #tpu.memory_space<vmem>>, %arg8: memref<256x128xbf16, #tpu.memory_space<vmem>>, %arg9: memref<1x128xf32, #tpu.memory_space<vmem>>, %arg10: memref<8x128xf32, #tpu.memory_space<vmem>>) attributes {dimension_semantics = [#tpu.dimension_semantics<parallel>], iteration_bounds = array<i64: 1>, scalar_prefetch = 0 : i64, scratch_operands = 0 : i64, tpu.core_type = #tpu.core_type<tc>, window_params = [{transform_indices = @transform_0, window_bounds = array<i64: 8, 784>}, {pipeline_mode = #tpu.pipeline_mode<synchronous>, transform_indices = @transform_1, window_bounds = array<i64: 784, 1024>}, {pipeline_mode = #tpu.pipeline_mode<synchronous>, transform_indices = @transform_2, window_bounds = array<i64: 1, 1024>}, {pipeline_mode = #tpu.pipeline_mode<synchronous>, transform_indices = @transform_3, window_bounds = array<i64: 1024, 512>}, {pipeline_mode = #tpu.pipeline_mode<synchronous>, transform_indices = @transform_4, window_bounds = array<i64: 1, 512>}, {pipeline_mode = #tpu.pipeline_mode<synchronous>, transform_indices = @transform_5, window_bounds = array<i64: 512, 256>}, {pipeline_mode = #tpu.pipeline_mode<synchronous>, transform_indices = @transform_6, window_bounds = array<i64: 1, 256>}, {pipeline_mode = #tpu.pipeline_mode<synchronous>, transform_indices = @transform_7, window_bounds = array<i64: 256, 128>}, {pipeline_mode = #tpu.pipeline_mode<synchronous>, transform_indices = @transform_8, window_bounds = array<i64: 1, 128>}, {transform_indices = @transform_9, window_bounds = array<i64: 8, 128>}]} {
    %c0 = arith.constant 0 : index
    %c0_0 = arith.constant 0 : index
    %0 = vector.load %arg1[%c0, %c0_0] : memref<8x784xf32, #tpu.memory_space<vmem>>, vector<8x784xf32>
    %1 = arith.truncf %0 : vector<8x784xf32> to vector<8x784xbf16>
    %c0_1 = arith.constant 0 : index
    %c0_2 = arith.constant 0 : index
    %2 = vector.load %arg2[%c0_1, %c0_2] : memref<784x1024xbf16, #tpu.memory_space<vmem>>, vector<784x1024xbf16>
    %cst = arith.constant dense<0.000000e+00> : vector<8x1024xf32>
    %3 = tpu.matmul %1, %2, %cst {dimension_numbers = #tpu.dot_dimension_numbers<[1], [0], [0], [1], [0, 0, 1, 1], [], []>} : vector<8x784xbf16>, vector<784x1024xbf16>, vector<8x1024xf32> -> vector<8x1024xf32>
    %c0_3 = arith.constant 0 : index
    %c0_4 = arith.constant 0 : index
    %4 = vector.load %arg3[%c0_3, %c0_4] : memref<1x1024xf32, #tpu.memory_space<vmem>>, vector<1x1024xf32>
    %5 = vector.broadcast %4 : vector<1x1024xf32> to vector<8x1024xf32>
    %6 = arith.addf %3, %5 : vector<8x1024xf32>
    %cst_5 = arith.constant 2.000000e-01 : f32
    %7 = vector.broadcast %cst_5 : f32 to vector<8x1024xf32>
    %8 = arith.mulf %7, %6 : vector<8x1024xf32>
    %9 = arith.maximumf %6, %8 : vector<8x1024xf32>
    %10 = arith.truncf %9 : vector<8x1024xf32> to vector<8x1024xbf16>
    %c0_6 = arith.constant 0 : index
    %c0_7 = arith.constant 0 : index
    %11 = vector.load %arg4[%c0_6, %c0_7] : memref<1024x512xbf16, #tpu.memory_space<vmem>>, vector<1024x512xbf16>
    %cst_8 = arith.constant dense<0.000000e+00> : vector<8x512xf32>
    %12 = tpu.matmul %10, %11, %cst_8 {dimension_numbers = #tpu.dot_dimension_numbers<[1], [0], [0], [1], [0, 0, 1, 1], [], []>} : vector<8x1024xbf16>, vector<1024x512xbf16>, vector<8x512xf32> -> vector<8x512xf32>
    %c0_9 = arith.constant 0 : index
    %c0_10 = arith.constant 0 : index
    %13 = vector.load %arg5[%c0_9, %c0_10] : memref<1x512xf32, #tpu.memory_space<vmem>>, vector<1x512xf32>
    %14 = vector.broadcast %13 : vector<1x512xf32> to vector<8x512xf32>
    %15 = arith.addf %12, %14 : vector<8x512xf32>
    %cst_11 = arith.constant 2.000000e-01 : f32
    %16 = vector.broadcast %cst_11 : f32 to vector<8x512xf32>
    %17 = arith.mulf %16, %15 : vector<8x512xf32>
    %18 = arith.maximumf %15, %17 : vector<8x512xf32>
    %19 = arith.truncf %18 : vector<8x512xf32> to vector<8x512xbf16>
    %c0_12 = arith.constant 0 : index
    %c0_13 = arith.constant 0 : index
    %20 = vector.load %arg6[%c0_12, %c0_13] : memref<512x256xbf16, #tpu.memory_space<vmem>>, vector<512x256xbf16>
    %cst_14 = arith.constant dense<0.000000e+00> : vector<8x256xf32>
    %21 = tpu.matmul %19, %20, %cst_14 {dimension_numbers = #tpu.dot_dimension_numbers<[1], [0], [0], [1], [0, 0, 1, 1], [], []>} : vector<8x512xbf16>, vector<512x256xbf16>, vector<8x256xf32> -> vector<8x256xf32>
    %c0_15 = arith.constant 0 : index
    %c0_16 = arith.constant 0 : index
    %22 = vector.load %arg7[%c0_15, %c0_16] : memref<1x256xf32, #tpu.memory_space<vmem>>, vector<1x256xf32>
    %23 = vector.broadcast %22 : vector<1x256xf32> to vector<8x256xf32>
    %24 = arith.addf %21, %23 : vector<8x256xf32>
    %cst_17 = arith.constant 2.000000e-01 : f32
    %25 = vector.broadcast %cst_17 : f32 to vector<8x256xf32>
    %26 = arith.mulf %25, %24 : vector<8x256xf32>
    %27 = arith.maximumf %24, %26 : vector<8x256xf32>
    %28 = arith.truncf %27 : vector<8x256xf32> to vector<8x256xbf16>
    %c0_18 = arith.constant 0 : index
    %c0_19 = arith.constant 0 : index
    %29 = vector.load %arg8[%c0_18, %c0_19] : memref<256x128xbf16, #tpu.memory_space<vmem>>, vector<256x128xbf16>
    %cst_20 = arith.constant dense<0.000000e+00> : vector<8x128xf32>
    %30 = tpu.matmul %28, %29, %cst_20 {dimension_numbers = #tpu.dot_dimension_numbers<[1], [0], [0], [1], [0, 0, 1, 1], [], []>} : vector<8x256xbf16>, vector<256x128xbf16>, vector<8x128xf32> -> vector<8x128xf32>
    %c0_21 = arith.constant 0 : index
    %c0_22 = arith.constant 0 : index
    %31 = vector.load %arg9[%c0_21, %c0_22] : memref<1x128xf32, #tpu.memory_space<vmem>>, vector<1x128xf32>
    %32 = vector.broadcast %31 : vector<1x128xf32> to vector<8x128xf32>
    %33 = arith.addf %30, %32 : vector<8x128xf32>
    %cst_23 = arith.constant 0.000000e+00 : f32
    %34 = vector.broadcast %cst_23 : f32 to vector<8x128xf32>
    %35 = arith.subf %34, %33 : vector<8x128xf32>
    %36 = math.exp %35 : vector<8x128xf32>
    %cst_24 = arith.constant 1.000000e+00 : f32
    %37 = vector.broadcast %cst_24 : f32 to vector<8x128xf32>
    %38 = arith.addf %37, %36 : vector<8x128xf32>
    %39 = tpu.reciprocal %38 {approx = true} : vector<8x128xf32> -> vector<8x128xf32>
    %c0_25 = arith.constant 0 : index
    %c0_26 = arith.constant 0 : index
    %40 = vector.load %arg10[%c0_25, %c0_26] : memref<8x128xf32, #tpu.memory_space<vmem>>, vector<8x128xf32>
    tpu.vector_store %arg10[%c0_25, %c0_26], %39 {strides = array<i32>} : memref<8x128xf32, #tpu.memory_space<vmem>>, vector<8x128xf32>,
    return
  }
  func.func @transform_0(%arg0: i32) -> (i32, i32) {
    %c0_i32 = arith.constant 0 : i32
    %c0_i32_0 = arith.constant 0 : i32
    return %arg0, %c0_i32 : i32, i32
  }
  func.func @transform_1(%arg0: i32) -> (i32, i32) {
    %c0_i32 = arith.constant 0 : i32
    %c0_i32_0 = arith.constant 0 : i32
    %c0_i32_1 = arith.constant 0 : i32
    return %c0_i32, %c0_i32_0 : i32, i32
  }
  func.func @transform_2(%arg0: i32) -> (i32, i32) {
    %c0_i32 = arith.constant 0 : i32
    %c0_i32_0 = arith.constant 0 : i32
    %c0_i32_1 = arith.constant 0 : i32
    return %c0_i32, %c0_i32_0 : i32, i32
  }
  func.func @transform_3(%arg0: i32) -> (i32, i32) {
    %c0_i32 = arith.constant 0 : i32
    %c0_i32_0 = arith.constant 0 : i32
    %c0_i32_1 = arith.constant 0 : i32
    return %c0_i32, %c0_i32_0 : i32, i32
  }
  func.func @transform_4(%arg0: i32) -> (i32, i32) {
    %c0_i32 = arith.constant 0 : i32
    %c0_i32_0 = arith.constant 0 : i32
    %c0_i32_1 = arith.constant 0 : i32
    return %c0_i32, %c0_i32_0 : i32, i32
  }
  func.func @transform_5(%arg0: i32) -> (i32, i32) {
    %c0_i32 = arith.constant 0 : i32
    %c0_i32_0 = arith.constant 0 : i32
    %c0_i32_1 = arith.constant 0 : i32
    return %c0_i32, %c0_i32_0 : i32, i32
  }
  func.func @transform_6(%arg0: i32) -> (i32, i32) {
    %c0_i32 = arith.constant 0 : i32
    %c0_i32_0 = arith.constant 0 : i32
    %c0_i32_1 = arith.constant 0 : i32
    return %c0_i32, %c0_i32_0 : i32, i32
  }
  func.func @transform_7(%arg0: i32) -> (i32, i32) {
    %c0_i32 = arith.constant 0 : i32
    %c0_i32_0 = arith.constant 0 : i32
    %c0_i32_1 = arith.constant 0 : i32
    return %c0_i32, %c0_i32_0 : i32, i32
  }
  func.func @transform_8(%arg0: i32) -> (i32, i32) {
    %c0_i32 = arith.constant 0 : i32
    %c0_i32_0 = arith.constant 0 : i32
    %c0_i32_1 = arith.constant 0 : i32
    return %c0_i32, %c0_i32_0 : i32, i32
  }
  func.func @transform_9(%arg0: i32) -> (i32, i32) {
    %c0_i32 = arith.constant 0 : i32
    %c0_i32_0 = arith.constant 0 : i32
    return %arg0, %c0_i32 : i32, i32
  }
}

</mosaic_0001>

<llo_original>
// kernel: discriminator_forward.1
$region0: #{discriminator_forward.1}
  #allocation0 [shape = 'u32[]', space=smem, size = 0x4, offset = 0x4, fixed_abs, tag = 'smem constant byte address 0x4 - core index']
  #allocation1 [shape = 'u32[144,128]{1,0:T(1,128)}', space=vmem, size = 0x12000, scoped, tag = 'internal scratch']
  %s0 = inlined_call_operand.vmem [shape: f32[8,784], index: 0, kind: input, shape index: {}]
  %s1 = inlined_call_operand.vmem [shape: bf16[784,1024], index: 1, kind: input, shape index: {}]
  %s2 = inlined_call_operand.vmem [shape: f32[1,1024], index: 2, kind: input, shape index: {}]
  %s3 = inlined_call_operand.vmem [shape: bf16[1024,512], index: 3, kind: input, shape index: {}]
  %s4 = inlined_call_operand.vmem [shape: f32[1,512], index: 4, kind: input, shape index: {}]
  %s5 = inlined_call_operand.vmem [shape: bf16[512,256], index: 5, kind: input, shape index: {}]
  %s6 = inlined_call_operand.vmem [shape: f32[1,256], index: 6, kind: input, shape index: {}]
  %s7 = inlined_call_operand.vmem [shape: bf16[256,128], index: 7, kind: input, shape index: {}]
  %s8 = inlined_call_operand.vmem [shape: f32[1,128], index: 8, kind: input, shape index: {}]
  %s9 = inlined_call_operand.vmem [shape: f32[8,128], index: 9, kind: output, shape index: {}]
  %s10 = sld [smem:[#allocation0]]
  $region46: #{discriminator_forward.1} parent=0
    _
  %s12 = ssub.s32 1, %s10
  %s13 = scalar_select 0, %s12, %s10
  // Predicated region
  $region2: #{discriminator_forward.1} parent=0 // pred_check
    _
  $region3: #{discriminator_forward.1} parent=0 // pred_check_branch
    %15 = sbr.rel (0) target = $region5
  $region4: #{discriminator_forward.1} parent=0 // pred_region
    _
  $region5: #{discriminator_forward.1} parent=0 // pred_fallthru
    _
  // Predicated region
  $region6: #{discriminator_forward.1} parent=0 // pred_check
    _
  $region7: #{discriminator_forward.1} parent=0 // pred_check_branch
    %17 = sbr.rel (0) target = $region9
  $region8: #{discriminator_forward.1} parent=0 // pred_region
    _
  $region9: #{discriminator_forward.1} parent=0 // pred_fallthru
    _
  // Predicated region
  $region10: #{discriminator_forward.1} parent=0 // pred_check
    _
  $region11: #{discriminator_forward.1} parent=0 // pred_check_branch
    %19 = sbr.rel (0) target = $region13
  $region12: #{discriminator_forward.1} parent=0 // pred_region
    _
  $region13: #{discriminator_forward.1} parent=0 // pred_fallthru
    _
  // Predicated region
  $region14: #{discriminator_forward.1} parent=0 // pred_check
    _
  $region15: #{discriminator_forward.1} parent=0 // pred_check_branch
    %21 = sbr.rel (0) target = $region17
  $region16: #{discriminator_forward.1} parent=0 // pred_region
    _
  $region17: #{discriminator_forward.1} parent=0 // pred_fallthru
    _
  // Predicated region
  $region18: #{discriminator_forward.1} parent=0 // pred_check
    _
  $region19: #{discriminator_forward.1} parent=0 // pred_check_branch
    %23 = sbr.rel (0) target = $region21
  $region20: #{discriminator_forward.1} parent=0 // pred_region
    _
  $region21: #{discriminator_forward.1} parent=0 // pred_fallthru
    _
  // Predicated region
  $region22: #{discriminator_forward.1} parent=0 // pred_check
    _
  $region23: #{discriminator_forward.1} parent=0 // pred_check_branch
    %25 = sbr.rel (0) target = $region25
  $region24: #{discriminator_forward.1} parent=0 // pred_region
    _
  $region25: #{discriminator_forward.1} parent=0 // pred_fallthru
    _
  // Predicated region
  $region26: #{discriminator_forward.1} parent=0 // pred_check
    _
  $region27: #{discriminator_forward.1} parent=0 // pred_check_branch
    %27 = sbr.rel (0) target = $region29
  $region28: #{discriminator_forward.1} parent=0 // pred_region
    _
  $region29: #{discriminator_forward.1} parent=0 // pred_fallthru
    _
  // Predicated region
  $region30: #{discriminator_forward.1} parent=0 // pred_check
    _
  $region31: #{discriminator_forward.1} parent=0 // pred_check_branch
    %29 = sbr.rel (0) target = $region33
  $region32: #{discriminator_forward.1} parent=0 // pred_region
    _
  $region33: #{discriminator_forward.1} parent=0 // pred_fallthru
    _
  // Predicated region
  $region34: #{discriminator_forward.1} parent=0 // pred_check
    _
  $region35: #{discriminator_forward.1} parent=0 // pred_check_branch
    %31 = sbr.rel (0) target = $region37
  $region36: #{discriminator_forward.1} parent=0 // pred_region
    _
  $region37: #{discriminator_forward.1} parent=0 // pred_fallthru
    _
  %v33 = vld [vmem:[%s0] sm:$0xff]
  %v34 = vld [vmem:[%s0 + $0x8] sm:$0xff]
  %v35 = vld [vmem:[%s0 + $0x10] sm:$0xff]
  %v36 = vld [vmem:[%s0 + $0x18] sm:$0xff]
  %v37 = vld [vmem:[%s0 + $0x20] sm:$0xff]
  %v38 = vld [vmem:[%s0 + $0x28] sm:$0xff]
  %v39 = vld [vmem:[%s0 + $0x30] sm:$0xff]
  %v40 = vpack.c.bf16 %v33, %v33
  %v41 = vpack.c.bf16 %v34, %v34
  %v42 = vpack.c.bf16 %v35, %v35
  %v43 = vpack.c.bf16 %v36, %v36
  %v44 = vpack.c.bf16 %v37, %v37
  %v45 = vpack.c.bf16 %v38, %v38
  %v46 = vpack.c.bf16 %v39, %v39
  %v47 = vld [vmem:[%s1] sm:$0xff]
  %v48 = vld [vmem:[%s1 + $0x8] sm:$0xff]
  %v49 = vld [vmem:[%s1 + $0x10] sm:$0xff]
  %v50 = vld [vmem:[%s1 + $0x18] sm:$0xff]
  %v51 = vld [vmem:[%s1 + $0x20] sm:$0xff]
  %v52 = vld [vmem:[%s1 + $0x28] sm:$0xff]
  %v53 = vld [vmem:[%s1 + $0x30] sm:$0xff]
  %v54 = vld [vmem:[%s1 + $0x38] sm:$0xff]
  %v55 = vld [vmem:[%s1 + $0x40] sm:$0xff]
  %v56 = vld [vmem:[%s1 + $0x48] sm:$0xff]
  %v57 = vld [vmem:[%s1 + $0x50] sm:$0xff]
  %v58 = vld [vmem:[%s1 + $0x58] sm:$0xff]
  %v59 = vld [vmem:[%s1 + $0x60] sm:$0xff]
  %v60 = vld [vmem:[%s1 + $0x68] sm:$0xff]
  %v61 = vld [vmem:[%s1 + $0x70] sm:$0xff]
  %v62 = vld [vmem:[%s1 + $0x78] sm:$0xff]
  %v63 = vld [vmem:[%s1 + $0x80] sm:$0xff]
  %v64 = vld [vmem:[%s1 + $0x88] sm:$0xff]
  %v65 = vld [vmem:[%s1 + $0x90] sm:$0xff]
  %v66 = vld [vmem:[%s1 + $0x98] sm:$0xff]
  %v67 = vld [vmem:[%s1 + $0xa0] sm:$0xff]
  %v68 = vld [vmem:[%s1 + $0xa8] sm:$0xff]
  %v69 = vld [vmem:[%s1 + $0xb0] sm:$0xff]
  %v70 = vld [vmem:[%s1 + $0xb8] sm:$0xff]
  %v71 = vld [vmem:[%s1 + $0xc0] sm:$0xff]
  %v72 = vld [vmem:[%s1 + $0xc8] sm:$0xff]
  %v73 = vld [vmem:[%s1 + $0xd0] sm:$0xff]
  %v74 = vld [vmem:[%s1 + $0xd8] sm:$0xff]
  %v75 = vld [vmem:[%s1 + $0xe0] sm:$0xff]
  %v76 = vld [vmem:[%s1 + $0xe8] sm:$0xff]
  %v77 = vld [vmem:[%s1 + $0xf0] sm:$0xff]
  %v78 = vld [vmem:[%s1 + $0xf8] sm:$0xff]
  %v79 = vld [vmem:[%s1 + $0x100] sm:$0xff]
  %v80 = vld [vmem:[%s1 + $0x108] sm:$0xff]
  %v81 = vld [vmem:[%s1 + $0x110] sm:$0xff]
  %v82 = vld [vmem:[%s1 + $0x118] sm:$0xff]
  %v83 = vld [vmem:[%s1 + $0x120] sm:$0xff]
  %v84 = vld [vmem:[%s1 + $0x128] sm:$0xff]
  %v85 = vld [vmem:[%s1 + $0x130] sm:$0xff]
  %v86 = vld [vmem:[%s1 + $0x138] sm:$0xff]
  %v87 = vld [vmem:[%s1 + $0x140] sm:$0xff]
  %v88 = vld [vmem:[%s1 + $0x148] sm:$0xff]
  %v89 = vld [vmem:[%s1 + $0x150] sm:$0xff]
  %v90 = vld [vmem:[%s1 + $0x158] sm:$0xff]
  %v91 = vld [vmem:[%s1 + $0x160] sm:$0xff]
  %v92 = vld [vmem:[%s1 + $0x168] sm:$0xff]
  %v93 = vld [vmem:[%s1 + $0x170] sm:$0xff]
  %v94 = vld [vmem:[%s1 + $0x178] sm:$0xff]
  %v95 = vld [vmem:[%s1 + $0x180] sm:$0xff]
  %v96 = vld [vmem:[%s1 + $0x188] sm:$0xff]
  %v97 = vld [vmem:[%s1 + $0x190] sm:$0xff]
  %v98 = vld [vmem:[%s1 + $0x198] sm:$0xff]
  %v99 = vld [vmem:[%s1 + $0x1a0] sm:$0xff]
  %v100 = vld [vmem:[%s1 + $0x1a8] sm:$0xff]
  %v101 = vld [vmem:[%s1 + $0x1b0] sm:$0xff]
  %v102 = vld [vmem:[%s1 + $0x1b8] sm:$0xff]
  %v103 = vld [vmem:[%s1 + $0x1c0] sm:$0xff]
  %v104 = vld [vmem:[%s1 + $0x1c8] sm:$0xff]
  %v105 = vld [vmem:[%s1 + $0x1d0] sm:$0xff]
  %v106 = vld [vmem:[%s1 + $0x1d8] sm:$0xff]
  %v107 = vld [vmem:[%s1 + $0x1e0] sm:$0xff]
  %v108 = vld [vmem:[%s1 + $0x1e8] sm:$0xff]
  %v109 = vld [vmem:[%s1 + $0x1f0] sm:$0xff]
  %v110 = vld [vmem:[%s1 + $0x1f8] sm:$0xff]
  %v111 = vld [vmem:[%s1 + $0x200] sm:$0xff]
  %v112 = vld [vmem:[%s1 + $0x208] sm:$0xff]
  %v113 = vld [vmem:[%s1 + $0x210] sm:$0xff]
  %v114 = vld [vmem:[%s1 + $0x218] sm:$0xff]
  %v115 = vld [vmem:[%s1 + $0x220] sm:$0xff]
  %v116 = vld [vmem:[%s1 + $0x228] sm:$0xff]
  %v117 = vld [vmem:[%s1 + $0x230] sm:$0xff]
  %v118 = vld [vmem:[%s1 + $0x238] sm:$0xff]
  %v119 = vld [vmem:[%s1 + $0x240] sm:$0xff]
  %v120 = vld [vmem:[%s1 + $0x248] sm:$0xff]
  %v121 = vld [vmem:[%s1 + $0x250] sm:$0xff]
  %v122 = vld [vmem:[%s1 + $0x258] sm:$0xff]
  %v123 = vld [vmem:[%s1 + $0x260] sm:$0xff]
  %v124 = vld [vmem:[%s1 + $0x268] sm:$0xff]
  %v125 = vld [vmem:[%s1 + $0x270] sm:$0xff]
  %v126 = vld [vmem:[%s1 + $0x278] sm:$0xff]
  %v127 = vld [vmem:[%s1 + $0x280] sm:$0xff]
  %v128 = vld [vmem:[%s1 + $0x288] sm:$0xff]
  %v129 = vld [vmem:[%s1 + $0x290] sm:$0xff]
  %v130 = vld [vmem:[%s1 + $0x298] sm:$0xff]
  %v131 = vld [vmem:[%s1 + $0x2a0] sm:$0xff]
  %v132 = vld [vmem:[%s1 + $0x2a8] sm:$0xff]
  %v133 = vld [vmem:[%s1 + $0x2b0] sm:$0xff]
  %v134 = vld [vmem:[%s1 + $0x2b8] sm:$0xff]
  %v135 = vld [vmem:[%s1 + $0x2c0] sm:$0xff]
  %v136 = vld [vmem:[%s1 + $0x2c8] sm:$0xff]
  %v137 = vld [vmem:[%s1 + $0x2d0] sm:$0xff]
  %v138 = vld [vmem:[%s1 + $0x2d8] sm:$0xff]
  %v139 = vld [vmem:[%s1 + $0x2e0] sm:$0xff]
  %v140 = vld [vmem:[%s1 + $0x2e8] sm:$0xff]
  %v141 = vld [vmem:[%s1 + $0x2f0] sm:$0xff]
  %v142 = vld [vmem:[%s1 + $0x2f8] sm:$0xff]
  %v143 = vld [vmem:[%s1 + $0x300] sm:$0xff]
  %v144 = vld [vmem:[%s1 + $0x308] sm:$0xff]
  %v145 = vld [vmem:[%s1 + $0x310] sm:$0xff]
  %v146 = vld [vmem:[%s1 + $0x318] sm:$0xff]
  %v147 = vld [vmem:[%s1 + $0x320] sm:$0xff]
  %v148 = vld [vmem:[%s1 + $0x328] sm:$0xff]
  %v149 = vld [vmem:[%s1 + $0x330] sm:$0xff]
  %v150 = vld [vmem:[%s1 + $0x338] sm:$0xff]
  %v151 = vld [vmem:[%s1 + $0x340] sm:$0xff]
  %v152 = vld [vmem:[%s1 + $0x348] sm:$0xff]
  %v153 = vld [vmem:[%s1 + $0x350] sm:$0xff]
  %v154 = vld [vmem:[%s1 + $0x358] sm:$0xff]
  %v155 = vld [vmem:[%s1 + $0x360] sm:$0xff]
  %v156 = vld [vmem:[%s1 + $0x368] sm:$0xff]
  %v157 = vld [vmem:[%s1 + $0x370] sm:$0xff]
  %v158 = vld [vmem:[%s1 + $0x378] sm:$0xff]
  %v159 = vld [vmem:[%s1 + $0x380] sm:$0xff]
  %v160 = vld [vmem:[%s1 + $0x388] sm:$0xff]
  %v161 = vld [vmem:[%s1 + $0x390] sm:$0xff]
  %v162 = vld [vmem:[%s1 + $0x398] sm:$0xff]
  %v163 = vld [vmem:[%s1 + $0x3a0] sm:$0xff]
  %v164 = vld [vmem:[%s1 + $0x3a8] sm:$0xff]
  %v165 = vld [vmem:[%s1 + $0x3b0] sm:$0xff]
  %v166 = vld [vmem:[%s1 + $0x3b8] sm:$0xff]
  %v167 = vld [vmem:[%s1 + $0x3c0] sm:$0xff]
  %v168 = vld [vmem:[%s1 + $0x3c8] sm:$0xff]
  %v169 = vld [vmem:[%s1 + $0x3d0] sm:$0xff]
  %v170 = vld [vmem:[%s1 + $0x3d8] sm:$0xff]
  %v171 = vld [vmem:[%s1 + $0x3e0] sm:$0xff]
  %v172 = vld [vmem:[%s1 + $0x3e8] sm:$0xff]
  %v173 = vld [vmem:[%s1 + $0x3f0] sm:$0xff]
  %v174 = vld [vmem:[%s1 + $0x3f8] sm:$0xff]
  %v175 = vld [vmem:[%s1 + $0x400] sm:$0xff]
  %v176 = vld [vmem:[%s1 + $0x408] sm:$0xff]
  %v177 = vld [vmem:[%s1 + $0x410] sm:$0xff]
  %v178 = vld [vmem:[%s1 + $0x418] sm:$0xff]
  %v179 = vld [vmem:[%s1 + $0x420] sm:$0xff]
  %v180 = vld [vmem:[%s1 + $0x428] sm:$0xff]
  %v181 = vld [vmem:[%s1 + $0x430] sm:$0xff]
  %v182 = vld [vmem:[%s1 + $0x438] sm:$0xff]
  %v183 = vld [vmem:[%s1 + $0x440] sm:$0xff]
  %v184 = vld [vmem:[%s1 + $0x448] sm:$0xff]
  %v185 = vld [vmem:[%s1 + $0x450] sm:$0xff]
  %v186 = vld [vmem:[%s1 + $0x458] sm:$0xff]
  %v187 = vld [vmem:[%s1 + $0x460] sm:$0xff]
  %v188 = vld [vmem:[%s1 + $0x468] sm:$0xff]
  %v189 = vld [vmem:[%s1 + $0x470] sm:$0xff]
  %v190 = vld [vmem:[%s1 + $0x478] sm:$0xff]
  %v191 = vld [vmem:[%s1 + $0x480] sm:$0xff]
  %v192 = vld [vmem:[%s1 + $0x488] sm:$0xff]
  %v193 = vld [vmem:[%s1 + $0x490] sm:$0xff]
  %v194 = vld [vmem:[%s1 + $0x498] sm:$0xff]
  %v195 = vld [vmem:[%s1 + $0x4a0] sm:$0xff]
  %v196 = vld [vmem:[%s1 + $0x4a8] sm:$0xff]
  %v197 = vld [vmem:[%s1 + $0x4b0] sm:$0xff]
  %v198 = vld [vmem:[%s1 + $0x4b8] sm:$0xff]
  %v199 = vld [vmem:[%s1 + $0x4c0] sm:$0xff]
  %v200 = vld [vmem:[%s1 + $0x4c8] sm:$0xff]
  %v201 = vld [vmem:[%s1 + $0x4d0] sm:$0xff]
  %v202 = vld [vmem:[%s1 + $0x4d8] sm:$0xff]
  %v203 = vld [vmem:[%s1 + $0x4e0] sm:$0xff]
  %v204 = vld [vmem:[%s1 + $0x4e8] sm:$0xff]
  %v205 = vld [vmem:[%s1 + $0x4f0] sm:$0xff]
  %v206 = vld [vmem:[%s1 + $0x4f8] sm:$0xff]
  %v207 = vld [vmem:[%s1 + $0x500] sm:$0xff]
  %v208 = vld [vmem:[%s1 + $0x508] sm:$0xff]
  %v209 = vld [vmem:[%s1 + $0x510] sm:$0xff]
  %v210 = vld [vmem:[%s1 + $0x518] sm:$0xff]
  %v211 = vld [vmem:[%s1 + $0x520] sm:$0xff]
  %v212 = vld [vmem:[%s1 + $0x528] sm:$0xff]
  %v213 = vld [vmem:[%s1 + $0x530] sm:$0xff]
  %v214 = vld [vmem:[%s1 + $0x538] sm:$0xff]
  %v215 = vld [vmem:[%s1 + $0x540] sm:$0xff]
  %v216 = vld [vmem:[%s1 + $0x548] sm:$0xff]
  %v217 = vld [vmem:[%s1 + $0x550] sm:$0xff]
  %v218 = vld [vmem:[%s1 + $0x558] sm:$0xff]
  %v219 = vld [vmem:[%s1 + $0x560] sm:$0xff]
  %v220 = vld [vmem:[%s1 + $0x568] sm:$0xff]
  %v221 = vld [vmem:[%s1 + $0x570] sm:$0xff]
  %v222 = vld [vmem:[%s1 + $0x578] sm:$0xff]
  %v223 = vld [vmem:[%s1 + $0x580] sm:$0xff]
  %v224 = vld [vmem:[%s1 + $0x588] sm:$0xff]
  %v225 = vld [vmem:[%s1 + $0x590] sm:$0xff]
  %v226 = vld [vmem:[%s1 + $0x598] sm:$0xff]
  %v227 = vld [vmem:[%s1 + $0x5a0] sm:$0xff]
  %v228 = vld [vmem:[%s1 + $0x5a8] sm:$0xff]
  %v229 = vld [vmem:[%s1 + $0x5b0] sm:$0xff]
  %v230 = vld [vmem:[%s1 + $0x5b8] sm:$0xff]
  %v231 = vld [vmem:[%s1 + $0x5c0] sm:$0xff]
  %v232 = vld [vmem:[%s1 + $0x5c8] sm:$0xff]
  %v233 = vld [vmem:[%s1 + $0x5d0] sm:$0xff]
  %v234 = vld [vmem:[%s1 + $0x5d8] sm:$0xff]
  %v235 = vld [vmem:[%s1 + $0x5e0] sm:$0xff]
  %v236 = vld [vmem:[%s1 + $0x5e8] sm:$0xff]
  %v237 = vld [vmem:[%s1 + $0x5f0] sm:$0xff]
  %v238 = vld [vmem:[%s1 + $0x5f8] sm:$0xff]
  %v239 = vld [vmem:[%s1 + $0x600] sm:$0xff]
  %v240 = vld [vmem:[%s1 + $0x608] sm:$0xff]
  %v241 = vld [vmem:[%s1 + $0x610] sm:$0xff]
  %v242 = vld [vmem:[%s1 + $0x618] sm:$0xff]
  %v243 = vld [vmem:[%s1 + $0x620] sm:$0xff]
  %v244 = vld [vmem:[%s1 + $0x628] sm:$0xff]
  %v245 = vld [vmem:[%s1 + $0x630] sm:$0xff]
  %v246 = vld [vmem:[%s1 + $0x638] sm:$0xff]
  %v247 = vld [vmem:[%s1 + $0x640] sm:$0xff]
  %v248 = vld [vmem:[%s1 + $0x648] sm:$0xff]
  %v249 = vld [vmem:[%s1 + $0x650] sm:$0xff]
  %v250 = vld [vmem:[%s1 + $0x658] sm:$0xff]
  %v251 = vld [vmem:[%s1 + $0x660] sm:$0xff]
  %v252 = vld [vmem:[%s1 + $0x668] sm:$0xff]
  %v253 = vld [vmem:[%s1 + $0x670] sm:$0xff]
  %v254 = vld [vmem:[%s1 + $0x678] sm:$0xff]
  %v255 = vld [vmem:[%s1 + $0x680] sm:$0xff]
  %v256 = vld [vmem:[%s1 + $0x688] sm:$0xff]
  %v257 = vld [vmem:[%s1 + $0x690] sm:$0xff]
  %v258 = vld [vmem:[%s1 + $0x698] sm:$0xff]
  %v259 = vld [vmem:[%s1 + $0x6a0] sm:$0xff]
  %v260 = vld [vmem:[%s1 + $0x6a8] sm:$0xff]
  %v261 = vld [vmem:[%s1 + $0x6b0] sm:$0xff]
  %v262 = vld [vmem:[%s1 + $0x6b8] sm:$0xff]
  %v263 = vld [vmem:[%s1 + $0x6c0] sm:$0xff]
  %v264 = vld [vmem:[%s1 + $0x6c8] sm:$0xff]
  %v265 = vld [vmem:[%s1 + $0x6d0] sm:$0xff]
  %v266 = vld [vmem:[%s1 + $0x6d8] sm:$0xff]
  %v267 = vld [vmem:[%s1 + $0x6e0] sm:$0xff]
  %v268 = vld [vmem:[%s1 + $0x6e8] sm:$0xff]
  %v269 = vld [vmem:[%s1 + $0x6f0] sm:$0xff]
  %v270 = vld [vmem:[%s1 + $0x6f8] sm:$0xff]
  %v271 = vld [vmem:[%s1 + $0x700] sm:$0xff]
  %v272 = vld [vmem:[%s1 + $0x708] sm:$0xff]
  %v273 = vld [vmem:[%s1 + $0x710] sm:$0xff]
  %v274 = vld [vmem:[%s1 + $0x718] sm:$0xff]
  %v275 = vld [vmem:[%s1 + $0x720] sm:$0xff]
  %v276 = vld [vmem:[%s1 + $0x728] sm:$0xff]
  %v277 = vld [vmem:[%s1 + $0x730] sm:$0xff]
  %v278 = vld [vmem:[%s1 + $0x738] sm:$0xff]
  %v279 = vld [vmem:[%s1 + $0x740] sm:$0xff]
  %v280 = vld [vmem:[%s1 + $0x748] sm:$0xff]
  %v281 = vld [vmem:[%s1 + $0x750] sm:$0xff]
  %v282 = vld [vmem:[%s1 + $0x758] sm:$0xff]
  %v283 = vld [vmem:[%s1 + $0x760] sm:$0xff]
  %v284 = vld [vmem:[%s1 + $0x768] sm:$0xff]
  %v285 = vld [vmem:[%s1 + $0x770] sm:$0xff]
  %v286 = vld [vmem:[%s1 + $0x778] sm:$0xff]
  %v287 = vld [vmem:[%s1 + $0x780] sm:$0xff]
  %v288 = vld [vmem:[%s1 + $0x788] sm:$0xff]
  %v289 = vld [vmem:[%s1 + $0x790] sm:$0xff]
  %v290 = vld [vmem:[%s1 + $0x798] sm:$0xff]
  %v291 = vld [vmem:[%s1 + $0x7a0] sm:$0xff]
  %v292 = vld [vmem:[%s1 + $0x7a8] sm:$0xff]
  %v293 = vld [vmem:[%s1 + $0x7b0] sm:$0xff]
  %v294 = vld [vmem:[%s1 + $0x7b8] sm:$0xff]
  %v295 = vld [vmem:[%s1 + $0x7c0] sm:$0xff]
  %v296 = vld [vmem:[%s1 + $0x7c8] sm:$0xff]
  %v297 = vld [vmem:[%s1 + $0x7d0] sm:$0xff]
  %v298 = vld [vmem:[%s1 + $0x7d8] sm:$0xff]
  %v299 = vld [vmem:[%s1 + $0x7e0] sm:$0xff]
  %v300 = vld [vmem:[%s1 + $0x7e8] sm:$0xff]
  %v301 = vld [vmem:[%s1 + $0x7f0] sm:$0xff]
  %v302 = vld [vmem:[%s1 + $0x7f8] sm:$0xff]
  %v303 = vld [vmem:[%s1 + $0x800] sm:$0xff]
  %v304 = vld [vmem:[%s1 + $0x808] sm:$0xff]
  %v305 = vld [vmem:[%s1 + $0x810] sm:$0xff]
  %v306 = vld [vmem:[%s1 + $0x818] sm:$0xff]
  %v307 = vld [vmem:[%s1 + $0x820] sm:$0xff]
  %v308 = vld [vmem:[%s1 + $0x828] sm:$0xff]
  %v309 = vld [vmem:[%s1 + $0x830] sm:$0xff]
  %v310 = vld [vmem:[%s1 + $0x838] sm:$0xff]
  %v311 = vld [vmem:[%s1 + $0x840] sm:$0xff]
  %v312 = vld [vmem:[%s1 + $0x848] sm:$0xff]
  %v313 = vld [vmem:[%s1 + $0x850] sm:$0xff]
  %v314 = vld [vmem:[%s1 + $0x858] sm:$0xff]
  %v315 = vld [vmem:[%s1 + $0x860] sm:$0xff]
  %v316 = vld [vmem:[%s1 + $0x868] sm:$0xff]
  %v317 = vld [vmem:[%s1 + $0x870] sm:$0xff]
  %v318 = vld [vmem:[%s1 + $0x878] sm:$0xff]
  %v319 = vld [vmem:[%s1 + $0x880] sm:$0xff]
  %v320 = vld [vmem:[%s1 + $0x888] sm:$0xff]
  %v321 = vld [vmem:[%s1 + $0x890] sm:$0xff]
  %v322 = vld [vmem:[%s1 + $0x898] sm:$0xff]
  %v323 = vld [vmem:[%s1 + $0x8a0] sm:$0xff]
  %v324 = vld [vmem:[%s1 + $0x8a8] sm:$0xff]
  %v325 = vld [vmem:[%s1 + $0x8b0] sm:$0xff]
  %v326 = vld [vmem:[%s1 + $0x8b8] sm:$0xff]
  %v327 = vld [vmem:[%s1 + $0x8c0] sm:$0xff]
  %v328 = vld [vmem:[%s1 + $0x8c8] sm:$0xff]
  %v329 = vld [vmem:[%s1 + $0x8d0] sm:$0xff]
  %v330 = vld [vmem:[%s1 + $0x8d8] sm:$0xff]
  %v331 = vld [vmem:[%s1 + $0x8e0] sm:$0xff]
  %v332 = vld [vmem:[%s1 + $0x8e8] sm:$0xff]
  %v333 = vld [vmem:[%s1 + $0x8f0] sm:$0xff]
  %v334 = vld [vmem:[%s1 + $0x8f8] sm:$0xff]
  %v335 = vld [vmem:[%s1 + $0x900] sm:$0xff]
  %v336 = vld [vmem:[%s1 + $0x908] sm:$0xff]
  %v337 = vld [vmem:[%s1 + $0x910] sm:$0xff]
  %v338 = vld [vmem:[%s1 + $0x918] sm:$0xff]
  %v339 = vld [vmem:[%s1 + $0x920] sm:$0xff]
  %v340 = vld [vmem:[%s1 + $0x928] sm:$0xff]
  %v341 = vld [vmem:[%s1 + $0x930] sm:$0xff]
  %v342 = vld [vmem:[%s1 + $0x938] sm:$0xff]
  %v343 = vld [vmem:[%s1 + $0x940] sm:$0xff]
  %v344 = vld [vmem:[%s1 + $0x948] sm:$0xff]
  %v345 = vld [vmem:[%s1 + $0x950] sm:$0xff]
  %v346 = vld [vmem:[%s1 + $0x958] sm:$0xff]
  %v347 = vld [vmem:[%s1 + $0x960] sm:$0xff]
  %v348 = vld [vmem:[%s1 + $0x968] sm:$0xff]
  %v349 = vld [vmem:[%s1 + $0x970] sm:$0xff]
  %v350 = vld [vmem:[%s1 + $0x978] sm:$0xff]
  %v351 = vld [vmem:[%s1 + $0x980] sm:$0xff]
  %v352 = vld [vmem:[%s1 + $0x988] sm:$0xff]
  %v353 = vld [vmem:[%s1 + $0x990] sm:$0xff]
  %v354 = vld [vmem:[%s1 + $0x998] sm:$0xff]
  %v355 = vld [vmem:[%s1 + $0x9a0] sm:$0xff]
  %v356 = vld [vmem:[%s1 + $0x9a8] sm:$0xff]
  %v357 = vld [vmem:[%s1 + $0x9b0] sm:$0xff]
  %v358 = vld [vmem:[%s1 + $0x9b8] sm:$0xff]
  %v359 = vld [vmem:[%s1 + $0x9c0] sm:$0xff]
  %v360 = vld [vmem:[%s1 + $0x9c8] sm:$0xff]
  %v361 = vld [vmem:[%s1 + $0x9d0] sm:$0xff]
  %v362 = vld [vmem:[%s1 + $0x9d8] sm:$0xff]
  %v363 = vld [vmem:[%s1 + $0x9e0] sm:$0xff]
  %v364 = vld [vmem:[%s1 + $0x9e8] sm:$0xff]
  %v365 = vld [vmem:[%s1 + $0x9f0] sm:$0xff]
  %v366 = vld [vmem:[%s1 + $0x9f8] sm:$0xff]
  %v367 = vld [vmem:[%s1 + $0xa00] sm:$0xff]
  %v368 = vld [vmem:[%s1 + $0xa08] sm:$0xff]
  %v369 = vld [vmem:[%s1 + $0xa10] sm:$0xff]
  %v370 = vld [vmem:[%s1 + $0xa18] sm:$0xff]
  %v371 = vld [vmem:[%s1 + $0xa20] sm:$0xff]
  %v372 = vld [vmem:[%s1 + $0xa28] sm:$0xff]
  %v373 = vld [vmem:[%s1 + $0xa30] sm:$0xff]
  %v374 = vld [vmem:[%s1 + $0xa38] sm:$0xff]
  %v375 = vld [vmem:[%s1 + $0xa40] sm:$0xff]
  %v376 = vld [vmem:[%s1 + $0xa48] sm:$0xff]
  %v377 = vld [vmem:[%s1 + $0xa50] sm:$0xff]
  %v378 = vld [vmem:[%s1 + $0xa58] sm:$0xff]
  %v379 = vld [vmem:[%s1 + $0xa60] sm:$0xff]
  %v380 = vld [vmem:[%s1 + $0xa68] sm:$0xff]
  %v381 = vld [vmem:[%s1 + $0xa70] sm:$0xff]
  %v382 = vld [vmem:[%s1 + $0xa78] sm:$0xff]
  %v383 = vld [vmem:[%s1 + $0xa80] sm:$0xff]
  %v384 = vld [vmem:[%s1 + $0xa88] sm:$0xff]
  %v385 = vld [vmem:[%s1 + $0xa90] sm:$0xff]
  %v386 = vld [vmem:[%s1 + $0xa98] sm:$0xff]
  %v387 = vld [vmem:[%s1 + $0xaa0] sm:$0xff]
  %v388 = vld [vmem:[%s1 + $0xaa8] sm:$0xff]
  %v389 = vld [vmem:[%s1 + $0xab0] sm:$0xff]
  %v390 = vld [vmem:[%s1 + $0xab8] sm:$0xff]
  %v391 = vld [vmem:[%s1 + $0xac0] sm:$0xff]
  %v392 = vld [vmem:[%s1 + $0xac8] sm:$0xff]
  %v393 = vld [vmem:[%s1 + $0xad0] sm:$0xff]
  %v394 = vld [vmem:[%s1 + $0xad8] sm:$0xff]
  %v395 = vld [vmem:[%s1 + $0xae0] sm:$0xff]
  %v396 = vld [vmem:[%s1 + $0xae8] sm:$0xff]
  %v397 = vld [vmem:[%s1 + $0xaf0] sm:$0xff]
  %v398 = vld [vmem:[%s1 + $0xaf8] sm:$0xff]
  %v399 = vld [vmem:[%s1 + $0xb00] sm:$0xff]
  %v400 = vld [vmem:[%s1 + $0xb08] sm:$0xff]
  %v401 = vld [vmem:[%s1 + $0xb10] sm:$0xff]
  %v402 = vld [vmem:[%s1 + $0xb18] sm:$0xff]
  %v403 = vld [vmem:[%s1 + $0xb20] sm:$0xff]
  %v404 = vld [vmem:[%s1 + $0xb28] sm:$0xff]
  %v405 = vld [vmem:[%s1 + $0xb30] sm:$0xff]
  %v406 = vld [vmem:[%s1 + $0xb38] sm:$0xff]
  %v407 = vld [vmem:[%s1 + $0xb40] sm:$0xff]
  %v408 = vld [vmem:[%s1 + $0xb48] sm:$0xff]
  %v409 = vld [vmem:[%s1 + $0xb50] sm:$0xff]
  %v410 = vld [vmem:[%s1 + $0xb58] sm:$0xff]
  %v411 = vld [vmem:[%s1 + $0xb60] sm:$0xff]
  %v412 = vld [vmem:[%s1 + $0xb68] sm:$0xff]
  %v413 = vld [vmem:[%s1 + $0xb70] sm:$0xff]
  %v414 = vld [vmem:[%s1 + $0xb78] sm:$0xff]
  %v415 = vld [vmem:[%s1 + $0xb80] sm:$0xff]
  %v416 = vld [vmem:[%s1 + $0xb88] sm:$0xff]
  %v417 = vld [vmem:[%s1 + $0xb90] sm:$0xff]
  %v418 = vld [vmem:[%s1 + $0xb98] sm:$0xff]
  %v419 = vld [vmem:[%s1 + $0xba0] sm:$0xff]
  %v420 = vld [vmem:[%s1 + $0xba8] sm:$0xff]
  %v421 = vld [vmem:[%s1 + $0xbb0] sm:$0xff]
  %v422 = vld [vmem:[%s1 + $0xbb8] sm:$0xff]
  %v423 = vld [vmem:[%s1 + $0xbc0] sm:$0xff]
  %v424 = vld [vmem:[%s1 + $0xbc8] sm:$0xff]
  %v425 = vld [vmem:[%s1 + $0xbd0] sm:$0xff]
  %v426 = vld [vmem:[%s1 + $0xbd8] sm:$0xff]
  %v427 = vld [vmem:[%s1 + $0xbe0] sm:$0xff]
  %v428 = vld [vmem:[%s1 + $0xbe8] sm:$0xff]
  %v429 = vld [vmem:[%s1 + $0xbf0] sm:$0xff]
  %v430 = vld [vmem:[%s1 + $0xbf8] sm:$0xff]
  %v431 = vld [vmem:[%s1 + $0xc00] sm:$0xff]
  %v432 = vld [vmem:[%s1 + $0xc08] sm:$0xff]
  %v433 = vld [vmem:[%s1 + $0xc10] sm:$0xff]
  %v434 = vld [vmem:[%s1 + $0xc18] sm:$0xff]
  %v435 = vld [vmem:[%s1 + $0xc20] sm:$0xff]
  %v436 = vld [vmem:[%s1 + $0xc28] sm:$0xff]
  %v437 = vld [vmem:[%s1 + $0xc30] sm:$0xff]
  %v438 = vld [vmem:[%s1 + $0xc38] sm:$0xff]
  %v439 = vld [vmem:[%s2] sm:$0xff]
  %v441 = vlaneseq
  %v442 = vshrl.u32 %v441, 7
  %v443 = vsub.s32 0, %v442
  %v444 = vrot.slane %v439, %v443
  %v445 = vlaneseq
  %v446 = vshrl.u32 %v445, 7
  %v447 = vsub.s32 1, %v446
  %v448 = vrot.slane %v439, %v447
  %v449 = vlaneseq
  %v450 = vshrl.u32 %v449, 7
  %v451 = vsub.s32 2, %v450
  %v452 = vrot.slane %v439, %v451
  %v453 = vlaneseq
  %v454 = vshrl.u32 %v453, 7
  %v455 = vsub.s32 3, %v454
  %v456 = vrot.slane %v439, %v455
  %v457 = vlaneseq
  %v458 = vshrl.u32 %v457, 7
  %v459 = vsub.s32 4, %v458
  %v460 = vrot.slane %v439, %v459
  %v461 = vlaneseq
  %v462 = vshrl.u32 %v461, 7
  %v463 = vsub.s32 5, %v462
  %v464 = vrot.slane %v439, %v463
  %v465 = vlaneseq
  %v466 = vshrl.u32 %v465, 7
  %v467 = vsub.s32 6, %v466
  %v468 = vrot.slane %v439, %v467
  %v469 = vlaneseq
  %v470 = vshrl.u32 %v469, 7
  %v471 = vsub.s32 7, %v470
  %v472 = vrot.slane %v439, %v471
  %v873 = vunpack.c.l.b16 %v47
  %v874 = vunpack.c.h.b16 %v47
  %v875 = vunpack.c.l.b16 %v48
  %v876 = vunpack.c.h.b16 %v48
  %v877 = vunpack.c.l.b16 %v49
  %v878 = vunpack.c.h.b16 %v49
  %v879 = vunpack.c.l.b16 %v50
  %v880 = vunpack.c.h.b16 %v50
  %v881 = vunpack.c.l.b16 %v51
  %v882 = vunpack.c.h.b16 %v51
  %v883 = vunpack.c.l.b16 %v52
  %v884 = vunpack.c.h.b16 %v52
  %v885 = vunpack.c.l.b16 %v53
  %v886 = vunpack.c.h.b16 %v53
  %v887 = vunpack.c.l.b16 %v54
  %v888 = vunpack.c.h.b16 %v54
  %v889 = vunpack.c.l.b16 %v55
  %v890 = vunpack.c.h.b16 %v55
  %v891 = vunpack.c.l.b16 %v56
  %v892 = vunpack.c.h.b16 %v56
  %v893 = vunpack.c.l.b16 %v57
  %v894 = vunpack.c.h.b16 %v57
  %v895 = vunpack.c.l.b16 %v58
  %v896 = vunpack.c.h.b16 %v58
  %v897 = vunpack.c.l.b16 %v59
  %v898 = vunpack.c.h.b16 %v59
  %v899 = vunpack.c.l.b16 %v60
  %v900 = vunpack.c.h.b16 %v60
  %v901 = vunpack.c.l.b16 %v61
  %v902 = vunpack.c.h.b16 %v61
  %v903 = vunpack.c.l.b16 %v62
  %v904 = vunpack.c.h.b16 %v62
  %v905 = vunpack.c.l.b16 %v63
  %v906 = vunpack.c.h.b16 %v63
  %v907 = vunpack.c.l.b16 %v64
  %v908 = vunpack.c.h.b16 %v64
  %v909 = vunpack.c.l.b16 %v65
  %v910 = vunpack.c.h.b16 %v65
  %v911 = vunpack.c.l.b16 %v66
  %v912 = vunpack.c.h.b16 %v66
  %v913 = vunpack.c.l.b16 %v67
  %v914 = vunpack.c.h.b16 %v67
  %v915 = vunpack.c.l.b16 %v68
  %v916 = vunpack.c.h.b16 %v68
  %v917 = vunpack.c.l.b16 %v69
  %v918 = vunpack.c.h.b16 %v69
  %v919 = vunpack.c.l.b16 %v70
  %v920 = vunpack.c.h.b16 %v70
  %v921 = vunpack.c.l.b16 %v71
  %v922 = vunpack.c.h.b16 %v71
  %v923 = vunpack.c.l.b16 %v72
  %v924 = vunpack.c.h.b16 %v72
  %v925 = vunpack.c.l.b16 %v73
  %v926 = vunpack.c.h.b16 %v73
  %v927 = vunpack.c.l.b16 %v74
  %v928 = vunpack.c.h.b16 %v74
  %v929 = vunpack.c.l.b16 %v75
  %v930 = vunpack.c.h.b16 %v75
  %v931 = vunpack.c.l.b16 %v76
  %v932 = vunpack.c.h.b16 %v76
  %v933 = vunpack.c.l.b16 %v77
  %v934 = vunpack.c.h.b16 %v77
  %v935 = vunpack.c.l.b16 %v78
  %v936 = vunpack.c.h.b16 %v78
  %v937 = vunpack.c.l.b16 %v79
  %v938 = vunpack.c.h.b16 %v79
  %v939 = vunpack.c.l.b16 %v80
  %v940 = vunpack.c.h.b16 %v80
  %v941 = vunpack.c.l.b16 %v81
  %v942 = vunpack.c.h.b16 %v81
  %v943 = vunpack.c.l.b16 %v82
  %v944 = vunpack.c.h.b16 %v82
  %v945 = vunpack.c.l.b16 %v83
  %v946 = vunpack.c.h.b16 %v83
  %v947 = vunpack.c.l.b16 %v84
  %v948 = vunpack.c.h.b16 %v84
  %v949 = vunpack.c.l.b16 %v85
  %v950 = vunpack.c.h.b16 %v85
  %v951 = vunpack.c.l.b16 %v86
  %v952 = vunpack.c.h.b16 %v86
  %v953 = vunpack.c.l.b16 %v87
  %v954 = vunpack.c.h.b16 %v87
  %v955 = vunpack.c.l.b16 %v88
  %v956 = vunpack.c.h.b16 %v88
  %v957 = vunpack.c.l.b16 %v89
  %v958 = vunpack.c.h.b16 %v89
  %v959 = vunpack.c.l.b16 %v90
  %v960 = vunpack.c.h.b16 %v90
  %v961 = vunpack.c.l.b16 %v91
  %v962 = vunpack.c.h.b16 %v91
  %v963 = vunpack.c.l.b16 %v92
  %v964 = vunpack.c.h.b16 %v92
  %v965 = vunpack.c.l.b16 %v93
  %v966 = vunpack.c.h.b16 %v93
  %v967 = vunpack.c.l.b16 %v94
  %v968 = vunpack.c.h.b16 %v94
  %v969 = vunpack.c.l.b16 %v95
  %v970 = vunpack.c.h.b16 %v95
  %v971 = vunpack.c.l.b16 %v96
  %v972 = vunpack.c.h.b16 %v96
  %v973 = vunpack.c.l.b16 %v97
  %v974 = vunpack.c.h.b16 %v97
  %v975 = vunpack.c.l.b16 %v98
  %v976 = vunpack.c.h.b16 %v98
  %v977 = vunpack.c.l.b16 %v99
  %v978 = vunpack.c.h.b16 %v99
  %v979 = vunpack.c.l.b16 %v100
  %v980 = vunpack.c.h.b16 %v100
  %v981 = vunpack.c.l.b16 %v101
  %v982 = vunpack.c.h.b16 %v101
  %v983 = vunpack.c.l.b16 %v102
  %v984 = vunpack.c.h.b16 %v102
  %v985 = vunpack.c.l.b16 %v103
  %v986 = vunpack.c.h.b16 %v103
  %v987 = vunpack.c.l.b16 %v104
  %v988 = vunpack.c.h.b16 %v104
  %v989 = vunpack.c.l.b16 %v105
  %v990 = vunpack.c.h.b16 %v105
  %v991 = vunpack.c.l.b16 %v106
  %v992 = vunpack.c.h.b16 %v106
  %v993 = vunpack.c.l.b16 %v107
  %v994 = vunpack.c.h.b16 %v107
  %v995 = vunpack.c.l.b16 %v108
  %v996 = vunpack.c.h.b16 %v108
  %v997 = vunpack.c.l.b16 %v109
  %v998 = vunpack.c.h.b16 %v109
  %v999 = vunpack.c.l.b16 %v110
  %v1000 = vunpack.c.h.b16 %v110
  %v1001 = vunpack.c.l.b16 %v111
  %v1002 = vunpack.c.h.b16 %v111
  %v1003 = vunpack.c.l.b16 %v112
  %v1004 = vunpack.c.h.b16 %v112
  %v1005 = vunpack.c.l.b16 %v113
  %v1006 = vunpack.c.h.b16 %v113
  %v1007 = vunpack.c.l.b16 %v114
  %v1008 = vunpack.c.h.b16 %v114
  %v1009 = vunpack.c.l.b16 %v115
  %v1010 = vunpack.c.h.b16 %v115
  %v1011 = vunpack.c.l.b16 %v116
  %v1012 = vunpack.c.h.b16 %v116
  %v1013 = vunpack.c.l.b16 %v117
  %v1014 = vunpack.c.h.b16 %v117
  %v1015 = vunpack.c.l.b16 %v118
  %v1016 = vunpack.c.h.b16 %v118
  %v1017 = vunpack.c.l.b16 %v119
  %v1018 = vunpack.c.h.b16 %v119
  %v1019 = vunpack.c.l.b16 %v120
  %v1020 = vunpack.c.h.b16 %v120
  %v1021 = vunpack.c.l.b16 %v121
  %v1022 = vunpack.c.h.b16 %v121
  %v1023 = vunpack.c.l.b16 %v122
  %v1024 = vunpack.c.h.b16 %v122
  %v1025 = vunpack.c.l.b16 %v123
  %v1026 = vunpack.c.h.b16 %v123
  %v1027 = vunpack.c.l.b16 %v124
  %v1028 = vunpack.c.h.b16 %v124
  %v1029 = vunpack.c.l.b16 %v125
  %v1030 = vunpack.c.h.b16 %v125
  %v1031 = vunpack.c.l.b16 %v126
  %v1032 = vunpack.c.h.b16 %v126
  %v1033 = vunpack.c.l.b16 %v127
  %v1034 = vunpack.c.h.b16 %v127
  %v1035 = vunpack.c.l.b16 %v128
  %v1036 = vunpack.c.h.b16 %v128
  %v1037 = vunpack.c.l.b16 %v129
  %v1038 = vunpack.c.h.b16 %v129
  %v1039 = vunpack.c.l.b16 %v130
  %v1040 = vunpack.c.h.b16 %v130
  %v1041 = vunpack.c.l.b16 %v131
  %v1042 = vunpack.c.h.b16 %v131
  %v1043 = vunpack.c.l.b16 %v132
  %v1044 = vunpack.c.h.b16 %v132
  %v1045 = vunpack.c.l.b16 %v133
  %v1046 = vunpack.c.h.b16 %v133
  %v1047 = vunpack.c.l.b16 %v134
  %v1048 = vunpack.c.h.b16 %v134
  %v1049 = vunpack.c.l.b16 %v135
  %v1050 = vunpack.c.h.b16 %v135
  %v1051 = vunpack.c.l.b16 %v136
  %v1052 = vunpack.c.h.b16 %v136
  %v1053 = vunpack.c.l.b16 %v137
  %v1054 = vunpack.c.h.b16 %v137
  %v1055 = vunpack.c.l.b16 %v138
  %v1056 = vunpack.c.h.b16 %v138
  %v1057 = vunpack.c.l.b16 %v139
  %v1058 = vunpack.c.h.b16 %v139
  %v1059 = vunpack.c.l.b16 %v140
  %v1060 = vunpack.c.h.b16 %v140
  %v1061 = vunpack.c.l.b16 %v141
  %v1062 = vunpack.c.h.b16 %v141
  %v1063 = vunpack.c.l.b16 %v142
  %v1064 = vunpack.c.h.b16 %v142
  %v1065 = vunpack.c.l.b16 %v143
  %v1066 = vunpack.c.h.b16 %v143
  %v1067 = vunpack.c.l.b16 %v144
  %v1068 = vunpack.c.h.b16 %v144
  %v1069 = vunpack.c.l.b16 %v145
  %v1070 = vunpack.c.h.b16 %v145
  %v1071 = vunpack.c.l.b16 %v146
  %v1072 = vunpack.c.h.b16 %v146
  %v1073 = vunpack.c.l.b16 %v147
  %v1074 = vunpack.c.h.b16 %v147
  %v1075 = vunpack.c.l.b16 %v148
  %v1076 = vunpack.c.h.b16 %v148
  %v1077 = vunpack.c.l.b16 %v149
  %v1078 = vunpack.c.h.b16 %v149
  %v1079 = vunpack.c.l.b16 %v150
  %v1080 = vunpack.c.h.b16 %v150
  %v1081 = vunpack.c.l.b16 %v151
  %v1082 = vunpack.c.h.b16 %v151
  %v1083 = vunpack.c.l.b16 %v152
  %v1084 = vunpack.c.h.b16 %v152
  %v1085 = vunpack.c.l.b16 %v153
  %v1086 = vunpack.c.h.b16 %v153
  %v1087 = vunpack.c.l.b16 %v154
  %v1088 = vunpack.c.h.b16 %v154
  %v1089 = vunpack.c.l.b16 %v155
  %v1090 = vunpack.c.h.b16 %v155
  %v1091 = vunpack.c.l.b16 %v156
  %v1092 = vunpack.c.h.b16 %v156
  %v1093 = vunpack.c.l.b16 %v157
  %v1094 = vunpack.c.h.b16 %v157
  %v1095 = vunpack.c.l.b16 %v158
  %v1096 = vunpack.c.h.b16 %v158
  %v1097 = vunpack.c.l.b16 %v159
  %v1098 = vunpack.c.h.b16 %v159
  %v1099 = vunpack.c.l.b16 %v160
  %v1100 = vunpack.c.h.b16 %v160
  %v1101 = vunpack.c.l.b16 %v161
  %v1102 = vunpack.c.h.b16 %v161
  %v1103 = vunpack.c.l.b16 %v162
  %v1104 = vunpack.c.h.b16 %v162
  %v1105 = vunpack.c.l.b16 %v163
  %v1106 = vunpack.c.h.b16 %v163
  %v1107 = vunpack.c.l.b16 %v164
  %v1108 = vunpack.c.h.b16 %v164
  %v1109 = vunpack.c.l.b16 %v165
  %v1110 = vunpack.c.h.b16 %v165
  %v1111 = vunpack.c.l.b16 %v166
  %v1112 = vunpack.c.h.b16 %v166
  %v1113 = vunpack.c.l.b16 %v167
  %v1114 = vunpack.c.h.b16 %v167
  %v1115 = vunpack.c.l.b16 %v168
  %v1116 = vunpack.c.h.b16 %v168
  %v1117 = vunpack.c.l.b16 %v169
  %v1118 = vunpack.c.h.b16 %v169
  %v1119 = vunpack.c.l.b16 %v170
  %v1120 = vunpack.c.h.b16 %v170
  %v1121 = vunpack.c.l.b16 %v171
  %v1122 = vunpack.c.h.b16 %v171
  %v1123 = vunpack.c.l.b16 %v172
  %v1124 = vunpack.c.h.b16 %v172
  %v1125 = vunpack.c.l.b16 %v173
  %v1126 = vunpack.c.h.b16 %v173
  %v1127 = vunpack.c.l.b16 %v174
  %v1128 = vunpack.c.h.b16 %v174
  %v1129 = vunpack.c.l.b16 %v175
  %v1130 = vunpack.c.h.b16 %v175
  %v1131 = vunpack.c.l.b16 %v176
  %v1132 = vunpack.c.h.b16 %v176
  %v1133 = vunpack.c.l.b16 %v177
  %v1134 = vunpack.c.h.b16 %v177
  %v1135 = vunpack.c.l.b16 %v178
  %v1136 = vunpack.c.h.b16 %v178
  %v1137 = vunpack.c.l.b16 %v179
  %v1138 = vunpack.c.h.b16 %v179
  %v1139 = vunpack.c.l.b16 %v180
  %v1140 = vunpack.c.h.b16 %v180
  %v1141 = vunpack.c.l.b16 %v181
  %v1142 = vunpack.c.h.b16 %v181
  %v1143 = vunpack.c.l.b16 %v182
  %v1144 = vunpack.c.h.b16 %v182
  %v1145 = vunpack.c.l.b16 %v183
  %v1146 = vunpack.c.h.b16 %v183
  %v1147 = vunpack.c.l.b16 %v184
  %v1148 = vunpack.c.h.b16 %v184
  %v1149 = vunpack.c.l.b16 %v185
  %v1150 = vunpack.c.h.b16 %v185
  %v1151 = vunpack.c.l.b16 %v186
  %v1152 = vunpack.c.h.b16 %v186
  %v1153 = vunpack.c.l.b16 %v187
  %v1154 = vunpack.c.h.b16 %v187
  %v1155 = vunpack.c.l.b16 %v188
  %v1156 = vunpack.c.h.b16 %v188
  %v1157 = vunpack.c.l.b16 %v189
  %v1158 = vunpack.c.h.b16 %v189
  %v1159 = vunpack.c.l.b16 %v190
  %v1160 = vunpack.c.h.b16 %v190
  %v1161 = vunpack.c.l.b16 %v191
  %v1162 = vunpack.c.h.b16 %v191
  %v1163 = vunpack.c.l.b16 %v192
  %v1164 = vunpack.c.h.b16 %v192
  %v1165 = vunpack.c.l.b16 %v193
  %v1166 = vunpack.c.h.b16 %v193
  %v1167 = vunpack.c.l.b16 %v194
  %v1168 = vunpack.c.h.b16 %v194
  %v1169 = vunpack.c.l.b16 %v195
  %v1170 = vunpack.c.h.b16 %v195
  %v1171 = vunpack.c.l.b16 %v196
  %v1172 = vunpack.c.h.b16 %v196
  %v1173 = vunpack.c.l.b16 %v197
  %v1174 = vunpack.c.h.b16 %v197
  %v1175 = vunpack.c.l.b16 %v198
  %v1176 = vunpack.c.h.b16 %v198
  %v1177 = vunpack.c.l.b16 %v199
  %v1178 = vunpack.c.h.b16 %v199
  %v1179 = vunpack.c.l.b16 %v200
  %v1180 = vunpack.c.h.b16 %v200
  %v1181 = vunpack.c.l.b16 %v201
  %v1182 = vunpack.c.h.b16 %v201
  %v1183 = vunpack.c.l.b16 %v202
  %v1184 = vunpack.c.h.b16 %v202
  %v1185 = vunpack.c.l.b16 %v203
  %v1186 = vunpack.c.h.b16 %v203
  %v1187 = vunpack.c.l.b16 %v204
  %v1188 = vunpack.c.h.b16 %v204
  %v1189 = vunpack.c.l.b16 %v205
  %v1190 = vunpack.c.h.b16 %v205
  %v1191 = vunpack.c.l.b16 %v206
  %v1192 = vunpack.c.h.b16 %v206
  %v1193 = vunpack.c.l.b16 %v207
  %v1194 = vunpack.c.h.b16 %v207
  %v1195 = vunpack.c.l.b16 %v208
  %v1196 = vunpack.c.h.b16 %v208
  %v1197 = vunpack.c.l.b16 %v209
  %v1198 = vunpack.c.h.b16 %v209
  %v1199 = vunpack.c.l.b16 %v210
  %v1200 = vunpack.c.h.b16 %v210
  %v1201 = vunpack.c.l.b16 %v211
  %v1202 = vunpack.c.h.b16 %v211
  %v1203 = vunpack.c.l.b16 %v212
  %v1204 = vunpack.c.h.b16 %v212
  %v1205 = vunpack.c.l.b16 %v213
  %v1206 = vunpack.c.h.b16 %v213
  %v1207 = vunpack.c.l.b16 %v214
  %v1208 = vunpack.c.h.b16 %v214
  %v1209 = vunpack.c.l.b16 %v215
  %v1210 = vunpack.c.h.b16 %v215
  %v1211 = vunpack.c.l.b16 %v216
  %v1212 = vunpack.c.h.b16 %v216
  %v1213 = vunpack.c.l.b16 %v217
  %v1214 = vunpack.c.h.b16 %v217
  %v1215 = vunpack.c.l.b16 %v218
  %v1216 = vunpack.c.h.b16 %v218
  %v1217 = vunpack.c.l.b16 %v219
  %v1218 = vunpack.c.h.b16 %v219
  %v1219 = vunpack.c.l.b16 %v220
  %v1220 = vunpack.c.h.b16 %v220
  %v1221 = vunpack.c.l.b16 %v221
  %v1222 = vunpack.c.h.b16 %v221
  %v1223 = vunpack.c.l.b16 %v222
  %v1224 = vunpack.c.h.b16 %v222
  %v1225 = vunpack.c.l.b16 %v223
  %v1226 = vunpack.c.h.b16 %v223
  %v1227 = vunpack.c.l.b16 %v224
  %v1228 = vunpack.c.h.b16 %v224
  %v1229 = vunpack.c.l.b16 %v225
  %v1230 = vunpack.c.h.b16 %v225
  %v1231 = vunpack.c.l.b16 %v226
  %v1232 = vunpack.c.h.b16 %v226
  %v1233 = vunpack.c.l.b16 %v227
  %v1234 = vunpack.c.h.b16 %v227
  %v1235 = vunpack.c.l.b16 %v228
  %v1236 = vunpack.c.h.b16 %v228
  %v1237 = vunpack.c.l.b16 %v229
  %v1238 = vunpack.c.h.b16 %v229
  %v1239 = vunpack.c.l.b16 %v230
  %v1240 = vunpack.c.h.b16 %v230
  %v1241 = vunpack.c.l.b16 %v231
  %v1242 = vunpack.c.h.b16 %v231
  %v1243 = vunpack.c.l.b16 %v232
  %v1244 = vunpack.c.h.b16 %v232
  %v1245 = vunpack.c.l.b16 %v233
  %v1246 = vunpack.c.h.b16 %v233
  %v1247 = vunpack.c.l.b16 %v234
  %v1248 = vunpack.c.h.b16 %v234
  %v1249 = vunpack.c.l.b16 %v235
  %v1250 = vunpack.c.h.b16 %v235
  %v1251 = vunpack.c.l.b16 %v236
  %v1252 = vunpack.c.h.b16 %v236
  %v1253 = vunpack.c.l.b16 %v237
  %v1254 = vunpack.c.h.b16 %v237
  %v1255 = vunpack.c.l.b16 %v238
  %v1256 = vunpack.c.h.b16 %v238
  %v1257 = vunpack.c.l.b16 %v239
  %v1258 = vunpack.c.h.b16 %v239
  %v1259 = vunpack.c.l.b16 %v240
  %v1260 = vunpack.c.h.b16 %v240
  %v1261 = vunpack.c.l.b16 %v241
  %v1262 = vunpack.c.h.b16 %v241
  %v1263 = vunpack.c.l.b16 %v242
  %v1264 = vunpack.c.h.b16 %v242
  %v1265 = vunpack.c.l.b16 %v243
  %v1266 = vunpack.c.h.b16 %v243
  %v1267 = vunpack.c.l.b16 %v244
  %v1268 = vunpack.c.h.b16 %v244
  %v1269 = vunpack.c.l.b16 %v245
  %v1270 = vunpack.c.h.b16 %v245
  %v1271 = vunpack.c.l.b16 %v246
  %v1272 = vunpack.c.h.b16 %v246
  %v1273 = vunpack.c.l.b16 %v247
  %v1274 = vunpack.c.h.b16 %v247
  %v1275 = vunpack.c.l.b16 %v248
  %v1276 = vunpack.c.h.b16 %v248
  %v1277 = vunpack.c.l.b16 %v249
  %v1278 = vunpack.c.h.b16 %v249
  %v1279 = vunpack.c.l.b16 %v250
  %v1280 = vunpack.c.h.b16 %v250
  %v1281 = vunpack.c.l.b16 %v251
  %v1282 = vunpack.c.h.b16 %v251
  %v1283 = vunpack.c.l.b16 %v252
  %v1284 = vunpack.c.h.b16 %v252
  %v1285 = vunpack.c.l.b16 %v253
  %v1286 = vunpack.c.h.b16 %v253
  %v1287 = vunpack.c.l.b16 %v254
  %v1288 = vunpack.c.h.b16 %v254
  %v1289 = vunpack.c.l.b16 %v255
  %v1290 = vunpack.c.h.b16 %v255
  %v1291 = vunpack.c.l.b16 %v256
  %v1292 = vunpack.c.h.b16 %v256
  %v1293 = vunpack.c.l.b16 %v257
  %v1294 = vunpack.c.h.b16 %v257
  %v1295 = vunpack.c.l.b16 %v258
  %v1296 = vunpack.c.h.b16 %v258
  %v1297 = vunpack.c.l.b16 %v259
  %v1298 = vunpack.c.h.b16 %v259
  %v1299 = vunpack.c.l.b16 %v260
  %v1300 = vunpack.c.h.b16 %v260
  %v1301 = vunpack.c.l.b16 %v261
  %v1302 = vunpack.c.h.b16 %v261
  %v1303 = vunpack.c.l.b16 %v262
  %v1304 = vunpack.c.h.b16 %v262
  %v1305 = vunpack.c.l.b16 %v263
  %v1306 = vunpack.c.h.b16 %v263
  %v1307 = vunpack.c.l.b16 %v264
  %v1308 = vunpack.c.h.b16 %v264
  %v1309 = vunpack.c.l.b16 %v265
  %v1310 = vunpack.c.h.b16 %v265
  %v1311 = vunpack.c.l.b16 %v266
  %v1312 = vunpack.c.h.b16 %v266
  %v1313 = vunpack.c.l.b16 %v267
  %v1314 = vunpack.c.h.b16 %v267
  %v1315 = vunpack.c.l.b16 %v268
  %v1316 = vunpack.c.h.b16 %v268
  %v1317 = vunpack.c.l.b16 %v269
  %v1318 = vunpack.c.h.b16 %v269
  %v1319 = vunpack.c.l.b16 %v270
  %v1320 = vunpack.c.h.b16 %v270
  %v1321 = vunpack.c.l.b16 %v271
  %v1322 = vunpack.c.h.b16 %v271
  %v1323 = vunpack.c.l.b16 %v272
  %v1324 = vunpack.c.h.b16 %v272
  %v1325 = vunpack.c.l.b16 %v273
  %v1326 = vunpack.c.h.b16 %v273
  %v1327 = vunpack.c.l.b16 %v274
  %v1328 = vunpack.c.h.b16 %v274
  %v1329 = vunpack.c.l.b16 %v275
  %v1330 = vunpack.c.h.b16 %v275
  %v1331 = vunpack.c.l.b16 %v276
  %v1332 = vunpack.c.h.b16 %v276
  %v1333 = vunpack.c.l.b16 %v277
  %v1334 = vunpack.c.h.b16 %v277
  %v1335 = vunpack.c.l.b16 %v278
  %v1336 = vunpack.c.h.b16 %v278
  %v1337 = vunpack.c.l.b16 %v279
  %v1338 = vunpack.c.h.b16 %v279
  %v1339 = vunpack.c.l.b16 %v280
  %v1340 = vunpack.c.h.b16 %v280
  %v1341 = vunpack.c.l.b16 %v281
  %v1342 = vunpack.c.h.b16 %v281
  %v1343 = vunpack.c.l.b16 %v282
  %v1344 = vunpack.c.h.b16 %v282
  %v1345 = vunpack.c.l.b16 %v283
  %v1346 = vunpack.c.h.b16 %v283
  %v1347 = vunpack.c.l.b16 %v284
  %v1348 = vunpack.c.h.b16 %v284
  %v1349 = vunpack.c.l.b16 %v285
  %v1350 = vunpack.c.h.b16 %v285
  %v1351 = vunpack.c.l.b16 %v286
  %v1352 = vunpack.c.h.b16 %v286
  %v1353 = vunpack.c.l.b16 %v287
  %v1354 = vunpack.c.h.b16 %v287
  %v1355 = vunpack.c.l.b16 %v288
  %v1356 = vunpack.c.h.b16 %v288
  %v1357 = vunpack.c.l.b16 %v289
  %v1358 = vunpack.c.h.b16 %v289
  %v1359 = vunpack.c.l.b16 %v290
  %v1360 = vunpack.c.h.b16 %v290
  %v1361 = vunpack.c.l.b16 %v291
  %v1362 = vunpack.c.h.b16 %v291
  %v1363 = vunpack.c.l.b16 %v292
  %v1364 = vunpack.c.h.b16 %v292
  %v1365 = vunpack.c.l.b16 %v293
  %v1366 = vunpack.c.h.b16 %v293
  %v1367 = vunpack.c.l.b16 %v294
  %v1368 = vunpack.c.h.b16 %v294
  %v1369 = vunpack.c.l.b16 %v295
  %v1370 = vunpack.c.h.b16 %v295
  %v1371 = vunpack.c.l.b16 %v296
  %v1372 = vunpack.c.h.b16 %v296
  %v1373 = vunpack.c.l.b16 %v297
  %v1374 = vunpack.c.h.b16 %v297
  %v1375 = vunpack.c.l.b16 %v298
  %v1376 = vunpack.c.h.b16 %v298
  %v1377 = vunpack.c.l.b16 %v299
  %v1378 = vunpack.c.h.b16 %v299
  %v1379 = vunpack.c.l.b16 %v300
  %v1380 = vunpack.c.h.b16 %v300
  %v1381 = vunpack.c.l.b16 %v301
  %v1382 = vunpack.c.h.b16 %v301
  %v1383 = vunpack.c.l.b16 %v302
  %v1384 = vunpack.c.h.b16 %v302
  %v1385 = vunpack.c.l.b16 %v303
  %v1386 = vunpack.c.h.b16 %v303
  %v1387 = vunpack.c.l.b16 %v304
  %v1388 = vunpack.c.h.b16 %v304
  %v1389 = vunpack.c.l.b16 %v305
  %v1390 = vunpack.c.h.b16 %v305
  %v1391 = vunpack.c.l.b16 %v306
  %v1392 = vunpack.c.h.b16 %v306
  %v1393 = vunpack.c.l.b16 %v307
  %v1394 = vunpack.c.h.b16 %v307
  %v1395 = vunpack.c.l.b16 %v308
  %v1396 = vunpack.c.h.b16 %v308
  %v1397 = vunpack.c.l.b16 %v309
  %v1398 = vunpack.c.h.b16 %v309
  %v1399 = vunpack.c.l.b16 %v310
  %v1400 = vunpack.c.h.b16 %v310
  %v1401 = vunpack.c.l.b16 %v311
  %v1402 = vunpack.c.h.b16 %v311
  %v1403 = vunpack.c.l.b16 %v312
  %v1404 = vunpack.c.h.b16 %v312
  %v1405 = vunpack.c.l.b16 %v313
  %v1406 = vunpack.c.h.b16 %v313
  %v1407 = vunpack.c.l.b16 %v314
  %v1408 = vunpack.c.h.b16 %v314
  %v1409 = vunpack.c.l.b16 %v315
  %v1410 = vunpack.c.h.b16 %v315
  %v1411 = vunpack.c.l.b16 %v316
  %v1412 = vunpack.c.h.b16 %v316
  %v1413 = vunpack.c.l.b16 %v317
  %v1414 = vunpack.c.h.b16 %v317
  %v1415 = vunpack.c.l.b16 %v318
  %v1416 = vunpack.c.h.b16 %v318
  %v1417 = vunpack.c.l.b16 %v319
  %v1418 = vunpack.c.h.b16 %v319
  %v1419 = vunpack.c.l.b16 %v320
  %v1420 = vunpack.c.h.b16 %v320
  %v1421 = vunpack.c.l.b16 %v321
  %v1422 = vunpack.c.h.b16 %v321
  %v1423 = vunpack.c.l.b16 %v322
  %v1424 = vunpack.c.h.b16 %v322
  %v1425 = vunpack.c.l.b16 %v323
  %v1426 = vunpack.c.h.b16 %v323
  %v1427 = vunpack.c.l.b16 %v324
  %v1428 = vunpack.c.h.b16 %v324
  %v1429 = vunpack.c.l.b16 %v325
  %v1430 = vunpack.c.h.b16 %v325
  %v1431 = vunpack.c.l.b16 %v326
  %v1432 = vunpack.c.h.b16 %v326
  %v1433 = vunpack.c.l.b16 %v327
  %v1434 = vunpack.c.h.b16 %v327
  %v1435 = vunpack.c.l.b16 %v328
  %v1436 = vunpack.c.h.b16 %v328
  %v1437 = vunpack.c.l.b16 %v329
  %v1438 = vunpack.c.h.b16 %v329
  %v1439 = vunpack.c.l.b16 %v330
  %v1440 = vunpack.c.h.b16 %v330
  %v1441 = vunpack.c.l.b16 %v331
  %v1442 = vunpack.c.h.b16 %v331
  %v1443 = vunpack.c.l.b16 %v332
  %v1444 = vunpack.c.h.b16 %v332
  %v1445 = vunpack.c.l.b16 %v333
  %v1446 = vunpack.c.h.b16 %v333
  %v1447 = vunpack.c.l.b16 %v334
  %v1448 = vunpack.c.h.b16 %v334
  %v1449 = vunpack.c.l.b16 %v335
  %v1450 = vunpack.c.h.b16 %v335
  %v1451 = vunpack.c.l.b16 %v336
  %v1452 = vunpack.c.h.b16 %v336
  %v1453 = vunpack.c.l.b16 %v337
  %v1454 = vunpack.c.h.b16 %v337
  %v1455 = vunpack.c.l.b16 %v338
  %v1456 = vunpack.c.h.b16 %v338
  %v1457 = vunpack.c.l.b16 %v339
  %v1458 = vunpack.c.h.b16 %v339
  %v1459 = vunpack.c.l.b16 %v340
  %v1460 = vunpack.c.h.b16 %v340
  %v1461 = vunpack.c.l.b16 %v341
  %v1462 = vunpack.c.h.b16 %v341
  %v1463 = vunpack.c.l.b16 %v342
  %v1464 = vunpack.c.h.b16 %v342
  %v1465 = vunpack.c.l.b16 %v343
  %v1466 = vunpack.c.h.b16 %v343
  %v1467 = vunpack.c.l.b16 %v344
  %v1468 = vunpack.c.h.b16 %v344
  %v1469 = vunpack.c.l.b16 %v345
  %v1470 = vunpack.c.h.b16 %v345
  %v1471 = vunpack.c.l.b16 %v346
  %v1472 = vunpack.c.h.b16 %v346
  %v1473 = vunpack.c.l.b16 %v347
  %v1474 = vunpack.c.h.b16 %v347
  %v1475 = vunpack.c.l.b16 %v348
  %v1476 = vunpack.c.h.b16 %v348
  %v1477 = vunpack.c.l.b16 %v349
  %v1478 = vunpack.c.h.b16 %v349
  %v1479 = vunpack.c.l.b16 %v350
  %v1480 = vunpack.c.h.b16 %v350
  %v1481 = vunpack.c.l.b16 %v351
  %v1482 = vunpack.c.h.b16 %v351
  %v1483 = vunpack.c.l.b16 %v352
  %v1484 = vunpack.c.h.b16 %v352
  %v1485 = vunpack.c.l.b16 %v353
  %v1486 = vunpack.c.h.b16 %v353
  %v1487 = vunpack.c.l.b16 %v354
  %v1488 = vunpack.c.h.b16 %v354
  %v1489 = vunpack.c.l.b16 %v355
  %v1490 = vunpack.c.h.b16 %v355
  %v1491 = vunpack.c.l.b16 %v356
  %v1492 = vunpack.c.h.b16 %v356
  %v1493 = vunpack.c.l.b16 %v357
  %v1494 = vunpack.c.h.b16 %v357
  %v1495 = vunpack.c.l.b16 %v358
  %v1496 = vunpack.c.h.b16 %v358
  %v1497 = vunpack.c.l.b16 %v359
  %v1498 = vunpack.c.h.b16 %v359
  %v1499 = vunpack.c.l.b16 %v360
  %v1500 = vunpack.c.h.b16 %v360
  %v1501 = vunpack.c.l.b16 %v361
  %v1502 = vunpack.c.h.b16 %v361
  %v1503 = vunpack.c.l.b16 %v362
  %v1504 = vunpack.c.h.b16 %v362
  %v1505 = vunpack.c.l.b16 %v363
  %v1506 = vunpack.c.h.b16 %v363
  %v1507 = vunpack.c.l.b16 %v364
  %v1508 = vunpack.c.h.b16 %v364
  %v1509 = vunpack.c.l.b16 %v365
  %v1510 = vunpack.c.h.b16 %v365
  %v1511 = vunpack.c.l.b16 %v366
  %v1512 = vunpack.c.h.b16 %v366
  %v1513 = vunpack.c.l.b16 %v367
  %v1514 = vunpack.c.h.b16 %v367
  %v1515 = vunpack.c.l.b16 %v368
  %v1516 = vunpack.c.h.b16 %v368
  %v1517 = vunpack.c.l.b16 %v369
  %v1518 = vunpack.c.h.b16 %v369
  %v1519 = vunpack.c.l.b16 %v370
  %v1520 = vunpack.c.h.b16 %v370
  %v1521 = vunpack.c.l.b16 %v371
  %v1522 = vunpack.c.h.b16 %v371
  %v1523 = vunpack.c.l.b16 %v372
  %v1524 = vunpack.c.h.b16 %v372
  %v1525 = vunpack.c.l.b16 %v373
  %v1526 = vunpack.c.h.b16 %v373
  %v1527 = vunpack.c.l.b16 %v374
  %v1528 = vunpack.c.h.b16 %v374
  %v1529 = vunpack.c.l.b16 %v375
  %v1530 = vunpack.c.h.b16 %v375
  %v1531 = vunpack.c.l.b16 %v376
  %v1532 = vunpack.c.h.b16 %v376
  %v1533 = vunpack.c.l.b16 %v377
  %v1534 = vunpack.c.h.b16 %v377
  %v1535 = vunpack.c.l.b16 %v378
  %v1536 = vunpack.c.h.b16 %v378
  %v1537 = vunpack.c.l.b16 %v379
  %v1538 = vunpack.c.h.b16 %v379
  %v1539 = vunpack.c.l.b16 %v380
  %v1540 = vunpack.c.h.b16 %v380
  %v1541 = vunpack.c.l.b16 %v381
  %v1542 = vunpack.c.h.b16 %v381
  %v1543 = vunpack.c.l.b16 %v382
  %v1544 = vunpack.c.h.b16 %v382
  %v1545 = vunpack.c.l.b16 %v383
  %v1546 = vunpack.c.h.b16 %v383
  %v1547 = vunpack.c.l.b16 %v384
  %v1548 = vunpack.c.h.b16 %v384
  %v1549 = vunpack.c.l.b16 %v385
  %v1550 = vunpack.c.h.b16 %v385
  %v1551 = vunpack.c.l.b16 %v386
  %v1552 = vunpack.c.h.b16 %v386
  %v1553 = vunpack.c.l.b16 %v387
  %v1554 = vunpack.c.h.b16 %v387
  %v1555 = vunpack.c.l.b16 %v388
  %v1556 = vunpack.c.h.b16 %v388
  %v1557 = vunpack.c.l.b16 %v389
  %v1558 = vunpack.c.h.b16 %v389
  %v1559 = vunpack.c.l.b16 %v390
  %v1560 = vunpack.c.h.b16 %v390
  %v1561 = vunpack.c.l.b16 %v391
  %v1562 = vunpack.c.h.b16 %v391
  %v1563 = vunpack.c.l.b16 %v392
  %v1564 = vunpack.c.h.b16 %v392
  %v1565 = vunpack.c.l.b16 %v393
  %v1566 = vunpack.c.h.b16 %v393
  %v1567 = vunpack.c.l.b16 %v394
  %v1568 = vunpack.c.h.b16 %v394
  %v1569 = vunpack.c.l.b16 %v395
  %v1570 = vunpack.c.h.b16 %v395
  %v1571 = vunpack.c.l.b16 %v396
  %v1572 = vunpack.c.h.b16 %v396
  %v1573 = vunpack.c.l.b16 %v397
  %v1574 = vunpack.c.h.b16 %v397
  %v1575 = vunpack.c.l.b16 %v398
  %v1576 = vunpack.c.h.b16 %v398
  %v1577 = vunpack.c.l.b16 %v399
  %v1578 = vunpack.c.h.b16 %v399
  %v1579 = vunpack.c.l.b16 %v400
  %v1580 = vunpack.c.h.b16 %v400
  %v1581 = vunpack.c.l.b16 %v401
  %v1582 = vunpack.c.h.b16 %v401
  %v1583 = vunpack.c.l.b16 %v402
  %v1584 = vunpack.c.h.b16 %v402
  %v1585 = vunpack.c.l.b16 %v403
  %v1586 = vunpack.c.h.b16 %v403
  %v1587 = vunpack.c.l.b16 %v404
  %v1588 = vunpack.c.h.b16 %v404
  %v1589 = vunpack.c.l.b16 %v405
  %v1590 = vunpack.c.h.b16 %v405
  %v1591 = vunpack.c.l.b16 %v406
  %v1592 = vunpack.c.h.b16 %v406
  %v1593 = vunpack.c.l.b16 %v407
  %v1594 = vunpack.c.h.b16 %v407
  %v1595 = vunpack.c.l.b16 %v408
  %v1596 = vunpack.c.h.b16 %v408
  %v1597 = vunpack.c.l.b16 %v409
  %v1598 = vunpack.c.h.b16 %v409
  %v1599 = vunpack.c.l.b16 %v410
  %v1600 = vunpack.c.h.b16 %v410
  %v1601 = vunpack.c.l.b16 %v411
  %v1602 = vunpack.c.h.b16 %v411
  %v1603 = vunpack.c.l.b16 %v412
  %v1604 = vunpack.c.h.b16 %v412
  %v1605 = vunpack.c.l.b16 %v413
  %v1606 = vunpack.c.h.b16 %v413
  %v1607 = vunpack.c.l.b16 %v414
  %v1608 = vunpack.c.h.b16 %v414
  %v1609 = vunpack.c.l.b16 %v415
  %v1610 = vunpack.c.h.b16 %v415
  %v1611 = vunpack.c.l.b16 %v416
  %v1612 = vunpack.c.h.b16 %v416
  %v1613 = vunpack.c.l.b16 %v417
  %v1614 = vunpack.c.h.b16 %v417
  %v1615 = vunpack.c.l.b16 %v418
  %v1616 = vunpack.c.h.b16 %v418
  %v1617 = vunpack.c.l.b16 %v419
  %v1618 = vunpack.c.h.b16 %v419
  %v1619 = vunpack.c.l.b16 %v420
  %v1620 = vunpack.c.h.b16 %v420
  %v1621 = vunpack.c.l.b16 %v421
  %v1622 = vunpack.c.h.b16 %v421
  %v1623 = vunpack.c.l.b16 %v422
  %v1624 = vunpack.c.h.b16 %v422
  %v1625 = vunpack.c.l.b16 %v423
  %v1626 = vunpack.c.h.b16 %v423
  %v1627 = vunpack.c.l.b16 %v424
  %v1628 = vunpack.c.h.b16 %v424
  %v1629 = vunpack.c.l.b16 %v425
  %v1630 = vunpack.c.h.b16 %v425
  %v1631 = vunpack.c.l.b16 %v426
  %v1632 = vunpack.c.h.b16 %v426
  %v1633 = vunpack.c.l.b16 %v427
  %v1634 = vunpack.c.h.b16 %v427
  %v1635 = vunpack.c.l.b16 %v428
  %v1636 = vunpack.c.h.b16 %v428
  %v1637 = vunpack.c.l.b16 %v429
  %v1638 = vunpack.c.h.b16 %v429
  %v1639 = vunpack.c.l.b16 %v430
  %v1640 = vunpack.c.h.b16 %v430
  %v1641 = vunpack.c.l.b16 %v431
  %v1642 = vunpack.c.h.b16 %v431
  %v1643 = vunpack.c.l.b16 %v432
  %v1644 = vunpack.c.h.b16 %v432
  %v1645 = vunpack.c.l.b16 %v433
  %v1646 = vunpack.c.h.b16 %v433
  %v1647 = vunpack.c.l.b16 %v434
  %v1648 = vunpack.c.h.b16 %v434
  %v1649 = vunpack.c.l.b16 %v435
  %v1650 = vunpack.c.h.b16 %v435
  %v1651 = vunpack.c.l.b16 %v436
  %v1652 = vunpack.c.h.b16 %v436
  %v1653 = vunpack.c.l.b16 %v437
  %v1654 = vunpack.c.h.b16 %v437
  %v1655 = vunpack.c.l.b16 %v438
  %v1656 = vunpack.c.h.b16 %v438
  %v1657 = vpack.c.b16 %v881, %v873
  %v1658 = vpack.c.b16 %v882, %v874
  %v1659 = vpack.c.b16 %v883, %v875
  %v1660 = vpack.c.b16 %v884, %v876
  %v1661 = vpack.c.b16 %v885, %v877
  %v1662 = vpack.c.b16 %v886, %v878
  %v1663 = vpack.c.b16 %v887, %v879
  %v1664 = vpack.c.b16 %v888, %v880
  %v1665 = vpack.c.b16 %v897, %v889
  %v1666 = vpack.c.b16 %v898, %v890
  %v1667 = vpack.c.b16 %v899, %v891
  %v1668 = vpack.c.b16 %v900, %v892
  %v1669 = vpack.c.b16 %v901, %v893
  %v1670 = vpack.c.b16 %v902, %v894
  %v1671 = vpack.c.b16 %v903, %v895
  %v1672 = vpack.c.b16 %v904, %v896
  %v1673 = vpack.c.b16 %v913, %v905
  %v1674 = vpack.c.b16 %v914, %v906
  %v1675 = vpack.c.b16 %v915, %v907
  %v1676 = vpack.c.b16 %v916, %v908
  %v1677 = vpack.c.b16 %v917, %v909
  %v1678 = vpack.c.b16 %v918, %v910
  %v1679 = vpack.c.b16 %v919, %v911
  %v1680 = vpack.c.b16 %v920, %v912
  %v1681 = vpack.c.b16 %v929, %v921
  %v1682 = vpack.c.b16 %v930, %v922
  %v1683 = vpack.c.b16 %v931, %v923
  %v1684 = vpack.c.b16 %v932, %v924
  %v1685 = vpack.c.b16 %v933, %v925
  %v1686 = vpack.c.b16 %v934, %v926
  %v1687 = vpack.c.b16 %v935, %v927
  %v1688 = vpack.c.b16 %v936, %v928
  %v1689 = vpack.c.b16 %v945, %v937
  %v1690 = vpack.c.b16 %v946, %v938
  %v1691 = vpack.c.b16 %v947, %v939
  %v1692 = vpack.c.b16 %v948, %v940
  %v1693 = vpack.c.b16 %v949, %v941
  %v1694 = vpack.c.b16 %v950, %v942
  %v1695 = vpack.c.b16 %v951, %v943
  %v1696 = vpack.c.b16 %v952, %v944
  %v1697 = vpack.c.b16 %v961, %v953
  %v1698 = vpack.c.b16 %v962, %v954
  %v1699 = vpack.c.b16 %v963, %v955
  %v1700 = vpack.c.b16 %v964, %v956
  %v1701 = vpack.c.b16 %v965, %v957
  %v1702 = vpack.c.b16 %v966, %v958
  %v1703 = vpack.c.b16 %v967, %v959
  %v1704 = vpack.c.b16 %v968, %v960
  %v1705 = vpack.c.b16 %v977, %v969
  %v1706 = vpack.c.b16 %v978, %v970
  %v1707 = vpack.c.b16 %v979, %v971
  %v1708 = vpack.c.b16 %v980, %v972
  %v1709 = vpack.c.b16 %v981, %v973
  %v1710 = vpack.c.b16 %v982, %v974
  %v1711 = vpack.c.b16 %v983, %v975
  %v1712 = vpack.c.b16 %v984, %v976
  %v1713 = vpack.c.b16 %v993, %v985
  %v1714 = vpack.c.b16 %v994, %v986
  %v1715 = vpack.c.b16 %v995, %v987
  %v1716 = vpack.c.b16 %v996, %v988
  %v1717 = vpack.c.b16 %v997, %v989
  %v1718 = vpack.c.b16 %v998, %v990
  %v1719 = vpack.c.b16 %v999, %v991
  %v1720 = vpack.c.b16 %v1000, %v992
  %v1721 = vpack.c.b16 %v1009, %v1001
  %v1722 = vpack.c.b16 %v1010, %v1002
  %v1723 = vpack.c.b16 %v1011, %v1003
  %v1724 = vpack.c.b16 %v1012, %v1004
  %v1725 = vpack.c.b16 %v1013, %v1005
  %v1726 = vpack.c.b16 %v1014, %v1006
  %v1727 = vpack.c.b16 %v1015, %v1007
  %v1728 = vpack.c.b16 %v1016, %v1008
  %v1729 = vpack.c.b16 %v1025, %v1017
  %v1730 = vpack.c.b16 %v1026, %v1018
  %v1731 = vpack.c.b16 %v1027, %v1019
  %v1732 = vpack.c.b16 %v1028, %v1020
  %v1733 = vpack.c.b16 %v1029, %v1021
  %v1734 = vpack.c.b16 %v1030, %v1022
  %v1735 = vpack.c.b16 %v1031, %v1023
  %v1736 = vpack.c.b16 %v1032, %v1024
  %v1737 = vpack.c.b16 %v1041, %v1033
  %v1738 = vpack.c.b16 %v1042, %v1034
  %v1739 = vpack.c.b16 %v1043, %v1035
  %v1740 = vpack.c.b16 %v1044, %v1036
  %v1741 = vpack.c.b16 %v1045, %v1037
  %v1742 = vpack.c.b16 %v1046, %v1038
  %v1743 = vpack.c.b16 %v1047, %v1039
  %v1744 = vpack.c.b16 %v1048, %v1040
  %v1745 = vpack.c.b16 %v1057, %v1049
  %v1746 = vpack.c.b16 %v1058, %v1050
  %v1747 = vpack.c.b16 %v1059, %v1051
  %v1748 = vpack.c.b16 %v1060, %v1052
  %v1749 = vpack.c.b16 %v1061, %v1053
  %v1750 = vpack.c.b16 %v1062, %v1054
  %v1751 = vpack.c.b16 %v1063, %v1055
  %v1752 = vpack.c.b16 %v1064, %v1056
  %v1753 = vpack.c.b16 %v1073, %v1065
  %v1754 = vpack.c.b16 %v1074, %v1066
  %v1755 = vpack.c.b16 %v1075, %v1067
  %v1756 = vpack.c.b16 %v1076, %v1068
  %v1757 = vpack.c.b16 %v1077, %v1069
  %v1758 = vpack.c.b16 %v1078, %v1070
  %v1759 = vpack.c.b16 %v1079, %v1071
  %v1760 = vpack.c.b16 %v1080, %v1072
  %v1761 = vpack.c.b16 %v1089, %v1081
  %v1762 = vpack.c.b16 %v1090, %v1082
  %v1763 = vpack.c.b16 %v1091, %v1083
  %v1764 = vpack.c.b16 %v1092, %v1084
  %v1765 = vpack.c.b16 %v1093, %v1085
  %v1766 = vpack.c.b16 %v1094, %v1086
  %v1767 = vpack.c.b16 %v1095, %v1087
  %v1768 = vpack.c.b16 %v1096, %v1088
  %v1769 = vpack.c.b16 %v1105, %v1097
  %v1770 = vpack.c.b16 %v1106, %v1098
  %v1771 = vpack.c.b16 %v1107, %v1099
  %v1772 = vpack.c.b16 %v1108, %v1100
  %v1773 = vpack.c.b16 %v1109, %v1101
  %v1774 = vpack.c.b16 %v1110, %v1102
  %v1775 = vpack.c.b16 %v1111, %v1103
  %v1776 = vpack.c.b16 %v1112, %v1104
  %v1777 = vpack.c.b16 %v1121, %v1113
  %v1778 = vpack.c.b16 %v1122, %v1114
  %v1779 = vpack.c.b16 %v1123, %v1115
  %v1780 = vpack.c.b16 %v1124, %v1116
  %v1781 = vpack.c.b16 %v1125, %v1117
  %v1782 = vpack.c.b16 %v1126, %v1118
  %v1783 = vpack.c.b16 %v1127, %v1119
  %v1784 = vpack.c.b16 %v1128, %v1120
  %v1785 = vpack.c.b16 %v1137, %v1129
  %v1786 = vpack.c.b16 %v1138, %v1130
  %v1787 = vpack.c.b16 %v1139, %v1131
  %v1788 = vpack.c.b16 %v1140, %v1132
  %v1789 = vpack.c.b16 %v1141, %v1133
  %v1790 = vpack.c.b16 %v1142, %v1134
  %v1791 = vpack.c.b16 %v1143, %v1135
  %v1792 = vpack.c.b16 %v1144, %v1136
  %v1793 = vpack.c.b16 %v1153, %v1145
  %v1794 = vpack.c.b16 %v1154, %v1146
  %v1795 = vpack.c.b16 %v1155, %v1147
  %v1796 = vpack.c.b16 %v1156, %v1148
  %v1797 = vpack.c.b16 %v1157, %v1149
  %v1798 = vpack.c.b16 %v1158, %v1150
  %v1799 = vpack.c.b16 %v1159, %v1151
  %v1800 = vpack.c.b16 %v1160, %v1152
  %v1801 = vpack.c.b16 %v1169, %v1161
  %v1802 = vpack.c.b16 %v1170, %v1162
  %v1803 = vpack.c.b16 %v1171, %v1163
  %v1804 = vpack.c.b16 %v1172, %v1164
  %v1805 = vpack.c.b16 %v1173, %v1165
  %v1806 = vpack.c.b16 %v1174, %v1166
  %v1807 = vpack.c.b16 %v1175, %v1167
  %v1808 = vpack.c.b16 %v1176, %v1168
  %v1809 = vpack.c.b16 %v1185, %v1177
  %v1810 = vpack.c.b16 %v1186, %v1178
  %v1811 = vpack.c.b16 %v1187, %v1179
  %v1812 = vpack.c.b16 %v1188, %v1180
  %v1813 = vpack.c.b16 %v1189, %v1181
  %v1814 = vpack.c.b16 %v1190, %v1182
  %v1815 = vpack.c.b16 %v1191, %v1183
  %v1816 = vpack.c.b16 %v1192, %v1184
  %v1817 = vpack.c.b16 %v1201, %v1193
  %v1818 = vpack.c.b16 %v1202, %v1194
  %v1819 = vpack.c.b16 %v1203, %v1195
  %v1820 = vpack.c.b16 %v1204, %v1196
  %v1821 = vpack.c.b16 %v1205, %v1197
  %v1822 = vpack.c.b16 %v1206, %v1198
  %v1823 = vpack.c.b16 %v1207, %v1199
  %v1824 = vpack.c.b16 %v1208, %v1200
  %v1825 = vpack.c.b16 %v1217, %v1209
  %v1826 = vpack.c.b16 %v1218, %v1210
  %v1827 = vpack.c.b16 %v1219, %v1211
  %v1828 = vpack.c.b16 %v1220, %v1212
  %v1829 = vpack.c.b16 %v1221, %v1213
  %v1830 = vpack.c.b16 %v1222, %v1214
  %v1831 = vpack.c.b16 %v1223, %v1215
  %v1832 = vpack.c.b16 %v1224, %v1216
  %v1833 = vpack.c.b16 %v1233, %v1225
  %v1834 = vpack.c.b16 %v1234, %v1226
  %v1835 = vpack.c.b16 %v1235, %v1227
  %v1836 = vpack.c.b16 %v1236, %v1228
  %v1837 = vpack.c.b16 %v1237, %v1229
  %v1838 = vpack.c.b16 %v1238, %v1230
  %v1839 = vpack.c.b16 %v1239, %v1231
  %v1840 = vpack.c.b16 %v1240, %v1232
  %v1841 = vpack.c.b16 %v1249, %v1241
  %v1842 = vpack.c.b16 %v1250, %v1242
  %v1843 = vpack.c.b16 %v1251, %v1243
  %v1844 = vpack.c.b16 %v1252, %v1244
  %v1845 = vpack.c.b16 %v1253, %v1245
  %v1846 = vpack.c.b16 %v1254, %v1246
  %v1847 = vpack.c.b16 %v1255, %v1247
  %v1848 = vpack.c.b16 %v1256, %v1248
  %v1849 = vpack.c.b16 %v1265, %v1257
  %v1850 = vpack.c.b16 %v1266, %v1258
  %v1851 = vpack.c.b16 %v1267, %v1259
  %v1852 = vpack.c.b16 %v1268, %v1260
  %v1853 = vpack.c.b16 %v1269, %v1261
  %v1854 = vpack.c.b16 %v1270, %v1262
  %v1855 = vpack.c.b16 %v1271, %v1263
  %v1856 = vpack.c.b16 %v1272, %v1264
  %v1857 = vpack.c.b16 %v1281, %v1273
  %v1858 = vpack.c.b16 %v1282, %v1274
  %v1859 = vpack.c.b16 %v1283, %v1275
  %v1860 = vpack.c.b16 %v1284, %v1276
  %v1861 = vpack.c.b16 %v1285, %v1277
  %v1862 = vpack.c.b16 %v1286, %v1278
  %v1863 = vpack.c.b16 %v1287, %v1279
  %v1864 = vpack.c.b16 %v1288, %v1280
  %v1865 = vpack.c.b16 %v1297, %v1289
  %v1866 = vpack.c.b16 %v1298, %v1290
  %v1867 = vpack.c.b16 %v1299, %v1291
  %v1868 = vpack.c.b16 %v1300, %v1292
  %v1869 = vpack.c.b16 %v1301, %v1293
  %v1870 = vpack.c.b16 %v1302, %v1294
  %v1871 = vpack.c.b16 %v1303, %v1295
  %v1872 = vpack.c.b16 %v1304, %v1296
  %v1873 = vpack.c.b16 %v1313, %v1305
  %v1874 = vpack.c.b16 %v1314, %v1306
  %v1875 = vpack.c.b16 %v1315, %v1307
  %v1876 = vpack.c.b16 %v1316, %v1308
  %v1877 = vpack.c.b16 %v1317, %v1309
  %v1878 = vpack.c.b16 %v1318, %v1310
  %v1879 = vpack.c.b16 %v1319, %v1311
  %v1880 = vpack.c.b16 %v1320, %v1312
  %v1881 = vpack.c.b16 %v1329, %v1321
  %v1882 = vpack.c.b16 %v1330, %v1322
  %v1883 = vpack.c.b16 %v1331, %v1323
  %v1884 = vpack.c.b16 %v1332, %v1324
  %v1885 = vpack.c.b16 %v1333, %v1325
  %v1886 = vpack.c.b16 %v1334, %v1326
  %v1887 = vpack.c.b16 %v1335, %v1327
  %v1888 = vpack.c.b16 %v1336, %v1328
  %v1889 = vpack.c.b16 %v1345, %v1337
  %v1890 = vpack.c.b16 %v1346, %v1338
  %v1891 = vpack.c.b16 %v1347, %v1339
  %v1892 = vpack.c.b16 %v1348, %v1340
  %v1893 = vpack.c.b16 %v1349, %v1341
  %v1894 = vpack.c.b16 %v1350, %v1342
  %v1895 = vpack.c.b16 %v1351, %v1343
  %v1896 = vpack.c.b16 %v1352, %v1344
  %v1897 = vpack.c.b16 %v1361, %v1353
  %v1898 = vpack.c.b16 %v1362, %v1354
  %v1899 = vpack.c.b16 %v1363, %v1355
  %v1900 = vpack.c.b16 %v1364, %v1356
  %v1901 = vpack.c.b16 %v1365, %v1357
  %v1902 = vpack.c.b16 %v1366, %v1358
  %v1903 = vpack.c.b16 %v1367, %v1359
  %v1904 = vpack.c.b16 %v1368, %v1360
  %v1905 = vpack.c.b16 %v1377, %v1369
  %v1906 = vpack.c.b16 %v1378, %v1370
  %v1907 = vpack.c.b16 %v1379, %v1371
  %v1908 = vpack.c.b16 %v1380, %v1372
  %v1909 = vpack.c.b16 %v1381, %v1373
  %v1910 = vpack.c.b16 %v1382, %v1374
  %v1911 = vpack.c.b16 %v1383, %v1375
  %v1912 = vpack.c.b16 %v1384, %v1376
  %v1913 = vpack.c.b16 %v1393, %v1385
  %v1914 = vpack.c.b16 %v1394, %v1386
  %v1915 = vpack.c.b16 %v1395, %v1387
  %v1916 = vpack.c.b16 %v1396, %v1388
  %v1917 = vpack.c.b16 %v1397, %v1389
  %v1918 = vpack.c.b16 %v1398, %v1390
  %v1919 = vpack.c.b16 %v1399, %v1391
  %v1920 = vpack.c.b16 %v1400, %v1392
  %v1921 = vpack.c.b16 %v1409, %v1401
  %v1922 = vpack.c.b16 %v1410, %v1402
  %v1923 = vpack.c.b16 %v1411, %v1403
  %v1924 = vpack.c.b16 %v1412, %v1404
  %v1925 = vpack.c.b16 %v1413, %v1405
  %v1926 = vpack.c.b16 %v1414, %v1406
  %v1927 = vpack.c.b16 %v1415, %v1407
  %v1928 = vpack.c.b16 %v1416, %v1408
  %v1929 = vpack.c.b16 %v1425, %v1417
  %v1930 = vpack.c.b16 %v1426, %v1418
  %v1931 = vpack.c.b16 %v1427, %v1419
  %v1932 = vpack.c.b16 %v1428, %v1420
  %v1933 = vpack.c.b16 %v1429, %v1421
  %v1934 = vpack.c.b16 %v1430, %v1422
  %v1935 = vpack.c.b16 %v1431, %v1423
  %v1936 = vpack.c.b16 %v1432, %v1424
  %v1937 = vpack.c.b16 %v1441, %v1433
  %v1938 = vpack.c.b16 %v1442, %v1434
  %v1939 = vpack.c.b16 %v1443, %v1435
  %v1940 = vpack.c.b16 %v1444, %v1436
  %v1941 = vpack.c.b16 %v1445, %v1437
  %v1942 = vpack.c.b16 %v1446, %v1438
  %v1943 = vpack.c.b16 %v1447, %v1439
  %v1944 = vpack.c.b16 %v1448, %v1440
  %v1945 = vpack.c.b16 %v1457, %v1449
  %v1946 = vpack.c.b16 %v1458, %v1450
  %v1947 = vpack.c.b16 %v1459, %v1451
  %v1948 = vpack.c.b16 %v1460, %v1452
  %v1949 = vpack.c.b16 %v1461, %v1453
  %v1950 = vpack.c.b16 %v1462, %v1454
  %v1951 = vpack.c.b16 %v1463, %v1455
  %v1952 = vpack.c.b16 %v1464, %v1456
  %v1953 = vpack.c.b16 %v1473, %v1465
  %v1954 = vpack.c.b16 %v1474, %v1466
  %v1955 = vpack.c.b16 %v1475, %v1467
  %v1956 = vpack.c.b16 %v1476, %v1468
  %v1957 = vpack.c.b16 %v1477, %v1469
  %v1958 = vpack.c.b16 %v1478, %v1470
  %v1959 = vpack.c.b16 %v1479, %v1471
  %v1960 = vpack.c.b16 %v1480, %v1472
  %v1961 = vpack.c.b16 %v1489, %v1481
  %v1962 = vpack.c.b16 %v1490, %v1482
  %v1963 = vpack.c.b16 %v1491, %v1483
  %v1964 = vpack.c.b16 %v1492, %v1484
  %v1965 = vpack.c.b16 %v1493, %v1485
  %v1966 = vpack.c.b16 %v1494, %v1486
  %v1967 = vpack.c.b16 %v1495, %v1487
  %v1968 = vpack.c.b16 %v1496, %v1488
  %v1969 = vpack.c.b16 %v1505, %v1497
  %v1970 = vpack.c.b16 %v1506, %v1498
  %v1971 = vpack.c.b16 %v1507, %v1499
  %v1972 = vpack.c.b16 %v1508, %v1500
  %v1973 = vpack.c.b16 %v1509, %v1501
  %v1974 = vpack.c.b16 %v1510, %v1502
  %v1975 = vpack.c.b16 %v1511, %v1503
  %v1976 = vpack.c.b16 %v1512, %v1504
  %v1977 = vpack.c.b16 %v1521, %v1513
  %v1978 = vpack.c.b16 %v1522, %v1514
  %v1979 = vpack.c.b16 %v1523, %v1515
  %v1980 = vpack.c.b16 %v1524, %v1516
  %v1981 = vpack.c.b16 %v1525, %v1517
  %v1982 = vpack.c.b16 %v1526, %v1518
  %v1983 = vpack.c.b16 %v1527, %v1519
  %v1984 = vpack.c.b16 %v1528, %v1520
  %v1985 = vpack.c.b16 %v1537, %v1529
  %v1986 = vpack.c.b16 %v1538, %v1530
  %v1987 = vpack.c.b16 %v1539, %v1531
  %v1988 = vpack.c.b16 %v1540, %v1532
  %v1989 = vpack.c.b16 %v1541, %v1533
  %v1990 = vpack.c.b16 %v1542, %v1534
  %v1991 = vpack.c.b16 %v1543, %v1535
  %v1992 = vpack.c.b16 %v1544, %v1536
  %v1993 = vpack.c.b16 %v1553, %v1545
  %v1994 = vpack.c.b16 %v1554, %v1546
  %v1995 = vpack.c.b16 %v1555, %v1547
  %v1996 = vpack.c.b16 %v1556, %v1548
  %v1997 = vpack.c.b16 %v1557, %v1549
  %v1998 = vpack.c.b16 %v1558, %v1550
  %v1999 = vpack.c.b16 %v1559, %v1551
  %v2000 = vpack.c.b16 %v1560, %v1552
  %v2001 = vpack.c.b16 %v1569, %v1561
  %v2002 = vpack.c.b16 %v1570, %v1562
  %v2003 = vpack.c.b16 %v1571, %v1563
  %v2004 = vpack.c.b16 %v1572, %v1564
  %v2005 = vpack.c.b16 %v1573, %v1565
  %v2006 = vpack.c.b16 %v1574, %v1566
  %v2007 = vpack.c.b16 %v1575, %v1567
  %v2008 = vpack.c.b16 %v1576, %v1568
  %v2009 = vpack.c.b16 %v1585, %v1577
  %v2010 = vpack.c.b16 %v1586, %v1578
  %v2011 = vpack.c.b16 %v1587, %v1579
  %v2012 = vpack.c.b16 %v1588, %v1580
  %v2013 = vpack.c.b16 %v1589, %v1581
  %v2014 = vpack.c.b16 %v1590, %v1582
  %v2015 = vpack.c.b16 %v1591, %v1583
  %v2016 = vpack.c.b16 %v1592, %v1584
  %v2017 = vpack.c.b16 %v1601, %v1593
  %v2018 = vpack.c.b16 %v1602, %v1594
  %v2019 = vpack.c.b16 %v1603, %v1595
  %v2020 = vpack.c.b16 %v1604, %v1596
  %v2021 = vpack.c.b16 %v1605, %v1597
  %v2022 = vpack.c.b16 %v1606, %v1598
  %v2023 = vpack.c.b16 %v1607, %v1599
  %v2024 = vpack.c.b16 %v1608, %v1600
  %v2025 = vpack.c.b16 %v1617, %v1609
  %v2026 = vpack.c.b16 %v1618, %v1610
  %v2027 = vpack.c.b16 %v1619, %v1611
  %v2028 = vpack.c.b16 %v1620, %v1612
  %v2029 = vpack.c.b16 %v1621, %v1613
  %v2030 = vpack.c.b16 %v1622, %v1614
  %v2031 = vpack.c.b16 %v1623, %v1615
  %v2032 = vpack.c.b16 %v1624, %v1616
  %v2033 = vpack.c.b16 %v1633, %v1625
  %v2034 = vpack.c.b16 %v1634, %v1626
  %v2035 = vpack.c.b16 %v1635, %v1627
  %v2036 = vpack.c.b16 %v1636, %v1628
  %v2037 = vpack.c.b16 %v1637, %v1629
  %v2038 = vpack.c.b16 %v1638, %v1630
  %v2039 = vpack.c.b16 %v1639, %v1631
  %v2040 = vpack.c.b16 %v1640, %v1632
  %v2041 = vpack.c.b16 %v1649, %v1641
  %v2042 = vpack.c.b16 %v1650, %v1642
  %v2043 = vpack.c.b16 %v1651, %v1643
  %v2044 = vpack.c.b16 %v1652, %v1644
  %v2045 = vpack.c.b16 %v1653, %v1645
  %v2046 = vpack.c.b16 %v1654, %v1646
  %v2047 = vpack.c.b16 %v1655, %v1647
  %v2048 = vpack.c.b16 %v1656, %v1648
  %vm2441 = vcmask 130048
  %v2443 = vsel %vm2441, %v46, 0
  %2445 = vmatprep.subr.bf16.mxu0 %v1658
  %2446 = vmatpush1.bf16.msra.mxu0 %v1657
  %2447 = vmatprep.subr.bf16.mxu0 %v1666
  %2448 = vmatpush1.bf16.msra.mxu0 %v1665
  %2449 = vmatprep.subr.bf16.mxu0 %v1674
  %2450 = vmatpush1.bf16.msra.mxu0 %v1673
  %2451 = vmatprep.subr.bf16.mxu0 %v1682
  %2452 = vmatpush1.bf16.msra.mxu0 %v1681
  %2453 = vmatprep.subr.bf16.mxu0 %v1690
  %2454 = vmatpush1.bf16.msra.mxu0 %v1689
  %2455 = vmatprep.subr.bf16.mxu0 %v1698
  %2456 = vmatpush1.bf16.msra.mxu0 %v1697
  %2457 = vmatprep.subr.bf16.mxu0 %v1706
  %2458 = vmatpush1.bf16.msra.mxu0 %v1705
  %2459 = vmatprep.subr.bf16.mxu0 %v1714
  %2460 = vmatpush1.bf16.msra.mxu0 %v1713
  %2461 = vmatprep.subr.bf16.mxu0 %v1722
  %2462 = vmatpush1.bf16.msra.mxu0 %v1721
  %2463 = vmatprep.subr.bf16.mxu0 %v1730
  %2464 = vmatpush1.bf16.msra.mxu0 %v1729
  %2465 = vmatprep.subr.bf16.mxu0 %v1738
  %2466 = vmatpush1.bf16.msra.mxu0 %v1737
  %2467 = vmatprep.subr.bf16.mxu0 %v1746
  %2468 = vmatpush1.bf16.msra.mxu0 %v1745
  %2469 = vmatprep.subr.bf16.mxu0 %v1754
  %2470 = vmatpush1.bf16.msra.mxu0 %v1753
  %2471 = vmatprep.subr.bf16.mxu0 %v1762
  %2472 = vmatpush1.bf16.msra.mxu0 %v1761
  %2473 = vmatprep.subr.bf16.mxu0 %v1770
  %2474 = vmatpush1.bf16.msra.mxu0 %v1769
  %2475 = vmatprep.subr.bf16.mxu0 %v1778
  %2476 = vmatpush1.bf16.msra.mxu0 %v1777
  %2477 = vmatprep.mubr.bf16.mxu0 %v41
  %2478 = vmatmul.mubr.bf16.gmra.mrb[0].mxu0 %v40
  %v2479 = vpop.f32.mrb[0].mxu0
  %v2480 = vadd.f32 %v444, %v2479
  %v2481 = vpop.f32.mrb[0].mxu0
  %v2482 = vadd.f32 %v448, %v2481
  %v2483 = vpop.f32.mrb[0].mxu0
  %v2484 = vpop.f32.mrb[0].mxu0
  %2485 = vdwg.mxu0
  %2486 = vmatprep.subr.bf16.mxu0 %v1786
  %2487 = vmatpush1.bf16.msra.mxu0 %v1785
  %2488 = vmatprep.subr.bf16.mxu0 %v1794
  %2489 = vmatpush1.bf16.msra.mxu0 %v1793
  %2490 = vmatprep.subr.bf16.mxu0 %v1802
  %2491 = vmatpush1.bf16.msra.mxu0 %v1801
  %2492 = vmatprep.subr.bf16.mxu0 %v1810
  %2493 = vmatpush1.bf16.msra.mxu0 %v1809
  %2494 = vmatprep.subr.bf16.mxu0 %v1818
  %2495 = vmatpush1.bf16.msra.mxu0 %v1817
  %2496 = vmatprep.subr.bf16.mxu0 %v1826
  %2497 = vmatpush1.bf16.msra.mxu0 %v1825
  %2498 = vmatprep.subr.bf16.mxu0 %v1834
  %2499 = vmatpush1.bf16.msra.mxu0 %v1833
  %2500 = vmatprep.subr.bf16.mxu0 %v1842
  %2501 = vmatpush1.bf16.msra.mxu0 %v1841
  %2502 = vmatprep.subr.bf16.mxu0 %v1850
  %2503 = vmatpush1.bf16.msra.mxu0 %v1849
  %2504 = vmatprep.subr.bf16.mxu0 %v1858
  %2505 = vmatpush1.bf16.msra.mxu0 %v1857
  %2506 = vmatprep.subr.bf16.mxu0 %v1866
  %2507 = vmatpush1.bf16.msra.mxu0 %v1865
  %2508 = vmatprep.subr.bf16.mxu0 %v1874
  %2509 = vmatpush1.bf16.msra.mxu0 %v1873
  %2510 = vmatprep.subr.bf16.mxu0 %v1882
  %2511 = vmatpush1.bf16.msra.mxu0 %v1881
  %2512 = vmatprep.subr.bf16.mxu0 %v1890
  %2513 = vmatpush1.bf16.msra.mxu0 %v1889
  %2514 = vmatprep.subr.bf16.mxu0 %v1898
  %2515 = vmatpush1.bf16.msra.mxu0 %v1897
  %2516 = vmatprep.subr.bf16.mxu0 %v1906
  %2517 = vmatpush1.bf16.msra.mxu0 %v1905
  %2518 = vmatprep.mubr.bf16.mxu0 %v43
  %2519 = vmatmul.mubr.bf16.gmra.mrb[0].mxu0 %v42
  %v2520 = vpop.f32.mrb[0].mxu0
  %v2521 = vadd.f32 %v2480, %v2520
  %v2522 = vpop.f32.mrb[0].mxu0
  %v2523 = vadd.f32 %v2482, %v2522
  %v2524 = vpop.f32.mrb[0].mxu0
  %v2525 = vpop.f32.mrb[0].mxu0
  %2526 = vdwg.mxu0
  %2527 = vmatprep.subr.bf16.mxu0 %v1914
  %2528 = vmatpush1.bf16.msra.mxu0 %v1913
  %2529 = vmatprep.subr.bf16.mxu0 %v1922
  %2530 = vmatpush1.bf16.msra.mxu0 %v1921
  %2531 = vmatprep.subr.bf16.mxu0 %v1930
  %2532 = vmatpush1.bf16.msra.mxu0 %v1929
  %2533 = vmatprep.subr.bf16.mxu0 %v1938
  %2534 = vmatpush1.bf16.msra.mxu0 %v1937
  %2535 = vmatprep.subr.bf16.mxu0 %v1946
  %2536 = vmatpush1.bf16.msra.mxu0 %v1945
  %2537 = vmatprep.subr.bf16.mxu0 %v1954
  %2538 = vmatpush1.bf16.msra.mxu0 %v1953
  %2539 = vmatprep.subr.bf16.mxu0 %v1962
  %2540 = vmatpush1.bf16.msra.mxu0 %v1961
  %2541 = vmatprep.subr.bf16.mxu0 %v1970
  %2542 = vmatpush1.bf16.msra.mxu0 %v1969
  %2543 = vmatprep.subr.bf16.mxu0 %v1978
  %2544 = vmatpush1.bf16.msra.mxu0 %v1977
  %2545 = vmatprep.subr.bf16.mxu0 %v1986
  %2546 = vmatpush1.bf16.msra.mxu0 %v1985
  %2547 = vmatprep.subr.bf16.mxu0 %v1994
  %2548 = vmatpush1.bf16.msra.mxu0 %v1993
  %2549 = vmatprep.subr.bf16.mxu0 %v2002
  %2550 = vmatpush1.bf16.msra.mxu0 %v2001
  %2551 = vmatprep.subr.bf16.mxu0 %v2010
  %2552 = vmatpush1.bf16.msra.mxu0 %v2009
  %2553 = vmatprep.subr.bf16.mxu0 %v2018
  %2554 = vmatpush1.bf16.msra.mxu0 %v2017
  %2555 = vmatprep.subr.bf16.mxu0 %v2026
  %2556 = vmatpush1.bf16.msra.mxu0 %v2025
  %2557 = vmatprep.subr.bf16.mxu0 %v2034
  %2558 = vmatpush1.bf16.msra.mxu0 %v2033
  %2559 = vmatprep.mubr.bf16.mxu0 %v45
  %2560 = vmatmul.mubr.bf16.gmra.mrb[0].mxu0 %v44
  %v2561 = vpop.f32.mrb[0].mxu0
  %v2562 = vadd.f32 %v2521, %v2561
  %v2563 = vpop.f32.mrb[0].mxu0
  %v2564 = vadd.f32 %v2523, %v2563
  %v2565 = vpop.f32.mrb[0].mxu0
  %v2566 = vpop.f32.mrb[0].mxu0
  %2567 = vdwg.mxu0
  %2568 = vmatprep.subr.bf16.mxu0 %v2042
  %2569 = vmatpush1.bf16.msra.mxu0 %v2041
  %2570 = vmatprep.subr.bf16.mxu0 0
  %2571 = vmatpush1.bf16.msra.mxu0 0
  %2572 = vmatprep.subr.bf16.mxu0 0
  %2573 = vmatpush1.bf16.msra.mxu0 0
  %2574 = vmatprep.subr.bf16.mxu0 0
  %2575 = vmatpush1.bf16.msra.mxu0 0
  %2576 = vmatprep.subr.bf16.mxu0 0
  %2577 = vmatpush1.bf16.msra.mxu0 0
  %2578 = vmatprep.subr.bf16.mxu0 0
  %2579 = vmatpush1.bf16.msra.mxu0 0
  %2580 = vmatprep.subr.bf16.mxu0 0
  %2581 = vmatpush1.bf16.msra.mxu0 0
  %2582 = vmatprep.subr.bf16.mxu0 0
  %2583 = vmatpush1.bf16.msra.mxu0 0
  %2584 = vmatprep.subr.bf16.mxu0 0
  %2585 = vmatpush1.bf16.msra.mxu0 0
  %2586 = vmatprep.subr.bf16.mxu0 0
  %2587 = vmatpush1.bf16.msra.mxu0 0
  %2588 = vmatprep.subr.bf16.mxu0 0
  %2589 = vmatpush1.bf16.msra.mxu0 0
  %2590 = vmatprep.subr.bf16.mxu0 0
  %2591 = vmatpush1.bf16.msra.mxu0 0
  %2592 = vmatprep.subr.bf16.mxu0 0
  %2593 = vmatpush1.bf16.msra.mxu0 0
  %2594 = vmatprep.subr.bf16.mxu0 0
  %2595 = vmatpush1.bf16.msra.mxu0 0
  %2596 = vmatprep.subr.bf16.mxu0 0
  %2597 = vmatpush1.bf16.msra.mxu0 0
  %2598 = vmatprep.subr.bf16.mxu0 0
  %2599 = vmatpush1.bf16.msra.mxu0 0
  %2600 = vmatprep.mubr.bf16.mxu0 0
  %2601 = vmatmul.mubr.bf16.gmra.mrb[0].mxu0 %v2443
  %v2602 = vpop.f32.mrb[0].mxu0
  %v2603 = vadd.f32 %v2562, %v2602
  %v2604 = vpop.f32.mrb[0].mxu0
  %v2605 = vadd.f32 %v2564, %v2604
  %v2606 = vpop.f32.mrb[0].mxu0
  %v2607 = vpop.f32.mrb[0].mxu0
  %2608 = vdwg.mxu0
  %2609 = vmatprep.subr.bf16.mxu0 %v1660
  %2610 = vmatpush1.bf16.msra.mxu0 %v1659
  %2611 = vmatprep.subr.bf16.mxu0 %v1668
  %2612 = vmatpush1.bf16.msra.mxu0 %v1667
  %2613 = vmatprep.subr.bf16.mxu0 %v1676
  %2614 = vmatpush1.bf16.msra.mxu0 %v1675
  %2615 = vmatprep.subr.bf16.mxu0 %v1684
  %2616 = vmatpush1.bf16.msra.mxu0 %v1683
  %2617 = vmatprep.subr.bf16.mxu0 %v1692
  %2618 = vmatpush1.bf16.msra.mxu0 %v1691
  %2619 = vmatprep.subr.bf16.mxu0 %v1700
  %2620 = vmatpush1.bf16.msra.mxu0 %v1699
  %2621 = vmatprep.subr.bf16.mxu0 %v1708
  %2622 = vmatpush1.bf16.msra.mxu0 %v1707
  %2623 = vmatprep.subr.bf16.mxu0 %v1716
  %2624 = vmatpush1.bf16.msra.mxu0 %v1715
  %2625 = vmatprep.subr.bf16.mxu0 %v1724
  %2626 = vmatpush1.bf16.msra.mxu0 %v1723
  %2627 = vmatprep.subr.bf16.mxu0 %v1732
  %2628 = vmatpush1.bf16.msra.mxu0 %v1731
  %2629 = vmatprep.subr.bf16.mxu0 %v1740
  %2630 = vmatpush1.bf16.msra.mxu0 %v1739
  %2631 = vmatprep.subr.bf16.mxu0 %v1748
  %2632 = vmatpush1.bf16.msra.mxu0 %v1747
  %2633 = vmatprep.subr.bf16.mxu0 %v1756
  %2634 = vmatpush1.bf16.msra.mxu0 %v1755
  %2635 = vmatprep.subr.bf16.mxu0 %v1764
  %2636 = vmatpush1.bf16.msra.mxu0 %v1763
  %2637 = vmatprep.subr.bf16.mxu0 %v1772
  %2638 = vmatpush1.bf16.msra.mxu0 %v1771
  %2639 = vmatprep.subr.bf16.mxu0 %v1780
  %2640 = vmatpush1.bf16.msra.mxu0 %v1779
  %2641 = vmatprep.mubr.bf16.mxu0 %v41
  %2642 = vmatmul.mubr.bf16.gmra.mrb[0].mxu0 %v40
  %v2643 = vpop.f32.mrb[0].mxu0
  %v2644 = vadd.f32 %v452, %v2643
  %v2645 = vpop.f32.mrb[0].mxu0
  %v2646 = vadd.f32 %v456, %v2645
  %v2647 = vpop.f32.mrb[0].mxu0
  %v2648 = vpop.f32.mrb[0].mxu0
  %2649 = vdwg.mxu0
  %2650 = vmatprep.subr.bf16.mxu0 %v1788
  %2651 = vmatpush1.bf16.msra.mxu0 %v1787
  %2652 = vmatprep.subr.bf16.mxu0 %v1796
  %2653 = vmatpush1.bf16.msra.mxu0 %v1795
  %2654 = vmatprep.subr.bf16.mxu0 %v1804
  %2655 = vmatpush1.bf16.msra.mxu0 %v1803
  %2656 = vmatprep.subr.bf16.mxu0 %v1812
  %2657 = vmatpush1.bf16.msra.mxu0 %v1811
  %2658 = vmatprep.subr.bf16.mxu0 %v1820
  %2659 = vmatpush1.bf16.msra.mxu0 %v1819
  %2660 = vmatprep.subr.bf16.mxu0 %v1828
  %2661 = vmatpush1.bf16.msra.mxu0 %v1827
  %2662 = vmatprep.subr.bf16.mxu0 %v1836
  %2663 = vmatpush1.bf16.msra.mxu0 %v1835
  %2664 = vmatprep.subr.bf16.mxu0 %v1844
  %2665 = vmatpush1.bf16.msra.mxu0 %v1843
  %2666 = vmatprep.subr.bf16.mxu0 %v1852
  %2667 = vmatpush1.bf16.msra.mxu0 %v1851
  %2668 = vmatprep.subr.bf16.mxu0 %v1860
  %2669 = vmatpush1.bf16.msra.mxu0 %v1859
  %2670 = vmatprep.subr.bf16.mxu0 %v1868
  %2671 = vmatpush1.bf16.msra.mxu0 %v1867
  %2672 = vmatprep.subr.bf16.mxu0 %v1876
  %2673 = vmatpush1.bf16.msra.mxu0 %v1875
  %2674 = vmatprep.subr.bf16.mxu0 %v1884
  %2675 = vmatpush1.bf16.msra.mxu0 %v1883
  %2676 = vmatprep.subr.bf16.mxu0 %v1892
  %2677 = vmatpush1.bf16.msra.mxu0 %v1891
  %2678 = vmatprep.subr.bf16.mxu0 %v1900
  %2679 = vmatpush1.bf16.msra.mxu0 %v1899
  %2680 = vmatprep.subr.bf16.mxu0 %v1908
  %2681 = vmatpush1.bf16.msra.mxu0 %v1907
  %2682 = vmatprep.mubr.bf16.mxu0 %v43
  %2683 = vmatmul.mubr.bf16.gmra.mrb[0].mxu0 %v42
  %v2684 = vpop.f32.mrb[0].mxu0
  %v2685 = vadd.f32 %v2644, %v2684
  %v2686 = vpop.f32.mrb[0].mxu0
  %v2687 = vadd.f32 %v2646, %v2686
  %v2688 = vpop.f32.mrb[0].mxu0
  %v2689 = vpop.f32.mrb[0].mxu0
  %2690 = vdwg.mxu0
  %2691 = vmatprep.subr.bf16.mxu0 %v1916
  %2692 = vmatpush1.bf16.msra.mxu0 %v1915
  %2693 = vmatprep.subr.bf16.mxu0 %v1924
  %2694 = vmatpush1.bf16.msra.mxu0 %v1923
  %2695 = vmatprep.subr.bf16.mxu0 %v1932
  %2696 = vmatpush1.bf16.msra.mxu0 %v1931
  %2697 = vmatprep.subr.bf16.mxu0 %v1940
  %2698 = vmatpush1.bf16.msra.mxu0 %v1939
  %2699 = vmatprep.subr.bf16.mxu0 %v1948
  %2700 = vmatpush1.bf16.msra.mxu0 %v1947
  %2701 = vmatprep.subr.bf16.mxu0 %v1956
  %2702 = vmatpush1.bf16.msra.mxu0 %v1955
  %2703 = vmatprep.subr.bf16.mxu0 %v1964
  %2704 = vmatpush1.bf16.msra.mxu0 %v1963
  %2705 = vmatprep.subr.bf16.mxu0 %v1972
  %2706 = vmatpush1.bf16.msra.mxu0 %v1971
  %2707 = vmatprep.subr.bf16.mxu0 %v1980
  %2708 = vmatpush1.bf16.msra.mxu0 %v1979
  %2709 = vmatprep.subr.bf16.mxu0 %v1988
  %2710 = vmatpush1.bf16.msra.mxu0 %v1987
  %2711 = vmatprep.subr.bf16.mxu0 %v1996
  %2712 = vmatpush1.bf16.msra.mxu0 %v1995
  %2713 = vmatprep.subr.bf16.mxu0 %v2004
  %2714 = vmatpush1.bf16.msra.mxu0 %v2003
  %2715 = vmatprep.subr.bf16.mxu0 %v2012
  %2716 = vmatpush1.bf16.msra.mxu0 %v2011
  %2717 = vmatprep.subr.bf16.mxu0 %v2020
  %2718 = vmatpush1.bf16.msra.mxu0 %v2019
  %2719 = vmatprep.subr.bf16.mxu0 %v2028
  %2720 = vmatpush1.bf16.msra.mxu0 %v2027
  %2721 = vmatprep.subr.bf16.mxu0 %v2036
  %2722 = vmatpush1.bf16.msra.mxu0 %v2035
  %2723 = vmatprep.mubr.bf16.mxu0 %v45
  %2724 = vmatmul.mubr.bf16.gmra.mrb[0].mxu0 %v44
  %v2725 = vpop.f32.mrb[0].mxu0
  %v2726 = vadd.f32 %v2685, %v2725
  %v2727 = vpop.f32.mrb[0].mxu0
  %v2728 = vadd.f32 %v2687, %v2727
  %v2729 = vpop.f32.mrb[0].mxu0
  %v2730 = vpop.f32.mrb[0].mxu0
  %2731 = vdwg.mxu0
  %2732 = vmatprep.subr.bf16.mxu0 %v2044
  %2733 = vmatpush1.bf16.msra.mxu0 %v2043
  %2734 = vmatprep.subr.bf16.mxu0 0
  %2735 = vmatpush1.bf16.msra.mxu0 0
  %2736 = vmatprep.subr.bf16.mxu0 0
  %2737 = vmatpush1.bf16.msra.mxu0 0
  %2738 = vmatprep.subr.bf16.mxu0 0
  %2739 = vmatpush1.bf16.msra.mxu0 0
  %2740 = vmatprep.subr.bf16.mxu0 0
  %2741 = vmatpush1.bf16.msra.mxu0 0
  %2742 = vmatprep.subr.bf16.mxu0 0
  %2743 = vmatpush1.bf16.msra.mxu0 0
  %2744 = vmatprep.subr.bf16.mxu0 0
  %2745 = vmatpush1.bf16.msra.mxu0 0
  %2746 = vmatprep.subr.bf16.mxu0 0
  %2747 = vmatpush1.bf16.msra.mxu0 0
  %2748 = vmatprep.subr.bf16.mxu0 0
  %2749 = vmatpush1.bf16.msra.mxu0 0
  %2750 = vmatprep.subr.bf16.mxu0 0
  %2751 = vmatpush1.bf16.msra.mxu0 0
  %2752 = vmatprep.subr.bf16.mxu0 0
  %2753 = vmatpush1.bf16.msra.mxu0 0
  %2754 = vmatprep.subr.bf16.mxu0 0
  %2755 = vmatpush1.bf16.msra.mxu0 0
  %2756 = vmatprep.subr.bf16.mxu0 0
  %2757 = vmatpush1.bf16.msra.mxu0 0
  %2758 = vmatprep.subr.bf16.mxu0 0
  %2759 = vmatpush1.bf16.msra.mxu0 0
  %2760 = vmatprep.subr.bf16.mxu0 0
  %2761 = vmatpush1.bf16.msra.mxu0 0
  %2762 = vmatprep.subr.bf16.mxu0 0
  %2763 = vmatpush1.bf16.msra.mxu0 0
  %2764 = vmatprep.mubr.bf16.mxu0 0
  %2765 = vmatmul.mubr.bf16.gmra.mrb[0].mxu0 %v2443
  %v2766 = vpop.f32.mrb[0].mxu0
  %v2767 = vadd.f32 %v2726, %v2766
  %v2768 = vpop.f32.mrb[0].mxu0
  %v2769 = vadd.f32 %v2728, %v2768
  %v2770 = vpop.f32.mrb[0].mxu0
  %v2771 = vpop.f32.mrb[0].mxu0
  %2772 = vdwg.mxu0
  %2773 = vmatprep.subr.bf16.mxu0 %v1662
  %2774 = vmatpush1.bf16.msra.mxu0 %v1661
  %2775 = vmatprep.subr.bf16.mxu0 %v1670
  %2776 = vmatpush1.bf16.msra.mxu0 %v1669
  %2777 = vmatprep.subr.bf16.mxu0 %v1678
  %2778 = vmatpush1.bf16.msra.mxu0 %v1677
  %2779 = vmatprep.subr.bf16.mxu0 %v1686
  %2780 = vmatpush1.bf16.msra.mxu0 %v1685
  %2781 = vmatprep.subr.bf16.mxu0 %v1694
  %2782 = vmatpush1.bf16.msra.mxu0 %v1693
  %2783 = vmatprep.subr.bf16.mxu0 %v1702
  %2784 = vmatpush1.bf16.msra.mxu0 %v1701
  %2785 = vmatprep.subr.bf16.mxu0 %v1710
  %2786 = vmatpush1.bf16.msra.mxu0 %v1709
  %2787 = vmatprep.subr.bf16.mxu0 %v1718
  %2788 = vmatpush1.bf16.msra.mxu0 %v1717
  %2789 = vmatprep.subr.bf16.mxu0 %v1726
  %2790 = vmatpush1.bf16.msra.mxu0 %v1725
  %2791 = vmatprep.subr.bf16.mxu0 %v1734
  %2792 = vmatpush1.bf16.msra.mxu0 %v1733
  %2793 = vmatprep.subr.bf16.mxu0 %v1742
  %2794 = vmatpush1.bf16.msra.mxu0 %v1741
  %2795 = vmatprep.subr.bf16.mxu0 %v1750
  %2796 = vmatpush1.bf16.msra.mxu0 %v1749
  %2797 = vmatprep.subr.bf16.mxu0 %v1758
  %2798 = vmatpush1.bf16.msra.mxu0 %v1757
  %2799 = vmatprep.subr.bf16.mxu0 %v1766
  %2800 = vmatpush1.bf16.msra.mxu0 %v1765
  %2801 = vmatprep.subr.bf16.mxu0 %v1774
  %2802 = vmatpush1.bf16.msra.mxu0 %v1773
  %2803 = vmatprep.subr.bf16.mxu0 %v1782
  %2804 = vmatpush1.bf16.msra.mxu0 %v1781
  %2805 = vmatprep.mubr.bf16.mxu0 %v41
  %2806 = vmatmul.mubr.bf16.gmra.mrb[0].mxu0 %v40
  %v2807 = vpop.f32.mrb[0].mxu0
  %v2808 = vadd.f32 %v460, %v2807
  %v2809 = vpop.f32.mrb[0].mxu0
  %v2810 = vadd.f32 %v464, %v2809
  %v2811 = vpop.f32.mrb[0].mxu0
  %v2812 = vpop.f32.mrb[0].mxu0
  %2813 = vdwg.mxu0
  %2814 = vmatprep.subr.bf16.mxu0 %v1790
  %2815 = vmatpush1.bf16.msra.mxu0 %v1789
  %2816 = vmatprep.subr.bf16.mxu0 %v1798
  %2817 = vmatpush1.bf16.msra.mxu0 %v1797
  %2818 = vmatprep.subr.bf16.mxu0 %v1806
  %2819 = vmatpush1.bf16.msra.mxu0 %v1805
  %2820 = vmatprep.subr.bf16.mxu0 %v1814
  %2821 = vmatpush1.bf16.msra.mxu0 %v1813
  %2822 = vmatprep.subr.bf16.mxu0 %v1822
  %2823 = vmatpush1.bf16.msra.mxu0 %v1821
  %2824 = vmatprep.subr.bf16.mxu0 %v1830
  %2825 = vmatpush1.bf16.msra.mxu0 %v1829
  %2826 = vmatprep.subr.bf16.mxu0 %v1838
  %2827 = vmatpush1.bf16.msra.mxu0 %v1837
  %2828 = vmatprep.subr.bf16.mxu0 %v1846
  %2829 = vmatpush1.bf16.msra.mxu0 %v1845
  %2830 = vmatprep.subr.bf16.mxu0 %v1854
  %2831 = vmatpush1.bf16.msra.mxu0 %v1853
  %2832 = vmatprep.subr.bf16.mxu0 %v1862
  %2833 = vmatpush1.bf16.msra.mxu0 %v1861
  %2834 = vmatprep.subr.bf16.mxu0 %v1870
  %2835 = vmatpush1.bf16.msra.mxu0 %v1869
  %2836 = vmatprep.subr.bf16.mxu0 %v1878
  %2837 = vmatpush1.bf16.msra.mxu0 %v1877
  %2838 = vmatprep.subr.bf16.mxu0 %v1886
  %2839 = vmatpush1.bf16.msra.mxu0 %v1885
  %2840 = vmatprep.subr.bf16.mxu0 %v1894
  %2841 = vmatpush1.bf16.msra.mxu0 %v1893
  %2842 = vmatprep.subr.bf16.mxu0 %v1902
  %2843 = vmatpush1.bf16.msra.mxu0 %v1901
  %2844 = vmatprep.subr.bf16.mxu0 %v1910
  %2845 = vmatpush1.bf16.msra.mxu0 %v1909
  %2846 = vmatprep.mubr.bf16.mxu0 %v43
  %2847 = vmatmul.mubr.bf16.gmra.mrb[0].mxu0 %v42
  %v2848 = vpop.f32.mrb[0].mxu0
  %v2849 = vadd.f32 %v2808, %v2848
  %v2850 = vpop.f32.mrb[0].mxu0
  %v2851 = vadd.f32 %v2810, %v2850
  %v2852 = vpop.f32.mrb[0].mxu0
  %v2853 = vpop.f32.mrb[0].mxu0
  %2854 = vdwg.mxu0
  %2855 = vmatprep.subr.bf16.mxu0 %v1918
  %2856 = vmatpush1.bf16.msra.mxu0 %v1917
  %2857 = vmatprep.subr.bf16.mxu0 %v1926
  %2858 = vmatpush1.bf16.msra.mxu0 %v1925
  %2859 = vmatprep.subr.bf16.mxu0 %v1934
  %2860 = vmatpush1.bf16.msra.mxu0 %v1933
  %2861 = vmatprep.subr.bf16.mxu0 %v1942
  %2862 = vmatpush1.bf16.msra.mxu0 %v1941
  %2863 = vmatprep.subr.bf16.mxu0 %v1950
  %2864 = vmatpush1.bf16.msra.mxu0 %v1949
  %2865 = vmatprep.subr.bf16.mxu0 %v1958
  %2866 = vmatpush1.bf16.msra.mxu0 %v1957
  %2867 = vmatprep.subr.bf16.mxu0 %v1966
  %2868 = vmatpush1.bf16.msra.mxu0 %v1965
  %2869 = vmatprep.subr.bf16.mxu0 %v1974
  %2870 = vmatpush1.bf16.msra.mxu0 %v1973
  %2871 = vmatprep.subr.bf16.mxu0 %v1982
  %2872 = vmatpush1.bf16.msra.mxu0 %v1981
  %2873 = vmatprep.subr.bf16.mxu0 %v1990
  %2874 = vmatpush1.bf16.msra.mxu0 %v1989
  %2875 = vmatprep.subr.bf16.mxu0 %v1998
  %2876 = vmatpush1.bf16.msra.mxu0 %v1997
  %2877 = vmatprep.subr.bf16.mxu0 %v2006
  %2878 = vmatpush1.bf16.msra.mxu0 %v2005
  %2879 = vmatprep.subr.bf16.mxu0 %v2014
  %2880 = vmatpush1.bf16.msra.mxu0 %v2013
  %2881 = vmatprep.subr.bf16.mxu0 %v2022
  %2882 = vmatpush1.bf16.msra.mxu0 %v2021
  %2883 = vmatprep.subr.bf16.mxu0 %v2030
  %2884 = vmatpush1.bf16.msra.mxu0 %v2029
  %2885 = vmatprep.subr.bf16.mxu0 %v2038
  %2886 = vmatpush1.bf16.msra.mxu0 %v2037
  %2887 = vmatprep.mubr.bf16.mxu0 %v45
  %2888 = vmatmul.mubr.bf16.gmra.mrb[0].mxu0 %v44
  %v2889 = vpop.f32.mrb[0].mxu0
  %v2890 = vadd.f32 %v2849, %v2889
  %v2891 = vpop.f32.mrb[0].mxu0
  %v2892 = vadd.f32 %v2851, %v2891
  %v2893 = vpop.f32.mrb[0].mxu0
  %v2894 = vpop.f32.mrb[0].mxu0
  %2895 = vdwg.mxu0
  %2896 = vmatprep.subr.bf16.mxu0 %v2046
  %2897 = vmatpush1.bf16.msra.mxu0 %v2045
  %2898 = vmatprep.subr.bf16.mxu0 0
  %2899 = vmatpush1.bf16.msra.mxu0 0
  %2900 = vmatprep.subr.bf16.mxu0 0
  %2901 = vmatpush1.bf16.msra.mxu0 0
  %2902 = vmatprep.subr.bf16.mxu0 0
  %2903 = vmatpush1.bf16.msra.mxu0 0
  %2904 = vmatprep.subr.bf16.mxu0 0
  %2905 = vmatpush1.bf16.msra.mxu0 0
  %2906 = vmatprep.subr.bf16.mxu0 0
  %2907 = vmatpush1.bf16.msra.mxu0 0
  %2908 = vmatprep.subr.bf16.mxu0 0
  %2909 = vmatpush1.bf16.msra.mxu0 0
  %2910 = vmatprep.subr.bf16.mxu0 0
  %2911 = vmatpush1.bf16.msra.mxu0 0
  %2912 = vmatprep.subr.bf16.mxu0 0
  %2913 = vmatpush1.bf16.msra.mxu0 0
  %2914 = vmatprep.subr.bf16.mxu0 0
  %2915 = vmatpush1.bf16.msra.mxu0 0
  %2916 = vmatprep.subr.bf16.mxu0 0
  %2917 = vmatpush1.bf16.msra.mxu0 0
  %2918 = vmatprep.subr.bf16.mxu0 0
  %2919 = vmatpush1.bf16.msra.mxu0 0
  %2920 = vmatprep.subr.bf16.mxu0 0
  %2921 = vmatpush1.bf16.msra.mxu0 0
  %2922 = vmatprep.subr.bf16.mxu0 0
  %2923 = vmatpush1.bf16.msra.mxu0 0
  %2924 = vmatprep.subr.bf16.mxu0 0
  %2925 = vmatpush1.bf16.msra.mxu0 0
  %2926 = vmatprep.subr.bf16.mxu0 0
  %2927 = vmatpush1.bf16.msra.mxu0 0
  %2928 = vmatprep.mubr.bf16.mxu0 0
  %2929 = vmatmul.mubr.bf16.gmra.mrb[0].mxu0 %v2443
  %v2930 = vpop.f32.mrb[0].mxu0
  %v2931 = vadd.f32 %v2890, %v2930
  %v2932 = vpop.f32.mrb[0].mxu0
  %v2933 = vadd.f32 %v2892, %v2932
  %v2934 = vpop.f32.mrb[0].mxu0
  %v2935 = vpop.f32.mrb[0].mxu0
  %2936 = vdwg.mxu0
  %2937 = vmatprep.subr.bf16.mxu0 %v1664
  %2938 = vmatpush1.bf16.msra.mxu0 %v1663
  %2939 = vmatprep.subr.bf16.mxu0 %v1672
  %2940 = vmatpush1.bf16.msra.mxu0 %v1671
  %2941 = vmatprep.subr.bf16.mxu0 %v1680
  %2942 = vmatpush1.bf16.msra.mxu0 %v1679
  %2943 = vmatprep.subr.bf16.mxu0 %v1688
  %2944 = vmatpush1.bf16.msra.mxu0 %v1687
  %2945 = vmatprep.subr.bf16.mxu0 %v1696
  %2946 = vmatpush1.bf16.msra.mxu0 %v1695
  %2947 = vmatprep.subr.bf16.mxu0 %v1704
  %2948 = vmatpush1.bf16.msra.mxu0 %v1703
  %2949 = vmatprep.subr.bf16.mxu0 %v1712
  %2950 = vmatpush1.bf16.msra.mxu0 %v1711
  %2951 = vmatprep.subr.bf16.mxu0 %v1720
  %2952 = vmatpush1.bf16.msra.mxu0 %v1719
  %2953 = vmatprep.subr.bf16.mxu0 %v1728
  %2954 = vmatpush1.bf16.msra.mxu0 %v1727
  %2955 = vmatprep.subr.bf16.mxu0 %v1736
  %2956 = vmatpush1.bf16.msra.mxu0 %v1735
  %2957 = vmatprep.subr.bf16.mxu0 %v1744
  %2958 = vmatpush1.bf16.msra.mxu0 %v1743
  %2959 = vmatprep.subr.bf16.mxu0 %v1752
  %2960 = vmatpush1.bf16.msra.mxu0 %v1751
  %2961 = vmatprep.subr.bf16.mxu0 %v1760
  %2962 = vmatpush1.bf16.msra.mxu0 %v1759
  %2963 = vmatprep.subr.bf16.mxu0 %v1768
  %2964 = vmatpush1.bf16.msra.mxu0 %v1767
  %2965 = vmatprep.subr.bf16.mxu0 %v1776
  %2966 = vmatpush1.bf16.msra.mxu0 %v1775
  %2967 = vmatprep.subr.bf16.mxu0 %v1784
  %2968 = vmatpush1.bf16.msra.mxu0 %v1783
  %2969 = vmatprep.mubr.bf16.mxu0 %v41
  %2970 = vmatmul.mubr.bf16.gmra.mrb[0].mxu0 %v40
  %v2971 = vpop.f32.mrb[0].mxu0
  %v2972 = vadd.f32 %v468, %v2971
  %v2973 = vpop.f32.mrb[0].mxu0
  %v2974 = vadd.f32 %v472, %v2973
  %v2975 = vpop.f32.mrb[0].mxu0
  %v2976 = vpop.f32.mrb[0].mxu0
  %2977 = vdwg.mxu0
  %2978 = vmatprep.subr.bf16.mxu0 %v1792
  %2979 = vmatpush1.bf16.msra.mxu0 %v1791
  %2980 = vmatprep.subr.bf16.mxu0 %v1800
  %2981 = vmatpush1.bf16.msra.mxu0 %v1799
  %2982 = vmatprep.subr.bf16.mxu0 %v1808
  %2983 = vmatpush1.bf16.msra.mxu0 %v1807
  %2984 = vmatprep.subr.bf16.mxu0 %v1816
  %2985 = vmatpush1.bf16.msra.mxu0 %v1815
  %2986 = vmatprep.subr.bf16.mxu0 %v1824
  %2987 = vmatpush1.bf16.msra.mxu0 %v1823
  %2988 = vmatprep.subr.bf16.mxu0 %v1832
  %2989 = vmatpush1.bf16.msra.mxu0 %v1831
  %2990 = vmatprep.subr.bf16.mxu0 %v1840
  %2991 = vmatpush1.bf16.msra.mxu0 %v1839
  %2992 = vmatprep.subr.bf16.mxu0 %v1848
  %2993 = vmatpush1.bf16.msra.mxu0 %v1847
  %2994 = vmatprep.subr.bf16.mxu0 %v1856
  %2995 = vmatpush1.bf16.msra.mxu0 %v1855
  %2996 = vmatprep.subr.bf16.mxu0 %v1864
  %2997 = vmatpush1.bf16.msra.mxu0 %v1863
  %2998 = vmatprep.subr.bf16.mxu0 %v1872
  %2999 = vmatpush1.bf16.msra.mxu0 %v1871
  %3000 = vmatprep.subr.bf16.mxu0 %v1880
  %3001 = vmatpush1.bf16.msra.mxu0 %v1879
  %3002 = vmatprep.subr.bf16.mxu0 %v1888
  %3003 = vmatpush1.bf16.msra.mxu0 %v1887
  %3004 = vmatprep.subr.bf16.mxu0 %v1896
  %3005 = vmatpush1.bf16.msra.mxu0 %v1895
  %3006 = vmatprep.subr.bf16.mxu0 %v1904
  %3007 = vmatpush1.bf16.msra.mxu0 %v1903
  %3008 = vmatprep.subr.bf16.mxu0 %v1912
  %3009 = vmatpush1.bf16.msra.mxu0 %v1911
  %3010 = vmatprep.mubr.bf16.mxu0 %v43
  %3011 = vmatmul.mubr.bf16.gmra.mrb[0].mxu0 %v42
  %v3012 = vpop.f32.mrb[0].mxu0
  %v3013 = vadd.f32 %v2972, %v3012
  %v3014 = vpop.f32.mrb[0].mxu0
  %v3015 = vadd.f32 %v2974, %v3014
  %v3016 = vpop.f32.mrb[0].mxu0
  %v3017 = vpop.f32.mrb[0].mxu0
  %3018 = vdwg.mxu0
  %3019 = vmatprep.subr.bf16.mxu0 %v1920
  %3020 = vmatpush1.bf16.msra.mxu0 %v1919
  %3021 = vmatprep.subr.bf16.mxu0 %v1928
  %3022 = vmatpush1.bf16.msra.mxu0 %v1927
  %3023 = vmatprep.subr.bf16.mxu0 %v1936
  %3024 = vmatpush1.bf16.msra.mxu0 %v1935
  %3025 = vmatprep.subr.bf16.mxu0 %v1944
  %3026 = vmatpush1.bf16.msra.mxu0 %v1943
  %3027 = vmatprep.subr.bf16.mxu0 %v1952
  %3028 = vmatpush1.bf16.msra.mxu0 %v1951
  %3029 = vmatprep.subr.bf16.mxu0 %v1960
  %3030 = vmatpush1.bf16.msra.mxu0 %v1959
  %3031 = vmatprep.subr.bf16.mxu0 %v1968
  %3032 = vmatpush1.bf16.msra.mxu0 %v1967
  %3033 = vmatprep.subr.bf16.mxu0 %v1976
  %3034 = vmatpush1.bf16.msra.mxu0 %v1975
  %3035 = vmatprep.subr.bf16.mxu0 %v1984
  %3036 = vmatpush1.bf16.msra.mxu0 %v1983
  %3037 = vmatprep.subr.bf16.mxu0 %v1992
  %3038 = vmatpush1.bf16.msra.mxu0 %v1991
  %3039 = vmatprep.subr.bf16.mxu0 %v2000
  %3040 = vmatpush1.bf16.msra.mxu0 %v1999
  %3041 = vmatprep.subr.bf16.mxu0 %v2008
  %3042 = vmatpush1.bf16.msra.mxu0 %v2007
  %3043 = vmatprep.subr.bf16.mxu0 %v2016
  %3044 = vmatpush1.bf16.msra.mxu0 %v2015
  %3045 = vmatprep.subr.bf16.mxu0 %v2024
  %3046 = vmatpush1.bf16.msra.mxu0 %v2023
  %3047 = vmatprep.subr.bf16.mxu0 %v2032
  %3048 = vmatpush1.bf16.msra.mxu0 %v2031
  %3049 = vmatprep.subr.bf16.mxu0 %v2040
  %3050 = vmatpush1.bf16.msra.mxu0 %v2039
  %3051 = vmatprep.mubr.bf16.mxu0 %v45
  %3052 = vmatmul.mubr.bf16.gmra.mrb[0].mxu0 %v44
  %v3053 = vpop.f32.mrb[0].mxu0
  %v3054 = vadd.f32 %v3013, %v3053
  %v3055 = vpop.f32.mrb[0].mxu0
  %v3056 = vadd.f32 %v3015, %v3055
  %v3057 = vpop.f32.mrb[0].mxu0
  %v3058 = vpop.f32.mrb[0].mxu0
  %3059 = vdwg.mxu0
  %3060 = vmatprep.subr.bf16.mxu0 %v2048
  %3061 = vmatpush1.bf16.msra.mxu0 %v2047
  %3062 = vmatprep.subr.bf16.mxu0 0
  %3063 = vmatpush1.bf16.msra.mxu0 0
  %3064 = vmatprep.subr.bf16.mxu0 0
  %3065 = vmatpush1.bf16.msra.mxu0 0
  %3066 = vmatprep.subr.bf16.mxu0 0
  %3067 = vmatpush1.bf16.msra.mxu0 0
  %3068 = vmatprep.subr.bf16.mxu0 0
  %3069 = vmatpush1.bf16.msra.mxu0 0
  %3070 = vmatprep.subr.bf16.mxu0 0
  %3071 = vmatpush1.bf16.msra.mxu0 0
  %3072 = vmatprep.subr.bf16.mxu0 0
  %3073 = vmatpush1.bf16.msra.mxu0 0
  %3074 = vmatprep.subr.bf16.mxu0 0
  %3075 = vmatpush1.bf16.msra.mxu0 0
  %3076 = vmatprep.subr.bf16.mxu0 0
  %3077 = vmatpush1.bf16.msra.mxu0 0
  %3078 = vmatprep.subr.bf16.mxu0 0
  %3079 = vmatpush1.bf16.msra.mxu0 0
  %3080 = vmatprep.subr.bf16.mxu0 0
  %3081 = vmatpush1.bf16.msra.mxu0 0
  %3082 = vmatprep.subr.bf16.mxu0 0
  %3083 = vmatpush1.bf16.msra.mxu0 0
  %3084 = vmatprep.subr.bf16.mxu0 0
  %3085 = vmatpush1.bf16.msra.mxu0 0
  %3086 = vmatprep.subr.bf16.mxu0 0
  %3087 = vmatpush1.bf16.msra.mxu0 0
  %3088 = vmatprep.subr.bf16.mxu0 0
  %3089 = vmatpush1.bf16.msra.mxu0 0
  %3090 = vmatprep.subr.bf16.mxu0 0
  %3091 = vmatpush1.bf16.msra.mxu0 0
  %3092 = vmatprep.mubr.bf16.mxu0 0
  %3093 = vmatmul.mubr.bf16.gmra.mrb[0].mxu0 %v2443
  %v3094 = vpop.f32.mrb[0].mxu0
  %v3095 = vadd.f32 %v3054, %v3094
  %v3096 = vpop.f32.mrb[0].mxu0
  %v3097 = vadd.f32 %v3056, %v3096
  %v3098 = vpop.f32.mrb[0].mxu0
  %v3099 = vpop.f32.mrb[0].mxu0
  %3100 = vdwg.mxu0
  %v3101 = vmul.f32 %v2603, 0.2
  %v3102 = vmul.f32 %v2605, 0.2
  %v3103 = vmul.f32 %v2767, 0.2
  %v3104 = vmul.f32 %v2769, 0.2
  %v3105 = vmul.f32 %v2931, 0.2
  %v3106 = vmul.f32 %v2933, 0.2
  %v3107 = vmul.f32 %v3095, 0.2
  %v3108 = vmul.f32 %v3097, 0.2
  %v3109 = vmax.f32 %v2603, %v3101
  %v3110 = vmax.f32 %v2605, %v3102
  %v3111 = vmax.f32 %v2767, %v3103
  %v3112 = vmax.f32 %v2769, %v3104
  %v3113 = vmax.f32 %v2931, %v3105
  %v3114 = vmax.f32 %v2933, %v3106
  %v3115 = vmax.f32 %v3095, %v3107
  %v3116 = vmax.f32 %v3097, %v3108
  %v3117 = vpack.c.bf16 %v3109, %v3109
  %v3118 = vpack.c.bf16 %v3110, %v3110
  %v3119 = vpack.c.bf16 %v3111, %v3111
  %v3120 = vpack.c.bf16 %v3112, %v3112
  %v3121 = vpack.c.bf16 %v3113, %v3113
  %v3122 = vpack.c.bf16 %v3114, %v3114
  %v3123 = vpack.c.bf16 %v3115, %v3115
  %v3124 = vpack.c.bf16 %v3116, %v3116
  %v3125 = vld [vmem:[%s3] sm:$0xff]
  %v3126 = vld [vmem:[%s3 + $0x8] sm:$0xff]
  %v3127 = vld [vmem:[%s3 + $0x10] sm:$0xff]
  %v3128 = vld [vmem:[%s3 + $0x18] sm:$0xff]
  %v3129 = vld [vmem:[%s3 + $0x20] sm:$0xff]
  %v3130 = vld [vmem:[%s3 + $0x28] sm:$0xff]
  %v3131 = vld [vmem:[%s3 + $0x30] sm:$0xff]
  %v3132 = vld [vmem:[%s3 + $0x38] sm:$0xff]
  %v3133 = vld [vmem:[%s3 + $0x40] sm:$0xff]
  %v3134 = vld [vmem:[%s3 + $0x48] sm:$0xff]
  %v3135 = vld [vmem:[%s3 + $0x50] sm:$0xff]
  %v3136 = vld [vmem:[%s3 + $0x58] sm:$0xff]
  %v3137 = vld [vmem:[%s3 + $0x60] sm:$0xff]
  %v3138 = vld [vmem:[%s3 + $0x68] sm:$0xff]
  %v3139 = vld [vmem:[%s3 + $0x70] sm:$0xff]
  %v3140 = vld [vmem:[%s3 + $0x78] sm:$0xff]
  %v3141 = vld [vmem:[%s3 + $0x80] sm:$0xff]
  %v3142 = vld [vmem:[%s3 + $0x88] sm:$0xff]
  %v3143 = vld [vmem:[%s3 + $0x90] sm:$0xff]
  %v3144 = vld [vmem:[%s3 + $0x98] sm:$0xff]
  %v3145 = vld [vmem:[%s3 + $0xa0] sm:$0xff]
  %v3146 = vld [vmem:[%s3 + $0xa8] sm:$0xff]
  %v3147 = vld [vmem:[%s3 + $0xb0] sm:$0xff]
  %v3148 = vld [vmem:[%s3 + $0xb8] sm:$0xff]
  %v3149 = vld [vmem:[%s3 + $0xc0] sm:$0xff]
  %v3150 = vld [vmem:[%s3 + $0xc8] sm:$0xff]
  %v3151 = vld [vmem:[%s3 + $0xd0] sm:$0xff]
  %v3152 = vld [vmem:[%s3 + $0xd8] sm:$0xff]
  %v3153 = vld [vmem:[%s3 + $0xe0] sm:$0xff]
  %v3154 = vld [vmem:[%s3 + $0xe8] sm:$0xff]
  %v3155 = vld [vmem:[%s3 + $0xf0] sm:$0xff]
  %v3156 = vld [vmem:[%s3 + $0xf8] sm:$0xff]
  %v3157 = vld [vmem:[%s3 + $0x100] sm:$0xff]
  %v3158 = vld [vmem:[%s3 + $0x108] sm:$0xff]
  %v3159 = vld [vmem:[%s3 + $0x110] sm:$0xff]
  %v3160 = vld [vmem:[%s3 + $0x118] sm:$0xff]
  %v3161 = vld [vmem:[%s3 + $0x120] sm:$0xff]
  %v3162 = vld [vmem:[%s3 + $0x128] sm:$0xff]
  %v3163 = vld [vmem:[%s3 + $0x130] sm:$0xff]
  %v3164 = vld [vmem:[%s3 + $0x138] sm:$0xff]
  %v3165 = vld [vmem:[%s3 + $0x140] sm:$0xff]
  %v3166 = vld [vmem:[%s3 + $0x148] sm:$0xff]
  %v3167 = vld [vmem:[%s3 + $0x150] sm:$0xff]
  %v3168 = vld [vmem:[%s3 + $0x158] sm:$0xff]
  %v3169 = vld [vmem:[%s3 + $0x160] sm:$0xff]
  %v3170 = vld [vmem:[%s3 + $0x168] sm:$0xff]
  %v3171 = vld [vmem:[%s3 + $0x170] sm:$0xff]
  %v3172 = vld [vmem:[%s3 + $0x178] sm:$0xff]
  %v3173 = vld [vmem:[%s3 + $0x180] sm:$0xff]
  %v3174 = vld [vmem:[%s3 + $0x188] sm:$0xff]
  %v3175 = vld [vmem:[%s3 + $0x190] sm:$0xff]
  %v3176 = vld [vmem:[%s3 + $0x198] sm:$0xff]
  %v3177 = vld [vmem:[%s3 + $0x1a0] sm:$0xff]
  %v3178 = vld [vmem:[%s3 + $0x1a8] sm:$0xff]
  %v3179 = vld [vmem:[%s3 + $0x1b0] sm:$0xff]
  %v3180 = vld [vmem:[%s3 + $0x1b8] sm:$0xff]
  %v3181 = vld [vmem:[%s3 + $0x1c0] sm:$0xff]
  %v3182 = vld [vmem:[%s3 + $0x1c8] sm:$0xff]
  %v3183 = vld [vmem:[%s3 + $0x1d0] sm:$0xff]
  %v3184 = vld [vmem:[%s3 + $0x1d8] sm:$0xff]
  %v3185 = vld [vmem:[%s3 + $0x1e0] sm:$0xff]
  %v3186 = vld [vmem:[%s3 + $0x1e8] sm:$0xff]
  %v3187 = vld [vmem:[%s3 + $0x1f0] sm:$0xff]
  %v3188 = vld [vmem:[%s3 + $0x1f8] sm:$0xff]
  %v3189 = vld [vmem:[%s3 + $0x200] sm:$0xff]
  %v3190 = vld [vmem:[%s3 + $0x208] sm:$0xff]
  %v3191 = vld [vmem:[%s3 + $0x210] sm:$0xff]
  %v3192 = vld [vmem:[%s3 + $0x218] sm:$0xff]
  %v3193 = vld [vmem:[%s3 + $0x220] sm:$0xff]
  %v3194 = vld [vmem:[%s3 + $0x228] sm:$0xff]
  %v3195 = vld [vmem:[%s3 + $0x230] sm:$0xff]
  %v3196 = vld [vmem:[%s3 + $0x238] sm:$0xff]
  %v3197 = vld [vmem:[%s3 + $0x240] sm:$0xff]
  %v3198 = vld [vmem:[%s3 + $0x248] sm:$0xff]
  %v3199 = vld [vmem:[%s3 + $0x250] sm:$0xff]
  %v3200 = vld [vmem:[%s3 + $0x258] sm:$0xff]
  %v3201 = vld [vmem:[%s3 + $0x260] sm:$0xff]
  %v3202 = vld [vmem:[%s3 + $0x268] sm:$0xff]
  %v3203 = vld [vmem:[%s3 + $0x270] sm:$0xff]
  %v3204 = vld [vmem:[%s3 + $0x278] sm:$0xff]
  %v3205 = vld [vmem:[%s3 + $0x280] sm:$0xff]
  %v3206 = vld [vmem:[%s3 + $0x288] sm:$0xff]
  %v3207 = vld [vmem:[%s3 + $0x290] sm:$0xff]
  %v3208 = vld [vmem:[%s3 + $0x298] sm:$0xff]
  %v3209 = vld [vmem:[%s3 + $0x2a0] sm:$0xff]
  %v3210 = vld [vmem:[%s3 + $0x2a8] sm:$0xff]
  %v3211 = vld [vmem:[%s3 + $0x2b0] sm:$0xff]
  %v3212 = vld [vmem:[%s3 + $0x2b8] sm:$0xff]
  %v3213 = vld [vmem:[%s3 + $0x2c0] sm:$0xff]
  %v3214 = vld [vmem:[%s3 + $0x2c8] sm:$0xff]
  %v3215 = vld [vmem:[%s3 + $0x2d0] sm:$0xff]
  %v3216 = vld [vmem:[%s3 + $0x2d8] sm:$0xff]
  %v3217 = vld [vmem:[%s3 + $0x2e0] sm:$0xff]
  %v3218 = vld [vmem:[%s3 + $0x2e8] sm:$0xff]
  %v3219 = vld [vmem:[%s3 + $0x2f0] sm:$0xff]
  %v3220 = vld [vmem:[%s3 + $0x2f8] sm:$0xff]
  %v3221 = vld [vmem:[%s3 + $0x300] sm:$0xff]
  %v3222 = vld [vmem:[%s3 + $0x308] sm:$0xff]
  %v3223 = vld [vmem:[%s3 + $0x310] sm:$0xff]
  %v3224 = vld [vmem:[%s3 + $0x318] sm:$0xff]
  %v3225 = vld [vmem:[%s3 + $0x320] sm:$0xff]
  %v3226 = vld [vmem:[%s3 + $0x328] sm:$0xff]
  %v3227 = vld [vmem:[%s3 + $0x330] sm:$0xff]
  %v3228 = vld [vmem:[%s3 + $0x338] sm:$0xff]
  %v3229 = vld [vmem:[%s3 + $0x340] sm:$0xff]
  %v3230 = vld [vmem:[%s3 + $0x348] sm:$0xff]
  %v3231 = vld [vmem:[%s3 + $0x350] sm:$0xff]
  %v3232 = vld [vmem:[%s3 + $0x358] sm:$0xff]
  %v3233 = vld [vmem:[%s3 + $0x360] sm:$0xff]
  %v3234 = vld [vmem:[%s3 + $0x368] sm:$0xff]
  %v3235 = vld [vmem:[%s3 + $0x370] sm:$0xff]
  %v3236 = vld [vmem:[%s3 + $0x378] sm:$0xff]
  %v3237 = vld [vmem:[%s3 + $0x380] sm:$0xff]
  %v3238 = vld [vmem:[%s3 + $0x388] sm:$0xff]
  %v3239 = vld [vmem:[%s3 + $0x390] sm:$0xff]
  %v3240 = vld [vmem:[%s3 + $0x398] sm:$0xff]
  %v3241 = vld [vmem:[%s3 + $0x3a0] sm:$0xff]
  %v3242 = vld [vmem:[%s3 + $0x3a8] sm:$0xff]
  %v3243 = vld [vmem:[%s3 + $0x3b0] sm:$0xff]
  %v3244 = vld [vmem:[%s3 + $0x3b8] sm:$0xff]
  %v3245 = vld [vmem:[%s3 + $0x3c0] sm:$0xff]
  %v3246 = vld [vmem:[%s3 + $0x3c8] sm:$0xff]
  %v3247 = vld [vmem:[%s3 + $0x3d0] sm:$0xff]
  %v3248 = vld [vmem:[%s3 + $0x3d8] sm:$0xff]
  %v3249 = vld [vmem:[%s3 + $0x3e0] sm:$0xff]
  %v3250 = vld [vmem:[%s3 + $0x3e8] sm:$0xff]
  %v3251 = vld [vmem:[%s3 + $0x3f0] sm:$0xff]
  %v3252 = vld [vmem:[%s3 + $0x3f8] sm:$0xff]
  %v3253 = vld [vmem:[%s3 + $0x400] sm:$0xff]
  %v3254 = vld [vmem:[%s3 + $0x408] sm:$0xff]
  %v3255 = vld [vmem:[%s3 + $0x410] sm:$0xff]
  %v3256 = vld [vmem:[%s3 + $0x418] sm:$0xff]
  %v3257 = vld [vmem:[%s3 + $0x420] sm:$0xff]
  %v3258 = vld [vmem:[%s3 + $0x428] sm:$0xff]
  %v3259 = vld [vmem:[%s3 + $0x430] sm:$0xff]
  %v3260 = vld [vmem:[%s3 + $0x438] sm:$0xff]
  %v3261 = vld [vmem:[%s3 + $0x440] sm:$0xff]
  %v3262 = vld [vmem:[%s3 + $0x448] sm:$0xff]
  %v3263 = vld [vmem:[%s3 + $0x450] sm:$0xff]
  %v3264 = vld [vmem:[%s3 + $0x458] sm:$0xff]
  %v3265 = vld [vmem:[%s3 + $0x460] sm:$0xff]
  %v3266 = vld [vmem:[%s3 + $0x468] sm:$0xff]
  %v3267 = vld [vmem:[%s3 + $0x470] sm:$0xff]
  %v3268 = vld [vmem:[%s3 + $0x478] sm:$0xff]
  %v3269 = vld [vmem:[%s3 + $0x480] sm:$0xff]
  %v3270 = vld [vmem:[%s3 + $0x488] sm:$0xff]
  %v3271 = vld [vmem:[%s3 + $0x490] sm:$0xff]
  %v3272 = vld [vmem:[%s3 + $0x498] sm:$0xff]
  %v3273 = vld [vmem:[%s3 + $0x4a0] sm:$0xff]
  %v3274 = vld [vmem:[%s3 + $0x4a8] sm:$0xff]
  %v3275 = vld [vmem:[%s3 + $0x4b0] sm:$0xff]
  %v3276 = vld [vmem:[%s3 + $0x4b8] sm:$0xff]
  %v3277 = vld [vmem:[%s3 + $0x4c0] sm:$0xff]
  %v3278 = vld [vmem:[%s3 + $0x4c8] sm:$0xff]
  %v3279 = vld [vmem:[%s3 + $0x4d0] sm:$0xff]
  %v3280 = vld [vmem:[%s3 + $0x4d8] sm:$0xff]
  %v3281 = vld [vmem:[%s3 + $0x4e0] sm:$0xff]
  %v3282 = vld [vmem:[%s3 + $0x4e8] sm:$0xff]
  %v3283 = vld [vmem:[%s3 + $0x4f0] sm:$0xff]
  %v3284 = vld [vmem:[%s3 + $0x4f8] sm:$0xff]
  %v3285 = vld [vmem:[%s3 + $0x500] sm:$0xff]
  %v3286 = vld [vmem:[%s3 + $0x508] sm:$0xff]
  %v3287 = vld [vmem:[%s3 + $0x510] sm:$0xff]
  %v3288 = vld [vmem:[%s3 + $0x518] sm:$0xff]
  %v3289 = vld [vmem:[%s3 + $0x520] sm:$0xff]
  %v3290 = vld [vmem:[%s3 + $0x528] sm:$0xff]
  %v3291 = vld [vmem:[%s3 + $0x530] sm:$0xff]
  %v3292 = vld [vmem:[%s3 + $0x538] sm:$0xff]
  %v3293 = vld [vmem:[%s3 + $0x540] sm:$0xff]
  %v3294 = vld [vmem:[%s3 + $0x548] sm:$0xff]
  %v3295 = vld [vmem:[%s3 + $0x550] sm:$0xff]
  %v3296 = vld [vmem:[%s3 + $0x558] sm:$0xff]
  %v3297 = vld [vmem:[%s3 + $0x560] sm:$0xff]
  %v3298 = vld [vmem:[%s3 + $0x568] sm:$0xff]
  %v3299 = vld [vmem:[%s3 + $0x570] sm:$0xff]
  %v3300 = vld [vmem:[%s3 + $0x578] sm:$0xff]
  %v3301 = vld [vmem:[%s3 + $0x580] sm:$0xff]
  %v3302 = vld [vmem:[%s3 + $0x588] sm:$0xff]
  %v3303 = vld [vmem:[%s3 + $0x590] sm:$0xff]
  %v3304 = vld [vmem:[%s3 + $0x598] sm:$0xff]
  %v3305 = vld [vmem:[%s3 + $0x5a0] sm:$0xff]
  %v3306 = vld [vmem:[%s3 + $0x5a8] sm:$0xff]
  %v3307 = vld [vmem:[%s3 + $0x5b0] sm:$0xff]
  %v3308 = vld [vmem:[%s3 + $0x5b8] sm:$0xff]
  %v3309 = vld [vmem:[%s3 + $0x5c0] sm:$0xff]
  %v3310 = vld [vmem:[%s3 + $0x5c8] sm:$0xff]
  %v3311 = vld [vmem:[%s3 + $0x5d0] sm:$0xff]
  %v3312 = vld [vmem:[%s3 + $0x5d8] sm:$0xff]
  %v3313 = vld [vmem:[%s3 + $0x5e0] sm:$0xff]
  %v3314 = vld [vmem:[%s3 + $0x5e8] sm:$0xff]
  %v3315 = vld [vmem:[%s3 + $0x5f0] sm:$0xff]
  %v3316 = vld [vmem:[%s3 + $0x5f8] sm:$0xff]
  %v3317 = vld [vmem:[%s3 + $0x600] sm:$0xff]
  %v3318 = vld [vmem:[%s3 + $0x608] sm:$0xff]
  %v3319 = vld [vmem:[%s3 + $0x610] sm:$0xff]
  %v3320 = vld [vmem:[%s3 + $0x618] sm:$0xff]
  %v3321 = vld [vmem:[%s3 + $0x620] sm:$0xff]
  %v3322 = vld [vmem:[%s3 + $0x628] sm:$0xff]
  %v3323 = vld [vmem:[%s3 + $0x630] sm:$0xff]
  %v3324 = vld [vmem:[%s3 + $0x638] sm:$0xff]
  %v3325 = vld [vmem:[%s3 + $0x640] sm:$0xff]
  %v3326 = vld [vmem:[%s3 + $0x648] sm:$0xff]
  %v3327 = vld [vmem:[%s3 + $0x650] sm:$0xff]
  %v3328 = vld [vmem:[%s3 + $0x658] sm:$0xff]
  %v3329 = vld [vmem:[%s3 + $0x660] sm:$0xff]
  %v3330 = vld [vmem:[%s3 + $0x668] sm:$0xff]
  %v3331 = vld [vmem:[%s3 + $0x670] sm:$0xff]
  %v3332 = vld [vmem:[%s3 + $0x678] sm:$0xff]
  %v3333 = vld [vmem:[%s3 + $0x680] sm:$0xff]
  %v3334 = vld [vmem:[%s3 + $0x688] sm:$0xff]
  %v3335 = vld [vmem:[%s3 + $0x690] sm:$0xff]
  %v3336 = vld [vmem:[%s3 + $0x698] sm:$0xff]
  %v3337 = vld [vmem:[%s3 + $0x6a0] sm:$0xff]
  %v3338 = vld [vmem:[%s3 + $0x6a8] sm:$0xff]
  %v3339 = vld [vmem:[%s3 + $0x6b0] sm:$0xff]
  %v3340 = vld [vmem:[%s3 + $0x6b8] sm:$0xff]
  %v3341 = vld [vmem:[%s3 + $0x6c0] sm:$0xff]
  %v3342 = vld [vmem:[%s3 + $0x6c8] sm:$0xff]
  %v3343 = vld [vmem:[%s3 + $0x6d0] sm:$0xff]
  %v3344 = vld [vmem:[%s3 + $0x6d8] sm:$0xff]
  %v3345 = vld [vmem:[%s3 + $0x6e0] sm:$0xff]
  %v3346 = vld [vmem:[%s3 + $0x6e8] sm:$0xff]
  %v3347 = vld [vmem:[%s3 + $0x6f0] sm:$0xff]
  %v3348 = vld [vmem:[%s3 + $0x6f8] sm:$0xff]
  %v3349 = vld [vmem:[%s3 + $0x700] sm:$0xff]
  %v3350 = vld [vmem:[%s3 + $0x708] sm:$0xff]
  %v3351 = vld [vmem:[%s3 + $0x710] sm:$0xff]
  %v3352 = vld [vmem:[%s3 + $0x718] sm:$0xff]
  %v3353 = vld [vmem:[%s3 + $0x720] sm:$0xff]
  %v3354 = vld [vmem:[%s3 + $0x728] sm:$0xff]
  %v3355 = vld [vmem:[%s3 + $0x730] sm:$0xff]
  %v3356 = vld [vmem:[%s3 + $0x738] sm:$0xff]
  %v3357 = vld [vmem:[%s3 + $0x740] sm:$0xff]
  %v3358 = vld [vmem:[%s3 + $0x748] sm:$0xff]
  %v3359 = vld [vmem:[%s3 + $0x750] sm:$0xff]
  %v3360 = vld [vmem:[%s3 + $0x758] sm:$0xff]
  %v3361 = vld [vmem:[%s3 + $0x760] sm:$0xff]
  %v3362 = vld [vmem:[%s3 + $0x768] sm:$0xff]
  %v3363 = vld [vmem:[%s3 + $0x770] sm:$0xff]
  %v3364 = vld [vmem:[%s3 + $0x778] sm:$0xff]
  %v3365 = vld [vmem:[%s3 + $0x780] sm:$0xff]
  %v3366 = vld [vmem:[%s3 + $0x788] sm:$0xff]
  %v3367 = vld [vmem:[%s3 + $0x790] sm:$0xff]
  %v3368 = vld [vmem:[%s3 + $0x798] sm:$0xff]
  %v3369 = vld [vmem:[%s3 + $0x7a0] sm:$0xff]
  %v3370 = vld [vmem:[%s3 + $0x7a8] sm:$0xff]
  %v3371 = vld [vmem:[%s3 + $0x7b0] sm:$0xff]
  %v3372 = vld [vmem:[%s3 + $0x7b8] sm:$0xff]
  %v3373 = vld [vmem:[%s3 + $0x7c0] sm:$0xff]
  %v3374 = vld [vmem:[%s3 + $0x7c8] sm:$0xff]
  %v3375 = vld [vmem:[%s3 + $0x7d0] sm:$0xff]
  %v3376 = vld [vmem:[%s3 + $0x7d8] sm:$0xff]
  %v3377 = vld [vmem:[%s3 + $0x7e0] sm:$0xff]
  %v3378 = vld [vmem:[%s3 + $0x7e8] sm:$0xff]
  %v3379 = vld [vmem:[%s3 + $0x7f0] sm:$0xff]
  %v3380 = vld [vmem:[%s3 + $0x7f8] sm:$0xff]
  %v3381 = vld [vmem:[%s4] sm:$0xf]
  %v3383 = vlaneseq
  %v3384 = vshrl.u32 %v3383, 7
  %v3385 = vsub.s32 0, %v3384
  %v3386 = vrot.slane %v3381, %v3385
  %v3387 = vlaneseq
  %v3388 = vshrl.u32 %v3387, 7
  %v3389 = vsub.s32 1, %v3388
  %v3390 = vrot.slane %v3381, %v3389
  %v3391 = vlaneseq
  %v3392 = vshrl.u32 %v3391, 7
  %v3393 = vsub.s32 2, %v3392
  %v3394 = vrot.slane %v3381, %v3393
  %v3395 = vlaneseq
  %v3396 = vshrl.u32 %v3395, 7
  %v3397 = vsub.s32 3, %v3396
  %v3398 = vrot.slane %v3381, %v3397
  %v3659 = vunpack.c.l.b16 %v3125
  %v3660 = vunpack.c.h.b16 %v3125
  %v3661 = vunpack.c.l.b16 %v3126
  %v3662 = vunpack.c.h.b16 %v3126
  %v3663 = vunpack.c.l.b16 %v3127
  %v3664 = vunpack.c.h.b16 %v3127
  %v3665 = vunpack.c.l.b16 %v3128
  %v3666 = vunpack.c.h.b16 %v3128
  %v3667 = vunpack.c.l.b16 %v3129
  %v3668 = vunpack.c.h.b16 %v3129
  %v3669 = vunpack.c.l.b16 %v3130
  %v3670 = vunpack.c.h.b16 %v3130
  %v3671 = vunpack.c.l.b16 %v3131
  %v3672 = vunpack.c.h.b16 %v3131
  %v3673 = vunpack.c.l.b16 %v3132
  %v3674 = vunpack.c.h.b16 %v3132
  %v3675 = vunpack.c.l.b16 %v3133
  %v3676 = vunpack.c.h.b16 %v3133
  %v3677 = vunpack.c.l.b16 %v3134
  %v3678 = vunpack.c.h.b16 %v3134
  %v3679 = vunpack.c.l.b16 %v3135
  %v3680 = vunpack.c.h.b16 %v3135
  %v3681 = vunpack.c.l.b16 %v3136
  %v3682 = vunpack.c.h.b16 %v3136
  %v3683 = vunpack.c.l.b16 %v3137
  %v3684 = vunpack.c.h.b16 %v3137
  %v3685 = vunpack.c.l.b16 %v3138
  %v3686 = vunpack.c.h.b16 %v3138
  %v3687 = vunpack.c.l.b16 %v3139
  %v3688 = vunpack.c.h.b16 %v3139
  %v3689 = vunpack.c.l.b16 %v3140
  %v3690 = vunpack.c.h.b16 %v3140
  %v3691 = vunpack.c.l.b16 %v3141
  %v3692 = vunpack.c.h.b16 %v3141
  %v3693 = vunpack.c.l.b16 %v3142
  %v3694 = vunpack.c.h.b16 %v3142
  %v3695 = vunpack.c.l.b16 %v3143
  %v3696 = vunpack.c.h.b16 %v3143
  %v3697 = vunpack.c.l.b16 %v3144
  %v3698 = vunpack.c.h.b16 %v3144
  %v3699 = vunpack.c.l.b16 %v3145
  %v3700 = vunpack.c.h.b16 %v3145
  %v3701 = vunpack.c.l.b16 %v3146
  %v3702 = vunpack.c.h.b16 %v3146
  %v3703 = vunpack.c.l.b16 %v3147
  %v3704 = vunpack.c.h.b16 %v3147
  %v3705 = vunpack.c.l.b16 %v3148
  %v3706 = vunpack.c.h.b16 %v3148
  %v3707 = vunpack.c.l.b16 %v3149
  %v3708 = vunpack.c.h.b16 %v3149
  %v3709 = vunpack.c.l.b16 %v3150
  %v3710 = vunpack.c.h.b16 %v3150
  %v3711 = vunpack.c.l.b16 %v3151
  %v3712 = vunpack.c.h.b16 %v3151
  %v3713 = vunpack.c.l.b16 %v3152
  %v3714 = vunpack.c.h.b16 %v3152
  %v3715 = vunpack.c.l.b16 %v3153
  %v3716 = vunpack.c.h.b16 %v3153
  %v3717 = vunpack.c.l.b16 %v3154
  %v3718 = vunpack.c.h.b16 %v3154
  %v3719 = vunpack.c.l.b16 %v3155
  %v3720 = vunpack.c.h.b16 %v3155
  %v3721 = vunpack.c.l.b16 %v3156
  %v3722 = vunpack.c.h.b16 %v3156
  %v3723 = vunpack.c.l.b16 %v3157
  %v3724 = vunpack.c.h.b16 %v3157
  %v3725 = vunpack.c.l.b16 %v3158
  %v3726 = vunpack.c.h.b16 %v3158
  %v3727 = vunpack.c.l.b16 %v3159
  %v3728 = vunpack.c.h.b16 %v3159
  %v3729 = vunpack.c.l.b16 %v3160
  %v3730 = vunpack.c.h.b16 %v3160
  %v3731 = vunpack.c.l.b16 %v3161
  %v3732 = vunpack.c.h.b16 %v3161
  %v3733 = vunpack.c.l.b16 %v3162
  %v3734 = vunpack.c.h.b16 %v3162
  %v3735 = vunpack.c.l.b16 %v3163
  %v3736 = vunpack.c.h.b16 %v3163
  %v3737 = vunpack.c.l.b16 %v3164
  %v3738 = vunpack.c.h.b16 %v3164
  %v3739 = vunpack.c.l.b16 %v3165
  %v3740 = vunpack.c.h.b16 %v3165
  %v3741 = vunpack.c.l.b16 %v3166
  %v3742 = vunpack.c.h.b16 %v3166
  %v3743 = vunpack.c.l.b16 %v3167
  %v3744 = vunpack.c.h.b16 %v3167
  %v3745 = vunpack.c.l.b16 %v3168
  %v3746 = vunpack.c.h.b16 %v3168
  %v3747 = vunpack.c.l.b16 %v3169
  %v3748 = vunpack.c.h.b16 %v3169
  %v3749 = vunpack.c.l.b16 %v3170
  %v3750 = vunpack.c.h.b16 %v3170
  %v3751 = vunpack.c.l.b16 %v3171
  %v3752 = vunpack.c.h.b16 %v3171
  %v3753 = vunpack.c.l.b16 %v3172
  %v3754 = vunpack.c.h.b16 %v3172
  %v3755 = vunpack.c.l.b16 %v3173
  %v3756 = vunpack.c.h.b16 %v3173
  %v3757 = vunpack.c.l.b16 %v3174
  %v3758 = vunpack.c.h.b16 %v3174
  %v3759 = vunpack.c.l.b16 %v3175
  %v3760 = vunpack.c.h.b16 %v3175
  %v3761 = vunpack.c.l.b16 %v3176
  %v3762 = vunpack.c.h.b16 %v3176
  %v3763 = vunpack.c.l.b16 %v3177
  %v3764 = vunpack.c.h.b16 %v3177
  %v3765 = vunpack.c.l.b16 %v3178
  %v3766 = vunpack.c.h.b16 %v3178
  %v3767 = vunpack.c.l.b16 %v3179
  %v3768 = vunpack.c.h.b16 %v3179
  %v3769 = vunpack.c.l.b16 %v3180
  %v3770 = vunpack.c.h.b16 %v3180
  %v3771 = vunpack.c.l.b16 %v3181
  %v3772 = vunpack.c.h.b16 %v3181
  %v3773 = vunpack.c.l.b16 %v3182
  %v3774 = vunpack.c.h.b16 %v3182
  %v3775 = vunpack.c.l.b16 %v3183
  %v3776 = vunpack.c.h.b16 %v3183
  %v3777 = vunpack.c.l.b16 %v3184
  %v3778 = vunpack.c.h.b16 %v3184
  %v3779 = vunpack.c.l.b16 %v3185
  %v3780 = vunpack.c.h.b16 %v3185
  %v3781 = vunpack.c.l.b16 %v3186
  %v3782 = vunpack.c.h.b16 %v3186
  %v3783 = vunpack.c.l.b16 %v3187
  %v3784 = vunpack.c.h.b16 %v3187
  %v3785 = vunpack.c.l.b16 %v3188
  %v3786 = vunpack.c.h.b16 %v3188
  %v3787 = vunpack.c.l.b16 %v3189
  %v3788 = vunpack.c.h.b16 %v3189
  %v3789 = vunpack.c.l.b16 %v3190
  %v3790 = vunpack.c.h.b16 %v3190
  %v3791 = vunpack.c.l.b16 %v3191
  %v3792 = vunpack.c.h.b16 %v3191
  %v3793 = vunpack.c.l.b16 %v3192
  %v3794 = vunpack.c.h.b16 %v3192
  %v3795 = vunpack.c.l.b16 %v3193
  %v3796 = vunpack.c.h.b16 %v3193
  %v3797 = vunpack.c.l.b16 %v3194
  %v3798 = vunpack.c.h.b16 %v3194
  %v3799 = vunpack.c.l.b16 %v3195
  %v3800 = vunpack.c.h.b16 %v3195
  %v3801 = vunpack.c.l.b16 %v3196
  %v3802 = vunpack.c.h.b16 %v3196
  %v3803 = vunpack.c.l.b16 %v3197
  %v3804 = vunpack.c.h.b16 %v3197
  %v3805 = vunpack.c.l.b16 %v3198
  %v3806 = vunpack.c.h.b16 %v3198
  %v3807 = vunpack.c.l.b16 %v3199
  %v3808 = vunpack.c.h.b16 %v3199
  %v3809 = vunpack.c.l.b16 %v3200
  %v3810 = vunpack.c.h.b16 %v3200
  %v3811 = vunpack.c.l.b16 %v3201
  %v3812 = vunpack.c.h.b16 %v3201
  %v3813 = vunpack.c.l.b16 %v3202
  %v3814 = vunpack.c.h.b16 %v3202
  %v3815 = vunpack.c.l.b16 %v3203
  %v3816 = vunpack.c.h.b16 %v3203
  %v3817 = vunpack.c.l.b16 %v3204
  %v3818 = vunpack.c.h.b16 %v3204
  %v3819 = vunpack.c.l.b16 %v3205
  %v3820 = vunpack.c.h.b16 %v3205
  %v3821 = vunpack.c.l.b16 %v3206
  %v3822 = vunpack.c.h.b16 %v3206
  %v3823 = vunpack.c.l.b16 %v3207
  %v3824 = vunpack.c.h.b16 %v3207
  %v3825 = vunpack.c.l.b16 %v3208
  %v3826 = vunpack.c.h.b16 %v3208
  %v3827 = vunpack.c.l.b16 %v3209
  %v3828 = vunpack.c.h.b16 %v3209
  %v3829 = vunpack.c.l.b16 %v3210
  %v3830 = vunpack.c.h.b16 %v3210
  %v3831 = vunpack.c.l.b16 %v3211
  %v3832 = vunpack.c.h.b16 %v3211
  %v3833 = vunpack.c.l.b16 %v3212
  %v3834 = vunpack.c.h.b16 %v3212
  %v3835 = vunpack.c.l.b16 %v3213
  %v3836 = vunpack.c.h.b16 %v3213
  %v3837 = vunpack.c.l.b16 %v3214
  %v3838 = vunpack.c.h.b16 %v3214
  %v3839 = vunpack.c.l.b16 %v3215
  %v3840 = vunpack.c.h.b16 %v3215
  %v3841 = vunpack.c.l.b16 %v3216
  %v3842 = vunpack.c.h.b16 %v3216
  %v3843 = vunpack.c.l.b16 %v3217
  %v3844 = vunpack.c.h.b16 %v3217
  %v3845 = vunpack.c.l.b16 %v3218
  %v3846 = vunpack.c.h.b16 %v3218
  %v3847 = vunpack.c.l.b16 %v3219
  %v3848 = vunpack.c.h.b16 %v3219
  %v3849 = vunpack.c.l.b16 %v3220
  %v3850 = vunpack.c.h.b16 %v3220
  %v3851 = vunpack.c.l.b16 %v3221
  %v3852 = vunpack.c.h.b16 %v3221
  %v3853 = vunpack.c.l.b16 %v3222
  %v3854 = vunpack.c.h.b16 %v3222
  %v3855 = vunpack.c.l.b16 %v3223
  %v3856 = vunpack.c.h.b16 %v3223
  %v3857 = vunpack.c.l.b16 %v3224
  %v3858 = vunpack.c.h.b16 %v3224
  %v3859 = vunpack.c.l.b16 %v3225
  %v3860 = vunpack.c.h.b16 %v3225
  %v3861 = vunpack.c.l.b16 %v3226
  %v3862 = vunpack.c.h.b16 %v3226
  %v3863 = vunpack.c.l.b16 %v3227
  %v3864 = vunpack.c.h.b16 %v3227
  %v3865 = vunpack.c.l.b16 %v3228
  %v3866 = vunpack.c.h.b16 %v3228
  %v3867 = vunpack.c.l.b16 %v3229
  %v3868 = vunpack.c.h.b16 %v3229
  %v3869 = vunpack.c.l.b16 %v3230
  %v3870 = vunpack.c.h.b16 %v3230
  %v3871 = vunpack.c.l.b16 %v3231
  %v3872 = vunpack.c.h.b16 %v3231
  %v3873 = vunpack.c.l.b16 %v3232
  %v3874 = vunpack.c.h.b16 %v3232
  %v3875 = vunpack.c.l.b16 %v3233
  %v3876 = vunpack.c.h.b16 %v3233
  %v3877 = vunpack.c.l.b16 %v3234
  %v3878 = vunpack.c.h.b16 %v3234
  %v3879 = vunpack.c.l.b16 %v3235
  %v3880 = vunpack.c.h.b16 %v3235
  %v3881 = vunpack.c.l.b16 %v3236
  %v3882 = vunpack.c.h.b16 %v3236
  %v3883 = vunpack.c.l.b16 %v3237
  %v3884 = vunpack.c.h.b16 %v3237
  %v3885 = vunpack.c.l.b16 %v3238
  %v3886 = vunpack.c.h.b16 %v3238
  %v3887 = vunpack.c.l.b16 %v3239
  %v3888 = vunpack.c.h.b16 %v3239
  %v3889 = vunpack.c.l.b16 %v3240
  %v3890 = vunpack.c.h.b16 %v3240
  %v3891 = vunpack.c.l.b16 %v3241
  %v3892 = vunpack.c.h.b16 %v3241
  %v3893 = vunpack.c.l.b16 %v3242
  %v3894 = vunpack.c.h.b16 %v3242
  %v3895 = vunpack.c.l.b16 %v3243
  %v3896 = vunpack.c.h.b16 %v3243
  %v3897 = vunpack.c.l.b16 %v3244
  %v3898 = vunpack.c.h.b16 %v3244
  %v3899 = vunpack.c.l.b16 %v3245
  %v3900 = vunpack.c.h.b16 %v3245
  %v3901 = vunpack.c.l.b16 %v3246
  %v3902 = vunpack.c.h.b16 %v3246
  %v3903 = vunpack.c.l.b16 %v3247
  %v3904 = vunpack.c.h.b16 %v3247
  %v3905 = vunpack.c.l.b16 %v3248
  %v3906 = vunpack.c.h.b16 %v3248
  %v3907 = vunpack.c.l.b16 %v3249
  %v3908 = vunpack.c.h.b16 %v3249
  %v3909 = vunpack.c.l.b16 %v3250
  %v3910 = vunpack.c.h.b16 %v3250
  %v3911 = vunpack.c.l.b16 %v3251
  %v3912 = vunpack.c.h.b16 %v3251
  %v3913 = vunpack.c.l.b16 %v3252
  %v3914 = vunpack.c.h.b16 %v3252
  %v3915 = vunpack.c.l.b16 %v3253
  %v3916 = vunpack.c.h.b16 %v3253
  %v3917 = vunpack.c.l.b16 %v3254
  %v3918 = vunpack.c.h.b16 %v3254
  %v3919 = vunpack.c.l.b16 %v3255
  %v3920 = vunpack.c.h.b16 %v3255
  %v3921 = vunpack.c.l.b16 %v3256
  %v3922 = vunpack.c.h.b16 %v3256
  %v3923 = vunpack.c.l.b16 %v3257
  %v3924 = vunpack.c.h.b16 %v3257
  %v3925 = vunpack.c.l.b16 %v3258
  %v3926 = vunpack.c.h.b16 %v3258
  %v3927 = vunpack.c.l.b16 %v3259
  %v3928 = vunpack.c.h.b16 %v3259
  %v3929 = vunpack.c.l.b16 %v3260
  %v3930 = vunpack.c.h.b16 %v3260
  %v3931 = vunpack.c.l.b16 %v3261
  %v3932 = vunpack.c.h.b16 %v3261
  %v3933 = vunpack.c.l.b16 %v3262
  %v3934 = vunpack.c.h.b16 %v3262
  %v3935 = vunpack.c.l.b16 %v3263
  %v3936 = vunpack.c.h.b16 %v3263
  %v3937 = vunpack.c.l.b16 %v3264
  %v3938 = vunpack.c.h.b16 %v3264
  %v3939 = vunpack.c.l.b16 %v3265
  %v3940 = vunpack.c.h.b16 %v3265
  %v3941 = vunpack.c.l.b16 %v3266
  %v3942 = vunpack.c.h.b16 %v3266
  %v3943 = vunpack.c.l.b16 %v3267
  %v3944 = vunpack.c.h.b16 %v3267
  %v3945 = vunpack.c.l.b16 %v3268
  %v3946 = vunpack.c.h.b16 %v3268
  %v3947 = vunpack.c.l.b16 %v3269
  %v3948 = vunpack.c.h.b16 %v3269
  %v3949 = vunpack.c.l.b16 %v3270
  %v3950 = vunpack.c.h.b16 %v3270
  %v3951 = vunpack.c.l.b16 %v3271
  %v3952 = vunpack.c.h.b16 %v3271
  %v3953 = vunpack.c.l.b16 %v3272
  %v3954 = vunpack.c.h.b16 %v3272
  %v3955 = vunpack.c.l.b16 %v3273
  %v3956 = vunpack.c.h.b16 %v3273
  %v3957 = vunpack.c.l.b16 %v3274
  %v3958 = vunpack.c.h.b16 %v3274
  %v3959 = vunpack.c.l.b16 %v3275
  %v3960 = vunpack.c.h.b16 %v3275
  %v3961 = vunpack.c.l.b16 %v3276
  %v3962 = vunpack.c.h.b16 %v3276
  %v3963 = vunpack.c.l.b16 %v3277
  %v3964 = vunpack.c.h.b16 %v3277
  %v3965 = vunpack.c.l.b16 %v3278
  %v3966 = vunpack.c.h.b16 %v3278
  %v3967 = vunpack.c.l.b16 %v3279
  %v3968 = vunpack.c.h.b16 %v3279
  %v3969 = vunpack.c.l.b16 %v3280
  %v3970 = vunpack.c.h.b16 %v3280
  %v3971 = vunpack.c.l.b16 %v3281
  %v3972 = vunpack.c.h.b16 %v3281
  %v3973 = vunpack.c.l.b16 %v3282
  %v3974 = vunpack.c.h.b16 %v3282
  %v3975 = vunpack.c.l.b16 %v3283
  %v3976 = vunpack.c.h.b16 %v3283
  %v3977 = vunpack.c.l.b16 %v3284
  %v3978 = vunpack.c.h.b16 %v3284
  %v3979 = vunpack.c.l.b16 %v3285
  %v3980 = vunpack.c.h.b16 %v3285
  %v3981 = vunpack.c.l.b16 %v3286
  %v3982 = vunpack.c.h.b16 %v3286
  %v3983 = vunpack.c.l.b16 %v3287
  %v3984 = vunpack.c.h.b16 %v3287
  %v3985 = vunpack.c.l.b16 %v3288
  %v3986 = vunpack.c.h.b16 %v3288
  %v3987 = vunpack.c.l.b16 %v3289
  %v3988 = vunpack.c.h.b16 %v3289
  %v3989 = vunpack.c.l.b16 %v3290
  %v3990 = vunpack.c.h.b16 %v3290
  %v3991 = vunpack.c.l.b16 %v3291
  %v3992 = vunpack.c.h.b16 %v3291
  %v3993 = vunpack.c.l.b16 %v3292
  %v3994 = vunpack.c.h.b16 %v3292
  %v3995 = vunpack.c.l.b16 %v3293
  %v3996 = vunpack.c.h.b16 %v3293
  %v3997 = vunpack.c.l.b16 %v3294
  %v3998 = vunpack.c.h.b16 %v3294
  %v3999 = vunpack.c.l.b16 %v3295
  %v4000 = vunpack.c.h.b16 %v3295
  %v4001 = vunpack.c.l.b16 %v3296
  %v4002 = vunpack.c.h.b16 %v3296
  %v4003 = vunpack.c.l.b16 %v3297
  %v4004 = vunpack.c.h.b16 %v3297
  %v4005 = vunpack.c.l.b16 %v3298
  %v4006 = vunpack.c.h.b16 %v3298
  %v4007 = vunpack.c.l.b16 %v3299
  %v4008 = vunpack.c.h.b16 %v3299
  %v4009 = vunpack.c.l.b16 %v3300
  %v4010 = vunpack.c.h.b16 %v3300
  %v4011 = vunpack.c.l.b16 %v3301
  %v4012 = vunpack.c.h.b16 %v3301
  %v4013 = vunpack.c.l.b16 %v3302
  %v4014 = vunpack.c.h.b16 %v3302
  %v4015 = vunpack.c.l.b16 %v3303
  %v4016 = vunpack.c.h.b16 %v3303
  %v4017 = vunpack.c.l.b16 %v3304
  %v4018 = vunpack.c.h.b16 %v3304
  %v4019 = vunpack.c.l.b16 %v3305
  %v4020 = vunpack.c.h.b16 %v3305
  %v4021 = vunpack.c.l.b16 %v3306
  %v4022 = vunpack.c.h.b16 %v3306
  %v4023 = vunpack.c.l.b16 %v3307
  %v4024 = vunpack.c.h.b16 %v3307
  %v4025 = vunpack.c.l.b16 %v3308
  %v4026 = vunpack.c.h.b16 %v3308
  %v4027 = vunpack.c.l.b16 %v3309
  %v4028 = vunpack.c.h.b16 %v3309
  %v4029 = vunpack.c.l.b16 %v3310
  %v4030 = vunpack.c.h.b16 %v3310
  %v4031 = vunpack.c.l.b16 %v3311
  %v4032 = vunpack.c.h.b16 %v3311
  %v4033 = vunpack.c.l.b16 %v3312
  %v4034 = vunpack.c.h.b16 %v3312
  %v4035 = vunpack.c.l.b16 %v3313
  %v4036 = vunpack.c.h.b16 %v3313
  %v4037 = vunpack.c.l.b16 %v3314
  %v4038 = vunpack.c.h.b16 %v3314
  %v4039 = vunpack.c.l.b16 %v3315
  %v4040 = vunpack.c.h.b16 %v3315
  %v4041 = vunpack.c.l.b16 %v3316
  %v4042 = vunpack.c.h.b16 %v3316
  %v4043 = vunpack.c.l.b16 %v3317
  %v4044 = vunpack.c.h.b16 %v3317
  %v4045 = vunpack.c.l.b16 %v3318
  %v4046 = vunpack.c.h.b16 %v3318
  %v4047 = vunpack.c.l.b16 %v3319
  %v4048 = vunpack.c.h.b16 %v3319
  %v4049 = vunpack.c.l.b16 %v3320
  %v4050 = vunpack.c.h.b16 %v3320
  %v4051 = vunpack.c.l.b16 %v3321
  %v4052 = vunpack.c.h.b16 %v3321
  %v4053 = vunpack.c.l.b16 %v3322
  %v4054 = vunpack.c.h.b16 %v3322
  %v4055 = vunpack.c.l.b16 %v3323
  %v4056 = vunpack.c.h.b16 %v3323
  %v4057 = vunpack.c.l.b16 %v3324
  %v4058 = vunpack.c.h.b16 %v3324
  %v4059 = vunpack.c.l.b16 %v3325
  %v4060 = vunpack.c.h.b16 %v3325
  %v4061 = vunpack.c.l.b16 %v3326
  %v4062 = vunpack.c.h.b16 %v3326
  %v4063 = vunpack.c.l.b16 %v3327
  %v4064 = vunpack.c.h.b16 %v3327
  %v4065 = vunpack.c.l.b16 %v3328
  %v4066 = vunpack.c.h.b16 %v3328
  %v4067 = vunpack.c.l.b16 %v3329
  %v4068 = vunpack.c.h.b16 %v3329
  %v4069 = vunpack.c.l.b16 %v3330
  %v4070 = vunpack.c.h.b16 %v3330
  %v4071 = vunpack.c.l.b16 %v3331
  %v4072 = vunpack.c.h.b16 %v3331
  %v4073 = vunpack.c.l.b16 %v3332
  %v4074 = vunpack.c.h.b16 %v3332
  %v4075 = vunpack.c.l.b16 %v3333
  %v4076 = vunpack.c.h.b16 %v3333
  %v4077 = vunpack.c.l.b16 %v3334
  %v4078 = vunpack.c.h.b16 %v3334
  %v4079 = vunpack.c.l.b16 %v3335
  %v4080 = vunpack.c.h.b16 %v3335
  %v4081 = vunpack.c.l.b16 %v3336
  %v4082 = vunpack.c.h.b16 %v3336
  %v4083 = vunpack.c.l.b16 %v3337
  %v4084 = vunpack.c.h.b16 %v3337
  %v4085 = vunpack.c.l.b16 %v3338
  %v4086 = vunpack.c.h.b16 %v3338
  %v4087 = vunpack.c.l.b16 %v3339
  %v4088 = vunpack.c.h.b16 %v3339
  %v4089 = vunpack.c.l.b16 %v3340
  %v4090 = vunpack.c.h.b16 %v3340
  %v4091 = vunpack.c.l.b16 %v3341
  %v4092 = vunpack.c.h.b16 %v3341
  %v4093 = vunpack.c.l.b16 %v3342
  %v4094 = vunpack.c.h.b16 %v3342
  %v4095 = vunpack.c.l.b16 %v3343
  %v4096 = vunpack.c.h.b16 %v3343
  %v4097 = vunpack.c.l.b16 %v3344
  %v4098 = vunpack.c.h.b16 %v3344
  %v4099 = vunpack.c.l.b16 %v3345
  %v4100 = vunpack.c.h.b16 %v3345
  %v4101 = vunpack.c.l.b16 %v3346
  %v4102 = vunpack.c.h.b16 %v3346
  %v4103 = vunpack.c.l.b16 %v3347
  %v4104 = vunpack.c.h.b16 %v3347
  %v4105 = vunpack.c.l.b16 %v3348
  %v4106 = vunpack.c.h.b16 %v3348
  %v4107 = vunpack.c.l.b16 %v3349
  %v4108 = vunpack.c.h.b16 %v3349
  %v4109 = vunpack.c.l.b16 %v3350
  %v4110 = vunpack.c.h.b16 %v3350
  %v4111 = vunpack.c.l.b16 %v3351
  %v4112 = vunpack.c.h.b16 %v3351
  %v4113 = vunpack.c.l.b16 %v3352
  %v4114 = vunpack.c.h.b16 %v3352
  %v4115 = vunpack.c.l.b16 %v3353
  %v4116 = vunpack.c.h.b16 %v3353
  %v4117 = vunpack.c.l.b16 %v3354
  %v4118 = vunpack.c.h.b16 %v3354
  %v4119 = vunpack.c.l.b16 %v3355
  %v4120 = vunpack.c.h.b16 %v3355
  %v4121 = vunpack.c.l.b16 %v3356
  %v4122 = vunpack.c.h.b16 %v3356
  %v4123 = vunpack.c.l.b16 %v3357
  %v4124 = vunpack.c.h.b16 %v3357
  %v4125 = vunpack.c.l.b16 %v3358
  %v4126 = vunpack.c.h.b16 %v3358
  %v4127 = vunpack.c.l.b16 %v3359
  %v4128 = vunpack.c.h.b16 %v3359
  %v4129 = vunpack.c.l.b16 %v3360
  %v4130 = vunpack.c.h.b16 %v3360
  %v4131 = vunpack.c.l.b16 %v3361
  %v4132 = vunpack.c.h.b16 %v3361
  %v4133 = vunpack.c.l.b16 %v3362
  %v4134 = vunpack.c.h.b16 %v3362
  %v4135 = vunpack.c.l.b16 %v3363
  %v4136 = vunpack.c.h.b16 %v3363
  %v4137 = vunpack.c.l.b16 %v3364
  %v4138 = vunpack.c.h.b16 %v3364
  %v4139 = vunpack.c.l.b16 %v3365
  %v4140 = vunpack.c.h.b16 %v3365
  %v4141 = vunpack.c.l.b16 %v3366
  %v4142 = vunpack.c.h.b16 %v3366
  %v4143 = vunpack.c.l.b16 %v3367
  %v4144 = vunpack.c.h.b16 %v3367
  %v4145 = vunpack.c.l.b16 %v3368
  %v4146 = vunpack.c.h.b16 %v3368
  %v4147 = vunpack.c.l.b16 %v3369
  %v4148 = vunpack.c.h.b16 %v3369
  %v4149 = vunpack.c.l.b16 %v3370
  %v4150 = vunpack.c.h.b16 %v3370
  %v4151 = vunpack.c.l.b16 %v3371
  %v4152 = vunpack.c.h.b16 %v3371
  %v4153 = vunpack.c.l.b16 %v3372
  %v4154 = vunpack.c.h.b16 %v3372
  %v4155 = vunpack.c.l.b16 %v3373
  %v4156 = vunpack.c.h.b16 %v3373
  %v4157 = vunpack.c.l.b16 %v3374
  %v4158 = vunpack.c.h.b16 %v3374
  %v4159 = vunpack.c.l.b16 %v3375
  %v4160 = vunpack.c.h.b16 %v3375
  %v4161 = vunpack.c.l.b16 %v3376
  %v4162 = vunpack.c.h.b16 %v3376
  %v4163 = vunpack.c.l.b16 %v3377
  %v4164 = vunpack.c.h.b16 %v3377
  %v4165 = vunpack.c.l.b16 %v3378
  %v4166 = vunpack.c.h.b16 %v3378
  %v4167 = vunpack.c.l.b16 %v3379
  %v4168 = vunpack.c.h.b16 %v3379
  %v4169 = vunpack.c.l.b16 %v3380
  %v4170 = vunpack.c.h.b16 %v3380
  %v4171 = vpack.c.b16 %v3663, %v3659
  %v4172 = vpack.c.b16 %v3664, %v3660
  %v4173 = vpack.c.b16 %v3665, %v3661
  %v4174 = vpack.c.b16 %v3666, %v3662
  %v4175 = vpack.c.b16 %v3671, %v3667
  %v4176 = vpack.c.b16 %v3672, %v3668
  %v4177 = vpack.c.b16 %v3673, %v3669
  %v4178 = vpack.c.b16 %v3674, %v3670
  %v4179 = vpack.c.b16 %v3679, %v3675
  %v4180 = vpack.c.b16 %v3680, %v3676
  %v4181 = vpack.c.b16 %v3681, %v3677
  %v4182 = vpack.c.b16 %v3682, %v3678
  %v4183 = vpack.c.b16 %v3687, %v3683
  %v4184 = vpack.c.b16 %v3688, %v3684
  %v4185 = vpack.c.b16 %v3689, %v3685
  %v4186 = vpack.c.b16 %v3690, %v3686
  %v4187 = vpack.c.b16 %v3695, %v3691
  %v4188 = vpack.c.b16 %v3696, %v3692
  %v4189 = vpack.c.b16 %v3697, %v3693
  %v4190 = vpack.c.b16 %v3698, %v3694
  %v4191 = vpack.c.b16 %v3703, %v3699
  %v4192 = vpack.c.b16 %v3704, %v3700
  %v4193 = vpack.c.b16 %v3705, %v3701
  %v4194 = vpack.c.b16 %v3706, %v3702
  %v4195 = vpack.c.b16 %v3711, %v3707
  %v4196 = vpack.c.b16 %v3712, %v3708
  %v4197 = vpack.c.b16 %v3713, %v3709
  %v4198 = vpack.c.b16 %v3714, %v3710
  %v4199 = vpack.c.b16 %v3719, %v3715
  %v4200 = vpack.c.b16 %v3720, %v3716
  %v4201 = vpack.c.b16 %v3721, %v3717
  %v4202 = vpack.c.b16 %v3722, %v3718
  %v4203 = vpack.c.b16 %v3727, %v3723
  %v4204 = vpack.c.b16 %v3728, %v3724
  %v4205 = vpack.c.b16 %v3729, %v3725
  %v4206 = vpack.c.b16 %v3730, %v3726
  %v4207 = vpack.c.b16 %v3735, %v3731
  %v4208 = vpack.c.b16 %v3736, %v3732
  %v4209 = vpack.c.b16 %v3737, %v3733
  %v4210 = vpack.c.b16 %v3738, %v3734
  %v4211 = vpack.c.b16 %v3743, %v3739
  %v4212 = vpack.c.b16 %v3744, %v3740
  %v4213 = vpack.c.b16 %v3745, %v3741
  %v4214 = vpack.c.b16 %v3746, %v3742
  %v4215 = vpack.c.b16 %v3751, %v3747
  %v4216 = vpack.c.b16 %v3752, %v3748
  %v4217 = vpack.c.b16 %v3753, %v3749
  %v4218 = vpack.c.b16 %v3754, %v3750
  %v4219 = vpack.c.b16 %v3759, %v3755
  %v4220 = vpack.c.b16 %v3760, %v3756
  %v4221 = vpack.c.b16 %v3761, %v3757
  %v4222 = vpack.c.b16 %v3762, %v3758
  %v4223 = vpack.c.b16 %v3767, %v3763
  %v4224 = vpack.c.b16 %v3768, %v3764
  %v4225 = vpack.c.b16 %v3769, %v3765
  %v4226 = vpack.c.b16 %v3770, %v3766
  %v4227 = vpack.c.b16 %v3775, %v3771
  %v4228 = vpack.c.b16 %v3776, %v3772
  %v4229 = vpack.c.b16 %v3777, %v3773
  %v4230 = vpack.c.b16 %v3778, %v3774
  %v4231 = vpack.c.b16 %v3783, %v3779
  %v4232 = vpack.c.b16 %v3784, %v3780
  %v4233 = vpack.c.b16 %v3785, %v3781
  %v4234 = vpack.c.b16 %v3786, %v3782
  %v4235 = vpack.c.b16 %v3791, %v3787
  %v4236 = vpack.c.b16 %v3792, %v3788
  %v4237 = vpack.c.b16 %v3793, %v3789
  %v4238 = vpack.c.b16 %v3794, %v3790
  %v4239 = vpack.c.b16 %v3799, %v3795
  %v4240 = vpack.c.b16 %v3800, %v3796
  %v4241 = vpack.c.b16 %v3801, %v3797
  %v4242 = vpack.c.b16 %v3802, %v3798
  %v4243 = vpack.c.b16 %v3807, %v3803
  %v4244 = vpack.c.b16 %v3808, %v3804
  %v4245 = vpack.c.b16 %v3809, %v3805
  %v4246 = vpack.c.b16 %v3810, %v3806
  %v4247 = vpack.c.b16 %v3815, %v3811
  %v4248 = vpack.c.b16 %v3816, %v3812
  %v4249 = vpack.c.b16 %v3817, %v3813
  %v4250 = vpack.c.b16 %v3818, %v3814
  %v4251 = vpack.c.b16 %v3823, %v3819
  %v4252 = vpack.c.b16 %v3824, %v3820
  %v4253 = vpack.c.b16 %v3825, %v3821
  %v4254 = vpack.c.b16 %v3826, %v3822
  %v4255 = vpack.c.b16 %v3831, %v3827
  %v4256 = vpack.c.b16 %v3832, %v3828
  %v4257 = vpack.c.b16 %v3833, %v3829
  %v4258 = vpack.c.b16 %v3834, %v3830
  %v4259 = vpack.c.b16 %v3839, %v3835
  %v4260 = vpack.c.b16 %v3840, %v3836
  %v4261 = vpack.c.b16 %v3841, %v3837
  %v4262 = vpack.c.b16 %v3842, %v3838
  %v4263 = vpack.c.b16 %v3847, %v3843
  %v4264 = vpack.c.b16 %v3848, %v3844
  %v4265 = vpack.c.b16 %v3849, %v3845
  %v4266 = vpack.c.b16 %v3850, %v3846
  %v4267 = vpack.c.b16 %v3855, %v3851
  %v4268 = vpack.c.b16 %v3856, %v3852
  %v4269 = vpack.c.b16 %v3857, %v3853
  %v4270 = vpack.c.b16 %v3858, %v3854
  %v4271 = vpack.c.b16 %v3863, %v3859
  %v4272 = vpack.c.b16 %v3864, %v3860
  %v4273 = vpack.c.b16 %v3865, %v3861
  %v4274 = vpack.c.b16 %v3866, %v3862
  %v4275 = vpack.c.b16 %v3871, %v3867
  %v4276 = vpack.c.b16 %v3872, %v3868
  %v4277 = vpack.c.b16 %v3873, %v3869
  %v4278 = vpack.c.b16 %v3874, %v3870
  %v4279 = vpack.c.b16 %v3879, %v3875
  %v4280 = vpack.c.b16 %v3880, %v3876
  %v4281 = vpack.c.b16 %v3881, %v3877
  %v4282 = vpack.c.b16 %v3882, %v3878
  %v4283 = vpack.c.b16 %v3887, %v3883
  %v4284 = vpack.c.b16 %v3888, %v3884
  %v4285 = vpack.c.b16 %v3889, %v3885
  %v4286 = vpack.c.b16 %v3890, %v3886
  %v4287 = vpack.c.b16 %v3895, %v3891
  %v4288 = vpack.c.b16 %v3896, %v3892
  %v4289 = vpack.c.b16 %v3897, %v3893
  %v4290 = vpack.c.b16 %v3898, %v3894
  %v4291 = vpack.c.b16 %v3903, %v3899
  %v4292 = vpack.c.b16 %v3904, %v3900
  %v4293 = vpack.c.b16 %v3905, %v3901
  %v4294 = vpack.c.b16 %v3906, %v3902
  %v4295 = vpack.c.b16 %v3911, %v3907
  %v4296 = vpack.c.b16 %v3912, %v3908
  %v4297 = vpack.c.b16 %v3913, %v3909
  %v4298 = vpack.c.b16 %v3914, %v3910
  %v4299 = vpack.c.b16 %v3919, %v3915
  %v4300 = vpack.c.b16 %v3920, %v3916
  %v4301 = vpack.c.b16 %v3921, %v3917
  %v4302 = vpack.c.b16 %v3922, %v3918
  %v4303 = vpack.c.b16 %v3927, %v3923
  %v4304 = vpack.c.b16 %v3928, %v3924
  %v4305 = vpack.c.b16 %v3929, %v3925
  %v4306 = vpack.c.b16 %v3930, %v3926
  %v4307 = vpack.c.b16 %v3935, %v3931
  %v4308 = vpack.c.b16 %v3936, %v3932
  %v4309 = vpack.c.b16 %v3937, %v3933
  %v4310 = vpack.c.b16 %v3938, %v3934
  %v4311 = vpack.c.b16 %v3943, %v3939
  %v4312 = vpack.c.b16 %v3944, %v3940
  %v4313 = vpack.c.b16 %v3945, %v3941
  %v4314 = vpack.c.b16 %v3946, %v3942
  %v4315 = vpack.c.b16 %v3951, %v3947
  %v4316 = vpack.c.b16 %v3952, %v3948
  %v4317 = vpack.c.b16 %v3953, %v3949
  %v4318 = vpack.c.b16 %v3954, %v3950
  %v4319 = vpack.c.b16 %v3959, %v3955
  %v4320 = vpack.c.b16 %v3960, %v3956
  %v4321 = vpack.c.b16 %v3961, %v3957
  %v4322 = vpack.c.b16 %v3962, %v3958
  %v4323 = vpack.c.b16 %v3967, %v3963
  %v4324 = vpack.c.b16 %v3968, %v3964
  %v4325 = vpack.c.b16 %v3969, %v3965
  %v4326 = vpack.c.b16 %v3970, %v3966
  %v4327 = vpack.c.b16 %v3975, %v3971
  %v4328 = vpack.c.b16 %v3976, %v3972
  %v4329 = vpack.c.b16 %v3977, %v3973
  %v4330 = vpack.c.b16 %v3978, %v3974
  %v4331 = vpack.c.b16 %v3983, %v3979
  %v4332 = vpack.c.b16 %v3984, %v3980
  %v4333 = vpack.c.b16 %v3985, %v3981
  %v4334 = vpack.c.b16 %v3986, %v3982
  %v4335 = vpack.c.b16 %v3991, %v3987
  %v4336 = vpack.c.b16 %v3992, %v3988
  %v4337 = vpack.c.b16 %v3993, %v3989
  %v4338 = vpack.c.b16 %v3994, %v3990
  %v4339 = vpack.c.b16 %v3999, %v3995
  %v4340 = vpack.c.b16 %v4000, %v3996
  %v4341 = vpack.c.b16 %v4001, %v3997
  %v4342 = vpack.c.b16 %v4002, %v3998
  %v4343 = vpack.c.b16 %v4007, %v4003
  %v4344 = vpack.c.b16 %v4008, %v4004
  %v4345 = vpack.c.b16 %v4009, %v4005
  %v4346 = vpack.c.b16 %v4010, %v4006
  %v4347 = vpack.c.b16 %v4015, %v4011
  %v4348 = vpack.c.b16 %v4016, %v4012
  %v4349 = vpack.c.b16 %v4017, %v4013
  %v4350 = vpack.c.b16 %v4018, %v4014
  %v4351 = vpack.c.b16 %v4023, %v4019
  %v4352 = vpack.c.b16 %v4024, %v4020
  %v4353 = vpack.c.b16 %v4025, %v4021
  %v4354 = vpack.c.b16 %v4026, %v4022
  %v4355 = vpack.c.b16 %v4031, %v4027
  %v4356 = vpack.c.b16 %v4032, %v4028
  %v4357 = vpack.c.b16 %v4033, %v4029
  %v4358 = vpack.c.b16 %v4034, %v4030
  %v4359 = vpack.c.b16 %v4039, %v4035
  %v4360 = vpack.c.b16 %v4040, %v4036
  %v4361 = vpack.c.b16 %v4041, %v4037
  %v4362 = vpack.c.b16 %v4042, %v4038
  %v4363 = vpack.c.b16 %v4047, %v4043
  %v4364 = vpack.c.b16 %v4048, %v4044
  %v4365 = vpack.c.b16 %v4049, %v4045
  %v4366 = vpack.c.b16 %v4050, %v4046
  %v4367 = vpack.c.b16 %v4055, %v4051
  %v4368 = vpack.c.b16 %v4056, %v4052
  %v4369 = vpack.c.b16 %v4057, %v4053
  %v4370 = vpack.c.b16 %v4058, %v4054
  %v4371 = vpack.c.b16 %v4063, %v4059
  %v4372 = vpack.c.b16 %v4064, %v4060
  %v4373 = vpack.c.b16 %v4065, %v4061
  %v4374 = vpack.c.b16 %v4066, %v4062
  %v4375 = vpack.c.b16 %v4071, %v4067
  %v4376 = vpack.c.b16 %v4072, %v4068
  %v4377 = vpack.c.b16 %v4073, %v4069
  %v4378 = vpack.c.b16 %v4074, %v4070
  %v4379 = vpack.c.b16 %v4079, %v4075
  %v4380 = vpack.c.b16 %v4080, %v4076
  %v4381 = vpack.c.b16 %v4081, %v4077
  %v4382 = vpack.c.b16 %v4082, %v4078
  %v4383 = vpack.c.b16 %v4087, %v4083
  %v4384 = vpack.c.b16 %v4088, %v4084
  %v4385 = vpack.c.b16 %v4089, %v4085
  %v4386 = vpack.c.b16 %v4090, %v4086
  %v4387 = vpack.c.b16 %v4095, %v4091
  %v4388 = vpack.c.b16 %v4096, %v4092
  %v4389 = vpack.c.b16 %v4097, %v4093
  %v4390 = vpack.c.b16 %v4098, %v4094
  %v4391 = vpack.c.b16 %v4103, %v4099
  %v4392 = vpack.c.b16 %v4104, %v4100
  %v4393 = vpack.c.b16 %v4105, %v4101
  %v4394 = vpack.c.b16 %v4106, %v4102
  %v4395 = vpack.c.b16 %v4111, %v4107
  %v4396 = vpack.c.b16 %v4112, %v4108
  %v4397 = vpack.c.b16 %v4113, %v4109
  %v4398 = vpack.c.b16 %v4114, %v4110
  %v4399 = vpack.c.b16 %v4119, %v4115
  %v4400 = vpack.c.b16 %v4120, %v4116
  %v4401 = vpack.c.b16 %v4121, %v4117
  %v4402 = vpack.c.b16 %v4122, %v4118
  %v4403 = vpack.c.b16 %v4127, %v4123
  %v4404 = vpack.c.b16 %v4128, %v4124
  %v4405 = vpack.c.b16 %v4129, %v4125
  %v4406 = vpack.c.b16 %v4130, %v4126
  %v4407 = vpack.c.b16 %v4135, %v4131
  %v4408 = vpack.c.b16 %v4136, %v4132
  %v4409 = vpack.c.b16 %v4137, %v4133
  %v4410 = vpack.c.b16 %v4138, %v4134
  %v4411 = vpack.c.b16 %v4143, %v4139
  %v4412 = vpack.c.b16 %v4144, %v4140
  %v4413 = vpack.c.b16 %v4145, %v4141
  %v4414 = vpack.c.b16 %v4146, %v4142
  %v4415 = vpack.c.b16 %v4151, %v4147
  %v4416 = vpack.c.b16 %v4152, %v4148
  %v4417 = vpack.c.b16 %v4153, %v4149
  %v4418 = vpack.c.b16 %v4154, %v4150
  %v4419 = vpack.c.b16 %v4159, %v4155
  %v4420 = vpack.c.b16 %v4160, %v4156
  %v4421 = vpack.c.b16 %v4161, %v4157
  %v4422 = vpack.c.b16 %v4162, %v4158
  %v4423 = vpack.c.b16 %v4167, %v4163
  %v4424 = vpack.c.b16 %v4168, %v4164
  %v4425 = vpack.c.b16 %v4169, %v4165
  %v4426 = vpack.c.b16 %v4170, %v4166
  %4683 = vmatprep.subr.bf16.mxu0 %v4172
  %4684 = vmatpush1.bf16.msra.mxu0 %v4171
  %4685 = vmatprep.subr.bf16.mxu0 %v4176
  %4686 = vmatpush1.bf16.msra.mxu0 %v4175
  %4687 = vmatprep.subr.bf16.mxu0 %v4180
  %4688 = vmatpush1.bf16.msra.mxu0 %v4179
  %4689 = vmatprep.subr.bf16.mxu0 %v4184
  %4690 = vmatpush1.bf16.msra.mxu0 %v4183
  %4691 = vmatprep.subr.bf16.mxu0 %v4188
  %4692 = vmatpush1.bf16.msra.mxu0 %v4187
  %4693 = vmatprep.subr.bf16.mxu0 %v4192
  %4694 = vmatpush1.bf16.msra.mxu0 %v4191
  %4695 = vmatprep.subr.bf16.mxu0 %v4196
  %4696 = vmatpush1.bf16.msra.mxu0 %v4195
  %4697 = vmatprep.subr.bf16.mxu0 %v4200
  %4698 = vmatpush1.bf16.msra.mxu0 %v4199
  %4699 = vmatprep.subr.bf16.mxu0 %v4204
  %4700 = vmatpush1.bf16.msra.mxu0 %v4203
  %4701 = vmatprep.subr.bf16.mxu0 %v4208
  %4702 = vmatpush1.bf16.msra.mxu0 %v4207
  %4703 = vmatprep.subr.bf16.mxu0 %v4212
  %4704 = vmatpush1.bf16.msra.mxu0 %v4211
  %4705 = vmatprep.subr.bf16.mxu0 %v4216
  %4706 = vmatpush1.bf16.msra.mxu0 %v4215
  %4707 = vmatprep.subr.bf16.mxu0 %v4220
  %4708 = vmatpush1.bf16.msra.mxu0 %v4219
  %4709 = vmatprep.subr.bf16.mxu0 %v4224
  %4710 = vmatpush1.bf16.msra.mxu0 %v4223
  %4711 = vmatprep.subr.bf16.mxu0 %v4228
  %4712 = vmatpush1.bf16.msra.mxu0 %v4227
  %4713 = vmatprep.subr.bf16.mxu0 %v4232
  %4714 = vmatpush1.bf16.msra.mxu0 %v4231
  %4715 = vmatprep.mubr.bf16.mxu0 %v3118
  %4716 = vmatmul.mubr.bf16.gmra.mrb[0].mxu0 %v3117
  %v4717 = vpop.f32.mrb[0].mxu0
  %v4718 = vadd.f32 %v3386, %v4717
  %v4719 = vpop.f32.mrb[0].mxu0
  %v4720 = vadd.f32 %v3390, %v4719
  %v4721 = vpop.f32.mrb[0].mxu0
  %v4722 = vpop.f32.mrb[0].mxu0
  %4723 = vdwg.mxu0
  %4724 = vmatprep.subr.bf16.mxu0 %v4236
  %4725 = vmatpush1.bf16.msra.mxu0 %v4235
  %4726 = vmatprep.subr.bf16.mxu0 %v4240
  %4727 = vmatpush1.bf16.msra.mxu0 %v4239
  %4728 = vmatprep.subr.bf16.mxu0 %v4244
  %4729 = vmatpush1.bf16.msra.mxu0 %v4243
  %4730 = vmatprep.subr.bf16.mxu0 %v4248
  %4731 = vmatpush1.bf16.msra.mxu0 %v4247
  %4732 = vmatprep.subr.bf16.mxu0 %v4252
  %4733 = vmatpush1.bf16.msra.mxu0 %v4251
  %4734 = vmatprep.subr.bf16.mxu0 %v4256
  %4735 = vmatpush1.bf16.msra.mxu0 %v4255
  %4736 = vmatprep.subr.bf16.mxu0 %v4260
  %4737 = vmatpush1.bf16.msra.mxu0 %v4259
  %4738 = vmatprep.subr.bf16.mxu0 %v4264
  %4739 = vmatpush1.bf16.msra.mxu0 %v4263
  %4740 = vmatprep.subr.bf16.mxu0 %v4268
  %4741 = vmatpush1.bf16.msra.mxu0 %v4267
  %4742 = vmatprep.subr.bf16.mxu0 %v4272
  %4743 = vmatpush1.bf16.msra.mxu0 %v4271
  %4744 = vmatprep.subr.bf16.mxu0 %v4276
  %4745 = vmatpush1.bf16.msra.mxu0 %v4275
  %4746 = vmatprep.subr.bf16.mxu0 %v4280
  %4747 = vmatpush1.bf16.msra.mxu0 %v4279
  %4748 = vmatprep.subr.bf16.mxu0 %v4284
  %4749 = vmatpush1.bf16.msra.mxu0 %v4283
  %4750 = vmatprep.subr.bf16.mxu0 %v4288
  %4751 = vmatpush1.bf16.msra.mxu0 %v4287
  %4752 = vmatprep.subr.bf16.mxu0 %v4292
  %4753 = vmatpush1.bf16.msra.mxu0 %v4291
  %4754 = vmatprep.subr.bf16.mxu0 %v4296
  %4755 = vmatpush1.bf16.msra.mxu0 %v4295
  %4756 = vmatprep.mubr.bf16.mxu0 %v3120
  %4757 = vmatmul.mubr.bf16.gmra.mrb[0].mxu0 %v3119
  %v4758 = vpop.f32.mrb[0].mxu0
  %v4759 = vadd.f32 %v4718, %v4758
  %v4760 = vpop.f32.mrb[0].mxu0
  %v4761 = vadd.f32 %v4720, %v4760
  %v4762 = vpop.f32.mrb[0].mxu0
  %v4763 = vpop.f32.mrb[0].mxu0
  %4764 = vdwg.mxu0
  %4765 = vmatprep.subr.bf16.mxu0 %v4300
  %4766 = vmatpush1.bf16.msra.mxu0 %v4299
  %4767 = vmatprep.subr.bf16.mxu0 %v4304
  %4768 = vmatpush1.bf16.msra.mxu0 %v4303
  %4769 = vmatprep.subr.bf16.mxu0 %v4308
  %4770 = vmatpush1.bf16.msra.mxu0 %v4307
  %4771 = vmatprep.subr.bf16.mxu0 %v4312
  %4772 = vmatpush1.bf16.msra.mxu0 %v4311
  %4773 = vmatprep.subr.bf16.mxu0 %v4316
  %4774 = vmatpush1.bf16.msra.mxu0 %v4315
  %4775 = vmatprep.subr.bf16.mxu0 %v4320
  %4776 = vmatpush1.bf16.msra.mxu0 %v4319
  %4777 = vmatprep.subr.bf16.mxu0 %v4324
  %4778 = vmatpush1.bf16.msra.mxu0 %v4323
  %4779 = vmatprep.subr.bf16.mxu0 %v4328
  %4780 = vmatpush1.bf16.msra.mxu0 %v4327
  %4781 = vmatprep.subr.bf16.mxu0 %v4332
  %4782 = vmatpush1.bf16.msra.mxu0 %v4331
  %4783 = vmatprep.subr.bf16.mxu0 %v4336
  %4784 = vmatpush1.bf16.msra.mxu0 %v4335
  %4785 = vmatprep.subr.bf16.mxu0 %v4340
  %4786 = vmatpush1.bf16.msra.mxu0 %v4339
  %4787 = vmatprep.subr.bf16.mxu0 %v4344
  %4788 = vmatpush1.bf16.msra.mxu0 %v4343
  %4789 = vmatprep.subr.bf16.mxu0 %v4348
  %4790 = vmatpush1.bf16.msra.mxu0 %v4347
  %4791 = vmatprep.subr.bf16.mxu0 %v4352
  %4792 = vmatpush1.bf16.msra.mxu0 %v4351
  %4793 = vmatprep.subr.bf16.mxu0 %v4356
  %4794 = vmatpush1.bf16.msra.mxu0 %v4355
  %4795 = vmatprep.subr.bf16.mxu0 %v4360
  %4796 = vmatpush1.bf16.msra.mxu0 %v4359
  %4797 = vmatprep.mubr.bf16.mxu0 %v3122
  %4798 = vmatmul.mubr.bf16.gmra.mrb[0].mxu0 %v3121
  %v4799 = vpop.f32.mrb[0].mxu0
  %v4800 = vadd.f32 %v4759, %v4799
  %v4801 = vpop.f32.mrb[0].mxu0
  %v4802 = vadd.f32 %v4761, %v4801
  %v4803 = vpop.f32.mrb[0].mxu0
  %v4804 = vpop.f32.mrb[0].mxu0
  %4805 = vdwg.mxu0
  %4806 = vmatprep.subr.bf16.mxu0 %v4364
  %4807 = vmatpush1.bf16.msra.mxu0 %v4363
  %4808 = vmatprep.subr.bf16.mxu0 %v4368
  %4809 = vmatpush1.bf16.msra.mxu0 %v4367
  %4810 = vmatprep.subr.bf16.mxu0 %v4372
  %4811 = vmatpush1.bf16.msra.mxu0 %v4371
  %4812 = vmatprep.subr.bf16.mxu0 %v4376
  %4813 = vmatpush1.bf16.msra.mxu0 %v4375
  %4814 = vmatprep.subr.bf16.mxu0 %v4380
  %4815 = vmatpush1.bf16.msra.mxu0 %v4379
  %4816 = vmatprep.subr.bf16.mxu0 %v4384
  %4817 = vmatpush1.bf16.msra.mxu0 %v4383
  %4818 = vmatprep.subr.bf16.mxu0 %v4388
  %4819 = vmatpush1.bf16.msra.mxu0 %v4387
  %4820 = vmatprep.subr.bf16.mxu0 %v4392
  %4821 = vmatpush1.bf16.msra.mxu0 %v4391
  %4822 = vmatprep.subr.bf16.mxu0 %v4396
  %4823 = vmatpush1.bf16.msra.mxu0 %v4395
  %4824 = vmatprep.subr.bf16.mxu0 %v4400
  %4825 = vmatpush1.bf16.msra.mxu0 %v4399
  %4826 = vmatprep.subr.bf16.mxu0 %v4404
  %4827 = vmatpush1.bf16.msra.mxu0 %v4403
  %4828 = vmatprep.subr.bf16.mxu0 %v4408
  %4829 = vmatpush1.bf16.msra.mxu0 %v4407
  %4830 = vmatprep.subr.bf16.mxu0 %v4412
  %4831 = vmatpush1.bf16.msra.mxu0 %v4411
  %4832 = vmatprep.subr.bf16.mxu0 %v4416
  %4833 = vmatpush1.bf16.msra.mxu0 %v4415
  %4834 = vmatprep.subr.bf16.mxu0 %v4420
  %4835 = vmatpush1.bf16.msra.mxu0 %v4419
  %4836 = vmatprep.subr.bf16.mxu0 %v4424
  %4837 = vmatpush1.bf16.msra.mxu0 %v4423
  %4838 = vmatprep.mubr.bf16.mxu0 %v3124
  %4839 = vmatmul.mubr.bf16.gmra.mrb[0].mxu0 %v3123
  %v4840 = vpop.f32.mrb[0].mxu0
  %v4841 = vadd.f32 %v4800, %v4840
  %v4842 = vpop.f32.mrb[0].mxu0
  %v4843 = vadd.f32 %v4802, %v4842
  %v4844 = vpop.f32.mrb[0].mxu0
  %v4845 = vpop.f32.mrb[0].mxu0
  %4846 = vdwg.mxu0
  %4847 = vmatprep.subr.bf16.mxu0 %v4174
  %4848 = vmatpush1.bf16.msra.mxu0 %v4173
  %4849 = vmatprep.subr.bf16.mxu0 %v4178
  %4850 = vmatpush1.bf16.msra.mxu0 %v4177
  %4851 = vmatprep.subr.bf16.mxu0 %v4182
  %4852 = vmatpush1.bf16.msra.mxu0 %v4181
  %4853 = vmatprep.subr.bf16.mxu0 %v4186
  %4854 = vmatpush1.bf16.msra.mxu0 %v4185
  %4855 = vmatprep.subr.bf16.mxu0 %v4190
  %4856 = vmatpush1.bf16.msra.mxu0 %v4189
  %4857 = vmatprep.subr.bf16.mxu0 %v4194
  %4858 = vmatpush1.bf16.msra.mxu0 %v4193
  %4859 = vmatprep.subr.bf16.mxu0 %v4198
  %4860 = vmatpush1.bf16.msra.mxu0 %v4197
  %4861 = vmatprep.subr.bf16.mxu0 %v4202
  %4862 = vmatpush1.bf16.msra.mxu0 %v4201
  %4863 = vmatprep.subr.bf16.mxu0 %v4206
  %4864 = vmatpush1.bf16.msra.mxu0 %v4205
  %4865 = vmatprep.subr.bf16.mxu0 %v4210
  %4866 = vmatpush1.bf16.msra.mxu0 %v4209
  %4867 = vmatprep.subr.bf16.mxu0 %v4214
  %4868 = vmatpush1.bf16.msra.mxu0 %v4213
  %4869 = vmatprep.subr.bf16.mxu0 %v4218
  %4870 = vmatpush1.bf16.msra.mxu0 %v4217
  %4871 = vmatprep.subr.bf16.mxu0 %v4222
  %4872 = vmatpush1.bf16.msra.mxu0 %v4221
  %4873 = vmatprep.subr.bf16.mxu0 %v4226
  %4874 = vmatpush1.bf16.msra.mxu0 %v4225
  %4875 = vmatprep.subr.bf16.mxu0 %v4230
  %4876 = vmatpush1.bf16.msra.mxu0 %v4229
  %4877 = vmatprep.subr.bf16.mxu0 %v4234
  %4878 = vmatpush1.bf16.msra.mxu0 %v4233
  %4879 = vmatprep.mubr.bf16.mxu0 %v3118
  %4880 = vmatmul.mubr.bf16.gmra.mrb[0].mxu0 %v3117
  %v4881 = vpop.f32.mrb[0].mxu0
  %v4882 = vadd.f32 %v3394, %v4881
  %v4883 = vpop.f32.mrb[0].mxu0
  %v4884 = vadd.f32 %v3398, %v4883
  %v4885 = vpop.f32.mrb[0].mxu0
  %v4886 = vpop.f32.mrb[0].mxu0
  %4887 = vdwg.mxu0
  %4888 = vmatprep.subr.bf16.mxu0 %v4238
  %4889 = vmatpush1.bf16.msra.mxu0 %v4237
  %4890 = vmatprep.subr.bf16.mxu0 %v4242
  %4891 = vmatpush1.bf16.msra.mxu0 %v4241
  %4892 = vmatprep.subr.bf16.mxu0 %v4246
  %4893 = vmatpush1.bf16.msra.mxu0 %v4245
  %4894 = vmatprep.subr.bf16.mxu0 %v4250
  %4895 = vmatpush1.bf16.msra.mxu0 %v4249
  %4896 = vmatprep.subr.bf16.mxu0 %v4254
  %4897 = vmatpush1.bf16.msra.mxu0 %v4253
  %4898 = vmatprep.subr.bf16.mxu0 %v4258
  %4899 = vmatpush1.bf16.msra.mxu0 %v4257
  %4900 = vmatprep.subr.bf16.mxu0 %v4262
  %4901 = vmatpush1.bf16.msra.mxu0 %v4261
  %4902 = vmatprep.subr.bf16.mxu0 %v4266
  %4903 = vmatpush1.bf16.msra.mxu0 %v4265
  %4904 = vmatprep.subr.bf16.mxu0 %v4270
  %4905 = vmatpush1.bf16.msra.mxu0 %v4269
  %4906 = vmatprep.subr.bf16.mxu0 %v4274
  %4907 = vmatpush1.bf16.msra.mxu0 %v4273
  %4908 = vmatprep.subr.bf16.mxu0 %v4278
  %4909 = vmatpush1.bf16.msra.mxu0 %v4277
  %4910 = vmatprep.subr.bf16.mxu0 %v4282
  %4911 = vmatpush1.bf16.msra.mxu0 %v4281
  %4912 = vmatprep.subr.bf16.mxu0 %v4286
  %4913 = vmatpush1.bf16.msra.mxu0 %v4285
  %4914 = vmatprep.subr.bf16.mxu0 %v4290
  %4915 = vmatpush1.bf16.msra.mxu0 %v4289
  %4916 = vmatprep.subr.bf16.mxu0 %v4294
  %4917 = vmatpush1.bf16.msra.mxu0 %v4293
  %4918 = vmatprep.subr.bf16.mxu0 %v4298
  %4919 = vmatpush1.bf16.msra.mxu0 %v4297
  %4920 = vmatprep.mubr.bf16.mxu0 %v3120
  %4921 = vmatmul.mubr.bf16.gmra.mrb[0].mxu0 %v3119
  %v4922 = vpop.f32.mrb[0].mxu0
  %v4923 = vadd.f32 %v4882, %v4922
  %v4924 = vpop.f32.mrb[0].mxu0
  %v4925 = vadd.f32 %v4884, %v4924
  %v4926 = vpop.f32.mrb[0].mxu0
  %v4927 = vpop.f32.mrb[0].mxu0
  %4928 = vdwg.mxu0
  %4929 = vmatprep.subr.bf16.mxu0 %v4302
  %4930 = vmatpush1.bf16.msra.mxu0 %v4301
  %4931 = vmatprep.subr.bf16.mxu0 %v4306
  %4932 = vmatpush1.bf16.msra.mxu0 %v4305
  %4933 = vmatprep.subr.bf16.mxu0 %v4310
  %4934 = vmatpush1.bf16.msra.mxu0 %v4309
  %4935 = vmatprep.subr.bf16.mxu0 %v4314
  %4936 = vmatpush1.bf16.msra.mxu0 %v4313
  %4937 = vmatprep.subr.bf16.mxu0 %v4318
  %4938 = vmatpush1.bf16.msra.mxu0 %v4317
  %4939 = vmatprep.subr.bf16.mxu0 %v4322
  %4940 = vmatpush1.bf16.msra.mxu0 %v4321
  %4941 = vmatprep.subr.bf16.mxu0 %v4326
  %4942 = vmatpush1.bf16.msra.mxu0 %v4325
  %4943 = vmatprep.subr.bf16.mxu0 %v4330
  %4944 = vmatpush1.bf16.msra.mxu0 %v4329
  %4945 = vmatprep.subr.bf16.mxu0 %v4334
  %4946 = vmatpush1.bf16.msra.mxu0 %v4333
  %4947 = vmatprep.subr.bf16.mxu0 %v4338
  %4948 = vmatpush1.bf16.msra.mxu0 %v4337
  %4949 = vmatprep.subr.bf16.mxu0 %v4342
  %4950 = vmatpush1.bf16.msra.mxu0 %v4341
  %4951 = vmatprep.subr.bf16.mxu0 %v4346
  %4952 = vmatpush1.bf16.msra.mxu0 %v4345
  %4953 = vmatprep.subr.bf16.mxu0 %v4350
  %4954 = vmatpush1.bf16.msra.mxu0 %v4349
  %4955 = vmatprep.subr.bf16.mxu0 %v4354
  %4956 = vmatpush1.bf16.msra.mxu0 %v4353
  %4957 = vmatprep.subr.bf16.mxu0 %v4358
  %4958 = vmatpush1.bf16.msra.mxu0 %v4357
  %4959 = vmatprep.subr.bf16.mxu0 %v4362
  %4960 = vmatpush1.bf16.msra.mxu0 %v4361
  %4961 = vmatprep.mubr.bf16.mxu0 %v3122
  %4962 = vmatmul.mubr.bf16.gmra.mrb[0].mxu0 %v3121
  %v4963 = vpop.f32.mrb[0].mxu0
  %v4964 = vadd.f32 %v4923, %v4963
  %v4965 = vpop.f32.mrb[0].mxu0
  %v4966 = vadd.f32 %v4925, %v4965
  %v4967 = vpop.f32.mrb[0].mxu0
  %v4968 = vpop.f32.mrb[0].mxu0
  %4969 = vdwg.mxu0
  %4970 = vmatprep.subr.bf16.mxu0 %v4366
  %4971 = vmatpush1.bf16.msra.mxu0 %v4365
  %4972 = vmatprep.subr.bf16.mxu0 %v4370
  %4973 = vmatpush1.bf16.msra.mxu0 %v4369
  %4974 = vmatprep.subr.bf16.mxu0 %v4374
  %4975 = vmatpush1.bf16.msra.mxu0 %v4373
  %4976 = vmatprep.subr.bf16.mxu0 %v4378
  %4977 = vmatpush1.bf16.msra.mxu0 %v4377
  %4978 = vmatprep.subr.bf16.mxu0 %v4382
  %4979 = vmatpush1.bf16.msra.mxu0 %v4381
  %4980 = vmatprep.subr.bf16.mxu0 %v4386
  %4981 = vmatpush1.bf16.msra.mxu0 %v4385
  %4982 = vmatprep.subr.bf16.mxu0 %v4390
  %4983 = vmatpush1.bf16.msra.mxu0 %v4389
  %4984 = vmatprep.subr.bf16.mxu0 %v4394
  %4985 = vmatpush1.bf16.msra.mxu0 %v4393
  %4986 = vmatprep.subr.bf16.mxu0 %v4398
  %4987 = vmatpush1.bf16.msra.mxu0 %v4397
  %4988 = vmatprep.subr.bf16.mxu0 %v4402
  %4989 = vmatpush1.bf16.msra.mxu0 %v4401
  %4990 = vmatprep.subr.bf16.mxu0 %v4406
  %4991 = vmatpush1.bf16.msra.mxu0 %v4405
  %4992 = vmatprep.subr.bf16.mxu0 %v4410
  %4993 = vmatpush1.bf16.msra.mxu0 %v4409
  %4994 = vmatprep.subr.bf16.mxu0 %v4414
  %4995 = vmatpush1.bf16.msra.mxu0 %v4413
  %4996 = vmatprep.subr.bf16.mxu0 %v4418
  %4997 = vmatpush1.bf16.msra.mxu0 %v4417
  %4998 = vmatprep.subr.bf16.mxu0 %v4422
  %4999 = vmatpush1.bf16.msra.mxu0 %v4421
  %5000 = vmatprep.subr.bf16.mxu0 %v4426
  %5001 = vmatpush1.bf16.msra.mxu0 %v4425
  %5002 = vmatprep.mubr.bf16.mxu0 %v3124
  %5003 = vmatmul.mubr.bf16.gmra.mrb[0].mxu0 %v3123
  %v5004 = vpop.f32.mrb[0].mxu0
  %v5005 = vadd.f32 %v4964, %v5004
  %v5006 = vpop.f32.mrb[0].mxu0
  %v5007 = vadd.f32 %v4966, %v5006
  %v5008 = vpop.f32.mrb[0].mxu0
  %v5009 = vpop.f32.mrb[0].mxu0
  %5010 = vdwg.mxu0
  %v5011 = vmul.f32 %v4841, 0.2
  %v5012 = vmul.f32 %v4843, 0.2
  %v5013 = vmul.f32 %v5005, 0.2
  %v5014 = vmul.f32 %v5007, 0.2
  %v5015 = vmax.f32 %v4841, %v5011
  %v5016 = vmax.f32 %v4843, %v5012
  %v5017 = vmax.f32 %v5005, %v5013
  %v5018 = vmax.f32 %v5007, %v5014
  %v5019 = vpack.c.bf16 %v5015, %v5015
  %v5020 = vpack.c.bf16 %v5016, %v5016
  %v5021 = vpack.c.bf16 %v5017, %v5017
  %v5022 = vpack.c.bf16 %v5018, %v5018
  %v5023 = vld [vmem:[%s5] sm:$0xff]
  %v5024 = vld [vmem:[%s5 + $0x8] sm:$0xff]
  %v5025 = vld [vmem:[%s5 + $0x10] sm:$0xff]
  %v5026 = vld [vmem:[%s5 + $0x18] sm:$0xff]
  %v5027 = vld [vmem:[%s5 + $0x20] sm:$0xff]
  %v5028 = vld [vmem:[%s5 + $0x28] sm:$0xff]
  %v5029 = vld [vmem:[%s5 + $0x30] sm:$0xff]
  %v5030 = vld [vmem:[%s5 + $0x38] sm:$0xff]
  %v5031 = vld [vmem:[%s5 + $0x40] sm:$0xff]
  %v5032 = vld [vmem:[%s5 + $0x48] sm:$0xff]
  %v5033 = vld [vmem:[%s5 + $0x50] sm:$0xff]
  %v5034 = vld [vmem:[%s5 + $0x58] sm:$0xff]
  %v5035 = vld [vmem:[%s5 + $0x60] sm:$0xff]
  %v5036 = vld [vmem:[%s5 + $0x68] sm:$0xff]
  %v5037 = vld [vmem:[%s5 + $0x70] sm:$0xff]
  %v5038 = vld [vmem:[%s5 + $0x78] sm:$0xff]
  %v5039 = vld [vmem:[%s5 + $0x80] sm:$0xff]
  %v5040 = vld [vmem:[%s5 + $0x88] sm:$0xff]
  %v5041 = vld [vmem:[%s5 + $0x90] sm:$0xff]
  %v5042 = vld [vmem:[%s5 + $0x98] sm:$0xff]
  %v5043 = vld [vmem:[%s5 + $0xa0] sm:$0xff]
  %v5044 = vld [vmem:[%s5 + $0xa8] sm:$0xff]
  %v5045 = vld [vmem:[%s5 + $0xb0] sm:$0xff]
  %v5046 = vld [vmem:[%s5 + $0xb8] sm:$0xff]
  %v5047 = vld [vmem:[%s5 + $0xc0] sm:$0xff]
  %v5048 = vld [vmem:[%s5 + $0xc8] sm:$0xff]
  %v5049 = vld [vmem:[%s5 + $0xd0] sm:$0xff]
  %v5050 = vld [vmem:[%s5 + $0xd8] sm:$0xff]
  %v5051 = vld [vmem:[%s5 + $0xe0] sm:$0xff]
  %v5052 = vld [vmem:[%s5 + $0xe8] sm:$0xff]
  %v5053 = vld [vmem:[%s5 + $0xf0] sm:$0xff]
  %v5054 = vld [vmem:[%s5 + $0xf8] sm:$0xff]
  %v5055 = vld [vmem:[%s5 + $0x100] sm:$0xff]
  %v5056 = vld [vmem:[%s5 + $0x108] sm:$0xff]
  %v5057 = vld [vmem:[%s5 + $0x110] sm:$0xff]
  %v5058 = vld [vmem:[%s5 + $0x118] sm:$0xff]
  %v5059 = vld [vmem:[%s5 + $0x120] sm:$0xff]
  %v5060 = vld [vmem:[%s5 + $0x128] sm:$0xff]
  %v5061 = vld [vmem:[%s5 + $0x130] sm:$0xff]
  %v5062 = vld [vmem:[%s5 + $0x138] sm:$0xff]
  %v5063 = vld [vmem:[%s5 + $0x140] sm:$0xff]
  %v5064 = vld [vmem:[%s5 + $0x148] sm:$0xff]
  %v5065 = vld [vmem:[%s5 + $0x150] sm:$0xff]
  %v5066 = vld [vmem:[%s5 + $0x158] sm:$0xff]
  %v5067 = vld [vmem:[%s5 + $0x160] sm:$0xff]
  %v5068 = vld [vmem:[%s5 + $0x168] sm:$0xff]
  %v5069 = vld [vmem:[%s5 + $0x170] sm:$0xff]
  %v5070 = vld [vmem:[%s5 + $0x178] sm:$0xff]
  %v5071 = vld [vmem:[%s5 + $0x180] sm:$0xff]
  %v5072 = vld [vmem:[%s5 + $0x188] sm:$0xff]
  %v5073 = vld [vmem:[%s5 + $0x190] sm:$0xff]
  %v5074 = vld [vmem:[%s5 + $0x198] sm:$0xff]
  %v5075 = vld [vmem:[%s5 + $0x1a0] sm:$0xff]
  %v5076 = vld [vmem:[%s5 + $0x1a8] sm:$0xff]
  %v5077 = vld [vmem:[%s5 + $0x1b0] sm:$0xff]
  %v5078 = vld [vmem:[%s5 + $0x1b8] sm:$0xff]
  %v5079 = vld [vmem:[%s5 + $0x1c0] sm:$0xff]
  %v5080 = vld [vmem:[%s5 + $0x1c8] sm:$0xff]
  %v5081 = vld [vmem:[%s5 + $0x1d0] sm:$0xff]
  %v5082 = vld [vmem:[%s5 + $0x1d8] sm:$0xff]
  %v5083 = vld [vmem:[%s5 + $0x1e0] sm:$0xff]
  %v5084 = vld [vmem:[%s5 + $0x1e8] sm:$0xff]
  %v5085 = vld [vmem:[%s5 + $0x1f0] sm:$0xff]
  %v5086 = vld [vmem:[%s5 + $0x1f8] sm:$0xff]
  %v5087 = vld [vmem:[%s6] sm:$0x3]
  %v5089 = vlaneseq
  %v5090 = vshrl.u32 %v5089, 7
  %v5091 = vsub.s32 0, %v5090
  %v5092 = vrot.slane %v5087, %v5091
  %v5093 = vlaneseq
  %v5094 = vshrl.u32 %v5093, 7
  %v5095 = vsub.s32 1, %v5094
  %v5096 = vrot.slane %v5087, %v5095
  %v5163 = vunpack.c.l.b16 %v5023
  %v5164 = vunpack.c.h.b16 %v5023
  %v5165 = vunpack.c.l.b16 %v5024
  %v5166 = vunpack.c.h.b16 %v5024
  %v5167 = vunpack.c.l.b16 %v5025
  %v5168 = vunpack.c.h.b16 %v5025
  %v5169 = vunpack.c.l.b16 %v5026
  %v5170 = vunpack.c.h.b16 %v5026
  %v5171 = vunpack.c.l.b16 %v5027
  %v5172 = vunpack.c.h.b16 %v5027
  %v5173 = vunpack.c.l.b16 %v5028
  %v5174 = vunpack.c.h.b16 %v5028
  %v5175 = vunpack.c.l.b16 %v5029
  %v5176 = vunpack.c.h.b16 %v5029
  %v5177 = vunpack.c.l.b16 %v5030
  %v5178 = vunpack.c.h.b16 %v5030
  %v5179 = vunpack.c.l.b16 %v5031
  %v5180 = vunpack.c.h.b16 %v5031
  %v5181 = vunpack.c.l.b16 %v5032
  %v5182 = vunpack.c.h.b16 %v5032
  %v5183 = vunpack.c.l.b16 %v5033
  %v5184 = vunpack.c.h.b16 %v5033
  %v5185 = vunpack.c.l.b16 %v5034
  %v5186 = vunpack.c.h.b16 %v5034
  %v5187 = vunpack.c.l.b16 %v5035
  %v5188 = vunpack.c.h.b16 %v5035
  %v5189 = vunpack.c.l.b16 %v5036
  %v5190 = vunpack.c.h.b16 %v5036
  %v5191 = vunpack.c.l.b16 %v5037
  %v5192 = vunpack.c.h.b16 %v5037
  %v5193 = vunpack.c.l.b16 %v5038
  %v5194 = vunpack.c.h.b16 %v5038
  %v5195 = vunpack.c.l.b16 %v5039
  %v5196 = vunpack.c.h.b16 %v5039
  %v5197 = vunpack.c.l.b16 %v5040
  %v5198 = vunpack.c.h.b16 %v5040
  %v5199 = vunpack.c.l.b16 %v5041
  %v5200 = vunpack.c.h.b16 %v5041
  %v5201 = vunpack.c.l.b16 %v5042
  %v5202 = vunpack.c.h.b16 %v5042
  %v5203 = vunpack.c.l.b16 %v5043
  %v5204 = vunpack.c.h.b16 %v5043
  %v5205 = vunpack.c.l.b16 %v5044
  %v5206 = vunpack.c.h.b16 %v5044
  %v5207 = vunpack.c.l.b16 %v5045
  %v5208 = vunpack.c.h.b16 %v5045
  %v5209 = vunpack.c.l.b16 %v5046
  %v5210 = vunpack.c.h.b16 %v5046
  %v5211 = vunpack.c.l.b16 %v5047
  %v5212 = vunpack.c.h.b16 %v5047
  %v5213 = vunpack.c.l.b16 %v5048
  %v5214 = vunpack.c.h.b16 %v5048
  %v5215 = vunpack.c.l.b16 %v5049
  %v5216 = vunpack.c.h.b16 %v5049
  %v5217 = vunpack.c.l.b16 %v5050
  %v5218 = vunpack.c.h.b16 %v5050
  %v5219 = vunpack.c.l.b16 %v5051
  %v5220 = vunpack.c.h.b16 %v5051
  %v5221 = vunpack.c.l.b16 %v5052
  %v5222 = vunpack.c.h.b16 %v5052
  %v5223 = vunpack.c.l.b16 %v5053
  %v5224 = vunpack.c.h.b16 %v5053
  %v5225 = vunpack.c.l.b16 %v5054
  %v5226 = vunpack.c.h.b16 %v5054
  %v5227 = vunpack.c.l.b16 %v5055
  %v5228 = vunpack.c.h.b16 %v5055
  %v5229 = vunpack.c.l.b16 %v5056
  %v5230 = vunpack.c.h.b16 %v5056
  %v5231 = vunpack.c.l.b16 %v5057
  %v5232 = vunpack.c.h.b16 %v5057
  %v5233 = vunpack.c.l.b16 %v5058
  %v5234 = vunpack.c.h.b16 %v5058
  %v5235 = vunpack.c.l.b16 %v5059
  %v5236 = vunpack.c.h.b16 %v5059
  %v5237 = vunpack.c.l.b16 %v5060
  %v5238 = vunpack.c.h.b16 %v5060
  %v5239 = vunpack.c.l.b16 %v5061
  %v5240 = vunpack.c.h.b16 %v5061
  %v5241 = vunpack.c.l.b16 %v5062
  %v5242 = vunpack.c.h.b16 %v5062
  %v5243 = vunpack.c.l.b16 %v5063
  %v5244 = vunpack.c.h.b16 %v5063
  %v5245 = vunpack.c.l.b16 %v5064
  %v5246 = vunpack.c.h.b16 %v5064
  %v5247 = vunpack.c.l.b16 %v5065
  %v5248 = vunpack.c.h.b16 %v5065
  %v5249 = vunpack.c.l.b16 %v5066
  %v5250 = vunpack.c.h.b16 %v5066
  %v5251 = vunpack.c.l.b16 %v5067
  %v5252 = vunpack.c.h.b16 %v5067
  %v5253 = vunpack.c.l.b16 %v5068
  %v5254 = vunpack.c.h.b16 %v5068
  %v5255 = vunpack.c.l.b16 %v5069
  %v5256 = vunpack.c.h.b16 %v5069
  %v5257 = vunpack.c.l.b16 %v5070
  %v5258 = vunpack.c.h.b16 %v5070
  %v5259 = vunpack.c.l.b16 %v5071
  %v5260 = vunpack.c.h.b16 %v5071
  %v5261 = vunpack.c.l.b16 %v5072
  %v5262 = vunpack.c.h.b16 %v5072
  %v5263 = vunpack.c.l.b16 %v5073
  %v5264 = vunpack.c.h.b16 %v5073
  %v5265 = vunpack.c.l.b16 %v5074
  %v5266 = vunpack.c.h.b16 %v5074
  %v5267 = vunpack.c.l.b16 %v5075
  %v5268 = vunpack.c.h.b16 %v5075
  %v5269 = vunpack.c.l.b16 %v5076
  %v5270 = vunpack.c.h.b16 %v5076
  %v5271 = vunpack.c.l.b16 %v5077
  %v5272 = vunpack.c.h.b16 %v5077
  %v5273 = vunpack.c.l.b16 %v5078
  %v5274 = vunpack.c.h.b16 %v5078
  %v5275 = vunpack.c.l.b16 %v5079
  %v5276 = vunpack.c.h.b16 %v5079
  %v5277 = vunpack.c.l.b16 %v5080
  %v5278 = vunpack.c.h.b16 %v5080
  %v5279 = vunpack.c.l.b16 %v5081
  %v5280 = vunpack.c.h.b16 %v5081
  %v5281 = vunpack.c.l.b16 %v5082
  %v5282 = vunpack.c.h.b16 %v5082
  %v5283 = vunpack.c.l.b16 %v5083
  %v5284 = vunpack.c.h.b16 %v5083
  %v5285 = vunpack.c.l.b16 %v5084
  %v5286 = vunpack.c.h.b16 %v5084
  %v5287 = vunpack.c.l.b16 %v5085
  %v5288 = vunpack.c.h.b16 %v5085
  %v5289 = vunpack.c.l.b16 %v5086
  %v5290 = vunpack.c.h.b16 %v5086
  %v5291 = vpack.c.b16 %v5165, %v5163
  %v5292 = vpack.c.b16 %v5166, %v5164
  %v5293 = vpack.c.b16 %v5169, %v5167
  %v5294 = vpack.c.b16 %v5170, %v5168
  %v5295 = vpack.c.b16 %v5173, %v5171
  %v5296 = vpack.c.b16 %v5174, %v5172
  %v5297 = vpack.c.b16 %v5177, %v5175
  %v5298 = vpack.c.b16 %v5178, %v5176
  %v5299 = vpack.c.b16 %v5181, %v5179
  %v5300 = vpack.c.b16 %v5182, %v5180
  %v5301 = vpack.c.b16 %v5185, %v5183
  %v5302 = vpack.c.b16 %v5186, %v5184
  %v5303 = vpack.c.b16 %v5189, %v5187
  %v5304 = vpack.c.b16 %v5190, %v5188
  %v5305 = vpack.c.b16 %v5193, %v5191
  %v5306 = vpack.c.b16 %v5194, %v5192
  %v5307 = vpack.c.b16 %v5197, %v5195
  %v5308 = vpack.c.b16 %v5198, %v5196
  %v5309 = vpack.c.b16 %v5201, %v5199
  %v5310 = vpack.c.b16 %v5202, %v5200
  %v5311 = vpack.c.b16 %v5205, %v5203
  %v5312 = vpack.c.b16 %v5206, %v5204
  %v5313 = vpack.c.b16 %v5209, %v5207
  %v5314 = vpack.c.b16 %v5210, %v5208
  %v5315 = vpack.c.b16 %v5213, %v5211
  %v5316 = vpack.c.b16 %v5214, %v5212
  %v5317 = vpack.c.b16 %v5217, %v5215
  %v5318 = vpack.c.b16 %v5218, %v5216
  %v5319 = vpack.c.b16 %v5221, %v5219
  %v5320 = vpack.c.b16 %v5222, %v5220
  %v5321 = vpack.c.b16 %v5225, %v5223
  %v5322 = vpack.c.b16 %v5226, %v5224
  %v5323 = vpack.c.b16 %v5229, %v5227
  %v5324 = vpack.c.b16 %v5230, %v5228
  %v5325 = vpack.c.b16 %v5233, %v5231
  %v5326 = vpack.c.b16 %v5234, %v5232
  %v5327 = vpack.c.b16 %v5237, %v5235
  %v5328 = vpack.c.b16 %v5238, %v5236
  %v5329 = vpack.c.b16 %v5241, %v5239
  %v5330 = vpack.c.b16 %v5242, %v5240
  %v5331 = vpack.c.b16 %v5245, %v5243
  %v5332 = vpack.c.b16 %v5246, %v5244
  %v5333 = vpack.c.b16 %v5249, %v5247
  %v5334 = vpack.c.b16 %v5250, %v5248
  %v5335 = vpack.c.b16 %v5253, %v5251
  %v5336 = vpack.c.b16 %v5254, %v5252
  %v5337 = vpack.c.b16 %v5257, %v5255
  %v5338 = vpack.c.b16 %v5258, %v5256
  %v5339 = vpack.c.b16 %v5261, %v5259
  %v5340 = vpack.c.b16 %v5262, %v5260
  %v5341 = vpack.c.b16 %v5265, %v5263
  %v5342 = vpack.c.b16 %v5266, %v5264
  %v5343 = vpack.c.b16 %v5269, %v5267
  %v5344 = vpack.c.b16 %v5270, %v5268
  %v5345 = vpack.c.b16 %v5273, %v5271
  %v5346 = vpack.c.b16 %v5274, %v5272
  %v5347 = vpack.c.b16 %v5277, %v5275
  %v5348 = vpack.c.b16 %v5278, %v5276
  %v5349 = vpack.c.b16 %v5281, %v5279
  %v5350 = vpack.c.b16 %v5282, %v5280
  %v5351 = vpack.c.b16 %v5285, %v5283
  %v5352 = vpack.c.b16 %v5286, %v5284
  %v5353 = vpack.c.b16 %v5289, %v5287
  %v5354 = vpack.c.b16 %v5290, %v5288
  %5419 = vmatprep.subr.bf16.mxu0 %v5292
  %5420 = vmatpush1.bf16.msra.mxu0 %v5291
  %5421 = vmatprep.subr.bf16.mxu0 %v5294
  %5422 = vmatpush1.bf16.msra.mxu0 %v5293
  %5423 = vmatprep.subr.bf16.mxu0 %v5296
  %5424 = vmatpush1.bf16.msra.mxu0 %v5295
  %5425 = vmatprep.subr.bf16.mxu0 %v5298
  %5426 = vmatpush1.bf16.msra.mxu0 %v5297
  %5427 = vmatprep.subr.bf16.mxu0 %v5300
  %5428 = vmatpush1.bf16.msra.mxu0 %v5299
  %5429 = vmatprep.subr.bf16.mxu0 %v5302
  %5430 = vmatpush1.bf16.msra.mxu0 %v5301
  %5431 = vmatprep.subr.bf16.mxu0 %v5304
  %5432 = vmatpush1.bf16.msra.mxu0 %v5303
  %5433 = vmatprep.subr.bf16.mxu0 %v5306
  %5434 = vmatpush1.bf16.msra.mxu0 %v5305
  %5435 = vmatprep.subr.bf16.mxu0 %v5308
  %5436 = vmatpush1.bf16.msra.mxu0 %v5307
  %5437 = vmatprep.subr.bf16.mxu0 %v5310
  %5438 = vmatpush1.bf16.msra.mxu0 %v5309
  %5439 = vmatprep.subr.bf16.mxu0 %v5312
  %5440 = vmatpush1.bf16.msra.mxu0 %v5311
  %5441 = vmatprep.subr.bf16.mxu0 %v5314
  %5442 = vmatpush1.bf16.msra.mxu0 %v5313
  %5443 = vmatprep.subr.bf16.mxu0 %v5316
  %5444 = vmatpush1.bf16.msra.mxu0 %v5315
  %5445 = vmatprep.subr.bf16.mxu0 %v5318
  %5446 = vmatpush1.bf16.msra.mxu0 %v5317
  %5447 = vmatprep.subr.bf16.mxu0 %v5320
  %5448 = vmatpush1.bf16.msra.mxu0 %v5319
  %5449 = vmatprep.subr.bf16.mxu0 %v5322
  %5450 = vmatpush1.bf16.msra.mxu0 %v5321
  %5451 = vmatprep.mubr.bf16.mxu0 %v5020
  %5452 = vmatmul.mubr.bf16.gmra.mrb[0].mxu0 %v5019
  %v5453 = vpop.f32.mrb[0].mxu0
  %v5454 = vadd.f32 %v5092, %v5453
  %v5455 = vpop.f32.mrb[0].mxu0
  %v5456 = vadd.f32 %v5096, %v5455
  %v5457 = vpop.f32.mrb[0].mxu0
  %v5458 = vpop.f32.mrb[0].mxu0
  %5459 = vdwg.mxu0
  %5460 = vmatprep.subr.bf16.mxu0 %v5324
  %5461 = vmatpush1.bf16.msra.mxu0 %v5323
  %5462 = vmatprep.subr.bf16.mxu0 %v5326
  %5463 = vmatpush1.bf16.msra.mxu0 %v5325
  %5464 = vmatprep.subr.bf16.mxu0 %v5328
  %5465 = vmatpush1.bf16.msra.mxu0 %v5327
  %5466 = vmatprep.subr.bf16.mxu0 %v5330
  %5467 = vmatpush1.bf16.msra.mxu0 %v5329
  %5468 = vmatprep.subr.bf16.mxu0 %v5332
  %5469 = vmatpush1.bf16.msra.mxu0 %v5331
  %5470 = vmatprep.subr.bf16.mxu0 %v5334
  %5471 = vmatpush1.bf16.msra.mxu0 %v5333
  %5472 = vmatprep.subr.bf16.mxu0 %v5336
  %5473 = vmatpush1.bf16.msra.mxu0 %v5335
  %5474 = vmatprep.subr.bf16.mxu0 %v5338
  %5475 = vmatpush1.bf16.msra.mxu0 %v5337
  %5476 = vmatprep.subr.bf16.mxu0 %v5340
  %5477 = vmatpush1.bf16.msra.mxu0 %v5339
  %5478 = vmatprep.subr.bf16.mxu0 %v5342
  %5479 = vmatpush1.bf16.msra.mxu0 %v5341
  %5480 = vmatprep.subr.bf16.mxu0 %v5344
  %5481 = vmatpush1.bf16.msra.mxu0 %v5343
  %5482 = vmatprep.subr.bf16.mxu0 %v5346
  %5483 = vmatpush1.bf16.msra.mxu0 %v5345
  %5484 = vmatprep.subr.bf16.mxu0 %v5348
  %5485 = vmatpush1.bf16.msra.mxu0 %v5347
  %5486 = vmatprep.subr.bf16.mxu0 %v5350
  %5487 = vmatpush1.bf16.msra.mxu0 %v5349
  %5488 = vmatprep.subr.bf16.mxu0 %v5352
  %5489 = vmatpush1.bf16.msra.mxu0 %v5351
  %5490 = vmatprep.subr.bf16.mxu0 %v5354
  %5491 = vmatpush1.bf16.msra.mxu0 %v5353
  %5492 = vmatprep.mubr.bf16.mxu0 %v5022
  %5493 = vmatmul.mubr.bf16.gmra.mrb[0].mxu0 %v5021
  %v5494 = vpop.f32.mrb[0].mxu0
  %v5495 = vadd.f32 %v5454, %v5494
  %v5496 = vpop.f32.mrb[0].mxu0
  %v5497 = vadd.f32 %v5456, %v5496
  %v5498 = vpop.f32.mrb[0].mxu0
  %v5499 = vpop.f32.mrb[0].mxu0
  %5500 = vdwg.mxu0
  %v5501 = vmul.f32 %v5495, 0.2
  %v5502 = vmul.f32 %v5497, 0.2
  %v5503 = vmax.f32 %v5495, %v5501
  %v5504 = vmax.f32 %v5497, %v5502
  %v5505 = vpack.c.bf16 %v5503, %v5503
  %v5506 = vpack.c.bf16 %v5504, %v5504
  %v5507 = vld [vmem:[%s7] sm:$0xf]
  %v5508 = vld [vmem:[%s7 + $0x4] sm:$0xf]
  %v5509 = vld [vmem:[%s7 + $0x8] sm:$0xf]
  %v5510 = vld [vmem:[%s7 + $0xc] sm:$0xf]
  %v5511 = vld [vmem:[%s7 + $0x10] sm:$0xf]
  %v5512 = vld [vmem:[%s7 + $0x14] sm:$0xf]
  %v5513 = vld [vmem:[%s7 + $0x18] sm:$0xf]
  %v5514 = vld [vmem:[%s7 + $0x1c] sm:$0xf]
  %v5515 = vld [vmem:[%s7 + $0x20] sm:$0xf]
  %v5516 = vld [vmem:[%s7 + $0x24] sm:$0xf]
  %v5517 = vld [vmem:[%s7 + $0x28] sm:$0xf]
  %v5518 = vld [vmem:[%s7 + $0x2c] sm:$0xf]
  %v5519 = vld [vmem:[%s7 + $0x30] sm:$0xf]
  %v5520 = vld [vmem:[%s7 + $0x34] sm:$0xf]
  %v5521 = vld [vmem:[%s7 + $0x38] sm:$0xf]
  %v5522 = vld [vmem:[%s7 + $0x3c] sm:$0xf]
  %v5523 = vld [vmem:[%s7 + $0x40] sm:$0xf]
  %v5524 = vld [vmem:[%s7 + $0x44] sm:$0xf]
  %v5525 = vld [vmem:[%s7 + $0x48] sm:$0xf]
  %v5526 = vld [vmem:[%s7 + $0x4c] sm:$0xf]
  %v5527 = vld [vmem:[%s7 + $0x50] sm:$0xf]
  %v5528 = vld [vmem:[%s7 + $0x54] sm:$0xf]
  %v5529 = vld [vmem:[%s7 + $0x58] sm:$0xf]
  %v5530 = vld [vmem:[%s7 + $0x5c] sm:$0xf]
  %v5531 = vld [vmem:[%s7 + $0x60] sm:$0xf]
  %v5532 = vld [vmem:[%s7 + $0x64] sm:$0xf]
  %v5533 = vld [vmem:[%s7 + $0x68] sm:$0xf]
  %v5534 = vld [vmem:[%s7 + $0x6c] sm:$0xf]
  %v5535 = vld [vmem:[%s7 + $0x70] sm:$0xf]
  %v5536 = vld [vmem:[%s7 + $0x74] sm:$0xf]
  %v5537 = vld [vmem:[%s7 + $0x78] sm:$0xf]
  %v5538 = vld [vmem:[%s7 + $0x7c] sm:$0xf]
  %v5539 = vld [vmem:[%s8] sm:$0x1]
  %v5541 = vlaneseq
  %v5542 = vshrl.u32 %v5541, 7
  %v5543 = vsub.s32 0, %v5542
  %v5544 = vrot.slane %v5539, %v5543
  %v5578 = vunpack.c.l.b16 %v5507
  %v5579 = vunpack.c.l.b16 %v5508
  %v5580 = vunpack.c.l.b16 %v5509
  %v5581 = vunpack.c.l.b16 %v5510
  %v5582 = vunpack.c.l.b16 %v5511
  %v5583 = vunpack.c.l.b16 %v5512
  %v5584 = vunpack.c.l.b16 %v5513
  %v5585 = vunpack.c.l.b16 %v5514
  %v5586 = vunpack.c.l.b16 %v5515
  %v5587 = vunpack.c.l.b16 %v5516
  %v5588 = vunpack.c.l.b16 %v5517
  %v5589 = vunpack.c.l.b16 %v5518
  %v5590 = vunpack.c.l.b16 %v5519
  %v5591 = vunpack.c.l.b16 %v5520
  %v5592 = vunpack.c.l.b16 %v5521
  %v5593 = vunpack.c.l.b16 %v5522
  %v5594 = vunpack.c.l.b16 %v5523
  %v5595 = vunpack.c.l.b16 %v5524
  %v5596 = vunpack.c.l.b16 %v5525
  %v5597 = vunpack.c.l.b16 %v5526
  %v5598 = vunpack.c.l.b16 %v5527
  %v5599 = vunpack.c.l.b16 %v5528
  %v5600 = vunpack.c.l.b16 %v5529
  %v5601 = vunpack.c.l.b16 %v5530
  %v5602 = vunpack.c.l.b16 %v5531
  %v5603 = vunpack.c.l.b16 %v5532
  %v5604 = vunpack.c.l.b16 %v5533
  %v5605 = vunpack.c.l.b16 %v5534
  %v5606 = vunpack.c.l.b16 %v5535
  %v5607 = vunpack.c.l.b16 %v5536
  %v5608 = vunpack.c.l.b16 %v5537
  %v5609 = vunpack.c.l.b16 %v5538
  %v5610 = vpack.c.b16 %v5579, %v5578
  %v5611 = vpack.c.b16 %v5581, %v5580
  %v5612 = vpack.c.b16 %v5583, %v5582
  %v5613 = vpack.c.b16 %v5585, %v5584
  %v5614 = vpack.c.b16 %v5587, %v5586
  %v5615 = vpack.c.b16 %v5589, %v5588
  %v5616 = vpack.c.b16 %v5591, %v5590
  %v5617 = vpack.c.b16 %v5593, %v5592
  %v5618 = vpack.c.b16 %v5595, %v5594
  %v5619 = vpack.c.b16 %v5597, %v5596
  %v5620 = vpack.c.b16 %v5599, %v5598
  %v5621 = vpack.c.b16 %v5601, %v5600
  %v5622 = vpack.c.b16 %v5603, %v5602
  %v5623 = vpack.c.b16 %v5605, %v5604
  %v5624 = vpack.c.b16 %v5607, %v5606
  %v5625 = vpack.c.b16 %v5609, %v5608
  %5642 = vmatprep.subr.bf16.mxu0 0
  %5643 = vmatpush1.bf16.msra.mxu0 %v5610
  %5644 = vmatprep.subr.bf16.mxu0 0
  %5645 = vmatpush1.bf16.msra.mxu0 %v5611
  %5646 = vmatprep.subr.bf16.mxu0 0
  %5647 = vmatpush1.bf16.msra.mxu0 %v5612
  %5648 = vmatprep.subr.bf16.mxu0 0
  %5649 = vmatpush1.bf16.msra.mxu0 %v5613
  %5650 = vmatprep.subr.bf16.mxu0 0
  %5651 = vmatpush1.bf16.msra.mxu0 %v5614
  %5652 = vmatprep.subr.bf16.mxu0 0
  %5653 = vmatpush1.bf16.msra.mxu0 %v5615
  %5654 = vmatprep.subr.bf16.mxu0 0
  %5655 = vmatpush1.bf16.msra.mxu0 %v5616
  %5656 = vmatprep.subr.bf16.mxu0 0
  %5657 = vmatpush1.bf16.msra.mxu0 %v5617
  %5658 = vmatprep.subr.bf16.mxu0 0
  %5659 = vmatpush1.bf16.msra.mxu0 %v5618
  %5660 = vmatprep.subr.bf16.mxu0 0
  %5661 = vmatpush1.bf16.msra.mxu0 %v5619
  %5662 = vmatprep.subr.bf16.mxu0 0
  %5663 = vmatpush1.bf16.msra.mxu0 %v5620
  %5664 = vmatprep.subr.bf16.mxu0 0
  %5665 = vmatpush1.bf16.msra.mxu0 %v5621
  %5666 = vmatprep.subr.bf16.mxu0 0
  %5667 = vmatpush1.bf16.msra.mxu0 %v5622
  %5668 = vmatprep.subr.bf16.mxu0 0
  %5669 = vmatpush1.bf16.msra.mxu0 %v5623
  %5670 = vmatprep.subr.bf16.mxu0 0
  %5671 = vmatpush1.bf16.msra.mxu0 %v5624
  %5672 = vmatprep.subr.bf16.mxu0 0
  %5673 = vmatpush1.bf16.msra.mxu0 %v5625
  %5674 = vmatprep.mubr.bf16.mxu0 %v5506
  %5675 = vmatmul.mubr.bf16.gmra.mrb[0].mxu0 %v5505
  %v5676 = vpop.f32.mrb[0].mxu0
  %v5677 = vadd.f32 %v5544, %v5676
  %v5678 = vpop.f32.mrb[0].mxu0
  %v5679 = vpop.f32.mrb[0].mxu0
  %v5680 = vpop.f32.mrb[0].mxu0
  %5681 = vdwg.mxu0
  %v5682 = vsub.f32 0.0, %v5677
  %v5683 = vmul.f32 %v5682, 1.442695
  %v5684 = vpow.pop %v5683
  %v5685 = vadd.f32 %v5684, 1.0
  %v5686 = vrcp.pop %v5685
  %5687 = vst [vmem:[%s9] sm:$0xff] %v5686
  // Predicated region
  $region38: #{discriminator_forward.1} parent=0 // pred_check
    _
  $region39: #{discriminator_forward.1} parent=0 // pred_check_branch
    %5689 = sbr.rel (0) target = $region41
  $region40: #{discriminator_forward.1} parent=0 // pred_region
    _
  $region41: #{discriminator_forward.1} parent=0 // pred_fallthru
    _
  // Predicated region
  $region42: #{discriminator_forward.1} parent=0 // pred_check
    _
  $region43: #{discriminator_forward.1} parent=0 // pred_check_branch
    %5691 = sbr.rel (0) target = $region45
  $region44: #{discriminator_forward.1} parent=0 // pred_region
    _
  $region45: #{discriminator_forward.1} parent=0 // pred_fallthru
    _

</llo_original>
